<compile_context>
chip_gen: v7x
topology: tpu7x:2x2x1
jax: 0.10.0
libtpu: 0.0.40
codegen_flags: <defaults>
</compile_context>

<pallas_src>
import functools

import jax
import jax.numpy as jnp
from jax.experimental import pallas as pl
from jax.experimental.pallas import tpu as pltpu


def ode_rnn_kernel(x2d_ref, dt_ref, w_ih_ref, b_comb_ref, w_hh_ref,
                   ode_w_ref, ode_b_ref, cls_w_ref, cls_b_ref, out_ref,
                   *, frame, n_step, num_layers):
    batch = out_ref.shape[0]
    hidden = w_hh_ref.shape[0]

    # ---- hoist all weight / bias loads + broadcasts out of the loops -------
    w_hh = w_hh_ref[...]
    ode_w = [ode_w_ref[l] for l in range(num_layers)]
    ode_b = [jnp.broadcast_to(ode_b_ref[l:l + 1, :], (batch, hidden))
             for l in range(num_layers)]
    cls_w = cls_w_ref[...]
    cls_b = cls_b_ref[...]

    # ---- batched RNNCell input projection: ONE MXU op for all frames -------
    # x2d is frame-major: rows [i*batch, (i+1)*batch) belong to frame i.
    # b_comb = b_ih + b_hh was fused in the wrapper.
    proj = (jnp.dot(x2d_ref[...], w_ih_ref[...],
                    preferred_element_type=jnp.float32)
            + b_comb_ref[...])                              # (frame*batch, hidden)

    # Per-frame Euler step size (already differenced), scaled by 1/n_step once.
    dt_scaled = dt_ref[...] * (1.0 / float(n_step))         # (batch, frame)

    hi = jnp.zeros((batch, hidden), jnp.float32)            # h_0 = zeros
    acc = jnp.zeros((batch, hidden), jnp.float32)           # running sum for GAP1d

    # frame is small & static -> fully unrolled Python loop (LLO sees it all).
    for i in range(frame):
        if i == 0:
            hp = hi
        else:
            # forward_ode: explicit Euler with n_step sub-steps.
            dt_i = jnp.broadcast_to(dt_scaled[:, i:i + 1], (batch, hidden))
            h = hi
            for _ in range(n_step):
                g = h
                for l in range(num_layers):
                    g = (jnp.dot(g, ode_w[l],
                                 preferred_element_type=jnp.float32)
                         + ode_b[l])
                    if l < num_layers - 1:
                        g = jnp.maximum(g, 0.0)              # ReLU between layers
                h = h + g * dt_i
            hp = h

        # nn.RNNCell (tanh): input projection + both biases already in `proj`,
        # leaving exactly one small dot on the serial critical path.
        pre = (proj[i * batch:(i + 1) * batch, :]
               + jnp.dot(hp, w_hh, preferred_element_type=jnp.float32))
        hi = jnp.tanh(pre)
        acc = acc + hi

    gap = acc * (1.0 / float(frame))                         # GAP1d over frames
    y = jnp.dot(gap, cls_w, preferred_element_type=jnp.float32) + cls_b
    out_ref[...] = y.astype(out_ref.dtype)


def ode_rnn_forward(x, tp, mask, params, *, cat_mask, n_step, num_layers):
    """Pallas-backed forward pass of ODERNNmodel."""
    if cat_mask:
        x = jnp.concatenate([x, mask], axis=-1)
    x = x.astype(jnp.float32)
    tp = tp.astype(jnp.float32)
    batch, frame, in_dim = x.shape
    out_size = params["cls_w"].shape[1]

    # Frame-major, lane-dense 2D layout: rows of frame i are contiguous, so the
    # kernel projects all frames with a single matmul and takes cheap static
    # sublane slices per frame.
    x2d = jnp.transpose(x, (1, 0, 2)).reshape(frame * batch, in_dim)

    # Pre-differenced Euler step sizes; dt[:, 0] is unused (no ODE at frame 0).
    dt = jnp.concatenate(
        [jnp.zeros((batch, 1), jnp.float32), tp[:, 1:] - tp[:, :-1]], axis=1)

    # Fuse the two RNNCell biases once on the host side.
    b_comb = (params["b_ih"] + params["b_hh"]).astype(jnp.float32)

    kernel = functools.partial(ode_rnn_kernel, frame=frame,
                               n_step=n_step, num_layers=num_layers)
    vmem = lambda: pl.BlockSpec(memory_space=pltpu.MemorySpace.VMEM)

    # NOTE: for large batches (>=128 rows), add grid=(batch // bb,) with a
    # batch-blocked BlockSpec and dimension_semantics=("parallel",) so v7x can
    # shard the work across both TensorCores; at batch=2 this is pure overhead.
    return pl.pallas_call(
        kernel,
        out_shape=jax.ShapeDtypeStruct((batch, out_size), jnp.float32),
        in_specs=[vmem() for _ in range(9)],
        out_specs=vmem(),
    )(x2d, dt, params["w_ih"], b_comb, params["w_hh"],
      params["ode_w"], params["ode_b"], params["cls_w"], params["cls_b"])


def ode_rnn_reference(x, tp, mask, params, *, cat_mask, n_step, num_layers):
    """Pure-JAX reference mirroring the PyTorch module."""
    if cat_mask:
        x = jnp.concatenate([x, mask], axis=-1)
    batch, frame, _ = x.shape
    hidden = params["w_hh"].shape[0]
    hi = jnp.zeros((batch, hidden), jnp.float32)
    hs = []
    for i in range(frame):
        xi = x[:, i, :]
        if i == 0:
            hp = hi
        else:
            dt = tp[:, i:i + 1] - tp[:, i - 1:i]
            h = hi
            for _ in range(n_step):
                g = h
                for l in range(num_layers):
                    g = g @ params["ode_w"][l] + params["ode_b"][l][None, :]
                    if l < num_layers - 1:
                        g = jnp.maximum(g, 0.0)
                h = h + g * dt / float(n_step)
            hp = h
        hi = jnp.tanh(xi @ params["w_ih"] + params["b_ih"]
                      + hp @ params["w_hh"] + params["b_hh"])
        hs.append(hi)
    gap = jnp.mean(jnp.stack(hs, axis=2), axis=2)
    return gap @ params["cls_w"] + params["cls_b"]


def init_params(key, input_size_eff, hidden, output, num_layers):
    """Deterministic synthetic parameters (PyTorch-style uniform fan-in init)."""
    ks = jax.random.split(key, 10)
    u = lambda k, shape, fan_in: jax.random.uniform(
        k, shape, jnp.float32, -1.0 / jnp.sqrt(fan_in), 1.0 / jnp.sqrt(fan_in))
    return {
        "w_ih": u(ks[0], (input_size_eff, hidden), hidden),
        "b_ih": u(ks[1], (1, hidden), hidden),
        "w_hh": u(ks[2], (hidden, hidden), hidden),
        "b_hh": u(ks[3], (1, hidden), hidden),
        "ode_w": u(ks[4], (num_layers, hidden, hidden), hidden),
        "ode_b": u(ks[5], (num_layers, hidden), hidden),
        "cls_w": u(ks[6], (hidden, output), hidden),
        "cls_b": u(ks[7], (1, output), hidden),
    }


if __name__ == "__main__":
    # opt: input_size=4, hidden_size=32, num_layers=2, output_size=5,
    #      n_step=3, cat_mask=True  -> effective input_size = 8
    batch, frame, input_size = 2, 8, 4
    hidden, output, num_layers, n_step = 32, 5, 2, 3
    cat_mask = True
    input_size_eff = input_size * 2 if cat_mask else input_size

    key = jax.random.PRNGKey(0)
    kx, km, kt, kp = jax.random.split(key, 4)

    x = jax.random.normal(kx, (batch, frame, input_size), jnp.float32)
    mask = (jax.random.uniform(km, (batch, frame, input_size)) > 0.3).astype(jnp.float32)
    # tp: monotonically increasing per-sample timestamps, shape (batch, frame).
    # (Module's `grad * (ti - ti_last)` broadcast implies a per-sample scalar dt;
    #  we apply it as (batch, 1) against the (batch, hidden) state.)
    tp = jnp.cumsum(jax.random.uniform(kt, (batch, frame), jnp.float32,
                                       0.1, 1.0), axis=1)

    params = init_params(kp, input_size_eff, hidden, output, num_layers)

    y = ode_rnn_forward(x, tp, mask, params, cat_mask=cat_mask,
                        n_step=n_step, num_layers=num_layers)
    y = jax.block_until_ready(y)

    y_ref = ode_rnn_reference(x, tp, mask, params, cat_mask=cat_mask,
                              n_step=n_step, num_layers=num_layers)

    assert y.shape == (batch, output)
    assert jnp.allclose(y, y_ref, atol=1e-5, rtol=1e-5), (y, y_ref)
    print("KERNEL_OK")
</pallas_src>

<mosaic_0001>
module attributes {stable_mosaic.version = 11 : i64} {
  func.func @ode_rnn_kernel(%arg0: memref<16x8xf32, #tpu.memory_space<vmem>>, %arg1: memref<2x8xf32, #tpu.memory_space<vmem>>, %arg2: memref<8x32xf32, #tpu.memory_space<vmem>>, %arg3: memref<1x32xf32, #tpu.memory_space<vmem>>, %arg4: memref<32x32xf32, #tpu.memory_space<vmem>>, %arg5: memref<2x32x32xf32, #tpu.memory_space<vmem>>, %arg6: memref<2x32xf32, #tpu.memory_space<vmem>>, %arg7: memref<32x5xf32, #tpu.memory_space<vmem>>, %arg8: memref<1x5xf32, #tpu.memory_space<vmem>>, %arg9: memref<2x5xf32, #tpu.memory_space<vmem>>) attributes {dimension_semantics = [], scalar_prefetch = 0 : i64, scratch_operands = 0 : i64, tpu.core_type = #tpu.core_type<tc>} {
    %c0 = arith.constant 0 : index
    %c0_0 = arith.constant 0 : index
    %0 = vector.load %arg4[%c0, %c0_0] : memref<32x32xf32, #tpu.memory_space<vmem>>, vector<32x32xf32>
    %c0_1 = arith.constant 0 : index
    %c0_2 = arith.constant 0 : index
    %c0_3 = arith.constant 0 : index
    %1 = vector.load %arg5[%c0_1, %c0_2, %c0_3] : memref<2x32x32xf32, #tpu.memory_space<vmem>>, vector<1x32x32xf32>
    %2 = vector.shape_cast %1 : vector<1x32x32xf32> to vector<32x32xf32>
    %c1 = arith.constant 1 : index
    %c0_4 = arith.constant 0 : index
    %c0_5 = arith.constant 0 : index
    %3 = vector.load %arg5[%c1, %c0_4, %c0_5] : memref<2x32x32xf32, #tpu.memory_space<vmem>>, vector<1x32x32xf32>
    %4 = vector.shape_cast %3 : vector<1x32x32xf32> to vector<32x32xf32>
    %c0_6 = arith.constant 0 : index
    %c0_7 = arith.constant 0 : index
    %5 = vector.load %arg6[%c0_6, %c0_7] : memref<2x32xf32, #tpu.memory_space<vmem>>, vector<1x32xf32>
    %6 = vector.shape_cast %5 : vector<1x32xf32> to vector<1x32xf32>
    %7 = vector.broadcast %6 : vector<1x32xf32> to vector<2x32xf32>
    %c1_8 = arith.constant 1 : index
    %c0_9 = arith.constant 0 : index
    %8 = vector.load %arg6[%c1_8, %c0_9] : memref<2x32xf32, #tpu.memory_space<vmem>>, vector<1x32xf32>
    %9 = vector.shape_cast %8 : vector<1x32xf32> to vector<1x32xf32>
    %10 = vector.broadcast %9 : vector<1x32xf32> to vector<2x32xf32>
    %c0_10 = arith.constant 0 : index
    %c0_11 = arith.constant 0 : index
    %11 = vector.load %arg7[%c0_10, %c0_11] : memref<32x5xf32, #tpu.memory_space<vmem>>, vector<32x5xf32>
    %c0_12 = arith.constant 0 : index
    %c0_13 = arith.constant 0 : index
    %12 = vector.load %arg8[%c0_12, %c0_13] : memref<1x5xf32, #tpu.memory_space<vmem>>, vector<1x5xf32>
    %c0_14 = arith.constant 0 : index
    %c0_15 = arith.constant 0 : index
    %13 = vector.load %arg0[%c0_14, %c0_15] : memref<16x8xf32, #tpu.memory_space<vmem>>, vector<16x8xf32>
    %c0_16 = arith.constant 0 : index
    %c0_17 = arith.constant 0 : index
    %14 = vector.load %arg2[%c0_16, %c0_17] : memref<8x32xf32, #tpu.memory_space<vmem>>, vector<8x32xf32>
    %cst = arith.constant dense<0.000000e+00> : vector<16x32xf32>
    %15 = tpu.matmul %13, %14, %cst {dimension_numbers = #tpu.dot_dimension_numbers<[1], [0], [0], [1], [0, 0, 1, 1], [], []>} : vector<16x8xf32>, vector<8x32xf32>, vector<16x32xf32> -> vector<16x32xf32>
    %c0_18 = arith.constant 0 : index
    %c0_19 = arith.constant 0 : index
    %16 = vector.load %arg3[%c0_18, %c0_19] : memref<1x32xf32, #tpu.memory_space<vmem>>, vector<1x32xf32>
    %17 = vector.broadcast %16 : vector<1x32xf32> to vector<16x32xf32>
    %18 = arith.addf %15, %17 : vector<16x32xf32>
    %c0_20 = arith.constant 0 : index
    %c0_21 = arith.constant 0 : index
    %19 = vector.load %arg1[%c0_20, %c0_21] : memref<2x8xf32, #tpu.memory_space<vmem>>, vector<2x8xf32>
    %cst_22 = arith.constant 0.333333343 : f32
    %20 = vector.broadcast %cst_22 : f32 to vector<2x8xf32>
    %21 = arith.mulf %19, %20 : vector<2x8xf32>
    %cst_23 = arith.constant 0.000000e+00 : f32
    %22 = vector.broadcast %cst_23 : f32 to vector<2x32xf32>
    %cst_24 = arith.constant 0.000000e+00 : f32
    %23 = vector.broadcast %cst_24 : f32 to vector<2x32xf32>
    %24 = vector.extract_strided_slice %18 {offsets = [0, 0], sizes = [2, 32], strides = [1, 1]} : vector<16x32xf32> to vector<2x32xf32>
    %cst_25 = arith.constant dense<0.000000e+00> : vector<2x32xf32>
    %25 = tpu.matmul %22, %0, %cst_25 {dimension_numbers = #tpu.dot_dimension_numbers<[1], [0], [0], [1], [0, 0, 1, 1], [], []>} : vector<2x32xf32>, vector<32x32xf32>, vector<2x32xf32> -> vector<2x32xf32>
    %26 = arith.addf %24, %25 : vector<2x32xf32>
    %27 = math.tanh %26 : vector<2x32xf32>
    %28 = arith.addf %23, %27 : vector<2x32xf32>
    %29 = vector.extract_strided_slice %21 {offsets = [0, 1], sizes = [2, 1], strides = [1, 1]} : vector<2x8xf32> to vector<2x1xf32>
    %30 = vector.shape_cast %29 : vector<2x1xf32> to vector<2x1xf32>
    %31 = vector.broadcast %30 : vector<2x1xf32> to vector<2x32xf32>
    %cst_26 = arith.constant dense<0.000000e+00> : vector<2x32xf32>
    %32 = tpu.matmul %27, %2, %cst_26 {dimension_numbers = #tpu.dot_dimension_numbers<[1], [0], [0], [1], [0, 0, 1, 1], [], []>} : vector<2x32xf32>, vector<32x32xf32>, vector<2x32xf32> -> vector<2x32xf32>
    %33 = arith.addf %32, %7 : vector<2x32xf32>
    %cst_27 = arith.constant 0.000000e+00 : f32
    %34 = vector.broadcast %cst_27 : f32 to vector<2x32xf32>
    %35 = arith.maximumf %33, %34 : vector<2x32xf32>
    %cst_28 = arith.constant dense<0.000000e+00> : vector<2x32xf32>
    %36 = tpu.matmul %35, %4, %cst_28 {dimension_numbers = #tpu.dot_dimension_numbers<[1], [0], [0], [1], [0, 0, 1, 1], [], []>} : vector<2x32xf32>, vector<32x32xf32>, vector<2x32xf32> -> vector<2x32xf32>
    %37 = arith.addf %36, %10 : vector<2x32xf32>
    %38 = arith.mulf %37, %31 : vector<2x32xf32>
    %39 = arith.addf %27, %38 : vector<2x32xf32>
    %cst_29 = arith.constant dense<0.000000e+00> : vector<2x32xf32>
    %40 = tpu.matmul %39, %2, %cst_29 {dimension_numbers = #tpu.dot_dimension_numbers<[1], [0], [0], [1], [0, 0, 1, 1], [], []>} : vector<2x32xf32>, vector<32x32xf32>, vector<2x32xf32> -> vector<2x32xf32>
    %41 = arith.addf %40, %7 : vector<2x32xf32>
    %cst_30 = arith.constant 0.000000e+00 : f32
    %42 = vector.broadcast %cst_30 : f32 to vector<2x32xf32>
    %43 = arith.maximumf %41, %42 : vector<2x32xf32>
    %cst_31 = arith.constant dense<0.000000e+00> : vector<2x32xf32>
    %44 = tpu.matmul %43, %4, %cst_31 {dimension_numbers = #tpu.dot_dimension_numbers<[1], [0], [0], [1], [0, 0, 1, 1], [], []>} : vector<2x32xf32>, vector<32x32xf32>, vector<2x32xf32> -> vector<2x32xf32>
    %45 = arith.addf %44, %10 : vector<2x32xf32>
    %46 = arith.mulf %45, %31 : vector<2x32xf32>
    %47 = arith.addf %39, %46 : vector<2x32xf32>
    %cst_32 = arith.constant dense<0.000000e+00> : vector<2x32xf32>
    %48 = tpu.matmul %47, %2, %cst_32 {dimension_numbers = #tpu.dot_dimension_numbers<[1], [0], [0], [1], [0, 0, 1, 1], [], []>} : vector<2x32xf32>, vector<32x32xf32>, vector<2x32xf32> -> vector<2x32xf32>
    %49 = arith.addf %48, %7 : vector<2x32xf32>
    %cst_33 = arith.constant 0.000000e+00 : f32
    %50 = vector.broadcast %cst_33 : f32 to vector<2x32xf32>
    %51 = arith.maximumf %49, %50 : vector<2x32xf32>
    %cst_34 = arith.constant dense<0.000000e+00> : vector<2x32xf32>
    %52 = tpu.matmul %51, %4, %cst_34 {dimension_numbers = #tpu.dot_dimension_numbers<[1], [0], [0], [1], [0, 0, 1, 1], [], []>} : vector<2x32xf32>, vector<32x32xf32>, vector<2x32xf32> -> vector<2x32xf32>
    %53 = arith.addf %52, %10 : vector<2x32xf32>
    %54 = arith.mulf %53, %31 : vector<2x32xf32>
    %55 = arith.addf %47, %54 : vector<2x32xf32>
    %56 = vector.extract_strided_slice %18 {offsets = [2, 0], sizes = [2, 32], strides = [1, 1]} : vector<16x32xf32> to vector<2x32xf32>
    %cst_35 = arith.constant dense<0.000000e+00> : vector<2x32xf32>
    %57 = tpu.matmul %55, %0, %cst_35 {dimension_numbers = #tpu.dot_dimension_numbers<[1], [0], [0], [1], [0, 0, 1, 1], [], []>} : vector<2x32xf32>, vector<32x32xf32>, vector<2x32xf32> -> vector<2x32xf32>
    %58 = arith.addf %56, %57 : vector<2x32xf32>
    %59 = math.tanh %58 : vector<2x32xf32>
    %60 = arith.addf %28, %59 : vector<2x32xf32>
    %61 = vector.extract_strided_slice %21 {offsets = [0, 2], sizes = [2, 1], strides = [1, 1]} : vector<2x8xf32> to vector<2x1xf32>
    %62 = vector.shape_cast %61 : vector<2x1xf32> to vector<2x1xf32>
    %63 = vector.broadcast %62 : vector<2x1xf32> to vector<2x32xf32>
    %cst_36 = arith.constant dense<0.000000e+00> : vector<2x32xf32>
    %64 = tpu.matmul %59, %2, %cst_36 {dimension_numbers = #tpu.dot_dimension_numbers<[1], [0], [0], [1], [0, 0, 1, 1], [], []>} : vector<2x32xf32>, vector<32x32xf32>, vector<2x32xf32> -> vector<2x32xf32>
    %65 = arith.addf %64, %7 : vector<2x32xf32>
    %cst_37 = arith.constant 0.000000e+00 : f32
    %66 = vector.broadcast %cst_37 : f32 to vector<2x32xf32>
    %67 = arith.maximumf %65, %66 : vector<2x32xf32>
    %cst_38 = arith.constant dense<0.000000e+00> : vector<2x32xf32>
    %68 = tpu.matmul %67, %4, %cst_38 {dimension_numbers = #tpu.dot_dimension_numbers<[1], [0], [0], [1], [0, 0, 1, 1], [], []>} : vector<2x32xf32>, vector<32x32xf32>, vector<2x32xf32> -> vector<2x32xf32>
    %69 = arith.addf %68, %10 : vector<2x32xf32>
    %70 = arith.mulf %69, %63 : vector<2x32xf32>
    %71 = arith.addf %59, %70 : vector<2x32xf32>
    %cst_39 = arith.constant dense<0.000000e+00> : vector<2x32xf32>
    %72 = tpu.matmul %71, %2, %cst_39 {dimension_numbers = #tpu.dot_dimension_numbers<[1], [0], [0], [1], [0, 0, 1, 1], [], []>} : vector<2x32xf32>, vector<32x32xf32>, vector<2x32xf32> -> vector<2x32xf32>
    %73 = arith.addf %72, %7 : vector<2x32xf32>
    %cst_40 = arith.constant 0.000000e+00 : f32
    %74 = vector.broadcast %cst_40 : f32 to vector<2x32xf32>
    %75 = arith.maximumf %73, %74 : vector<2x32xf32>
    %cst_41 = arith.constant dense<0.000000e+00> : vector<2x32xf32>
    %76 = tpu.matmul %75, %4, %cst_41 {dimension_numbers = #tpu.dot_dimension_numbers<[1], [0], [0], [1], [0, 0, 1, 1], [], []>} : vector<2x32xf32>, vector<32x32xf32>, vector<2x32xf32> -> vector<2x32xf32>
    %77 = arith.addf %76, %10 : vector<2x32xf32>
    %78 = arith.mulf %77, %63 : vector<2x32xf32>
    %79 = arith.addf %71, %78 : vector<2x32xf32>
    %cst_42 = arith.constant dense<0.000000e+00> : vector<2x32xf32>
    %80 = tpu.matmul %79, %2, %cst_42 {dimension_numbers = #tpu.dot_dimension_numbers<[1], [0], [0], [1], [0, 0, 1, 1], [], []>} : vector<2x32xf32>, vector<32x32xf32>, vector<2x32xf32> -> vector<2x32xf32>
    %81 = arith.addf %80, %7 : vector<2x32xf32>
    %cst_43 = arith.constant 0.000000e+00 : f32
    %82 = vector.broadcast %cst_43 : f32 to vector<2x32xf32>
    %83 = arith.maximumf %81, %82 : vector<2x32xf32>
    %cst_44 = arith.constant dense<0.000000e+00> : vector<2x32xf32>
    %84 = tpu.matmul %83, %4, %cst_44 {dimension_numbers = #tpu.dot_dimension_numbers<[1], [0], [0], [1], [0, 0, 1, 1], [], []>} : vector<2x32xf32>, vector<32x32xf32>, vector<2x32xf32> -> vector<2x32xf32>
    %85 = arith.addf %84, %10 : vector<2x32xf32>
    %86 = arith.mulf %85, %63 : vector<2x32xf32>
    %87 = arith.addf %79, %86 : vector<2x32xf32>
    %88 = vector.extract_strided_slice %18 {offsets = [4, 0], sizes = [2, 32], strides = [1, 1]} : vector<16x32xf32> to vector<2x32xf32>
    %cst_45 = arith.constant dense<0.000000e+00> : vector<2x32xf32>
    %89 = tpu.matmul %87, %0, %cst_45 {dimension_numbers = #tpu.dot_dimension_numbers<[1], [0], [0], [1], [0, 0, 1, 1], [], []>} : vector<2x32xf32>, vector<32x32xf32>, vector<2x32xf32> -> vector<2x32xf32>
    %90 = arith.addf %88, %89 : vector<2x32xf32>
    %91 = math.tanh %90 : vector<2x32xf32>
    %92 = arith.addf %60, %91 : vector<2x32xf32>
    %93 = vector.extract_strided_slice %21 {offsets = [0, 3], sizes = [2, 1], strides = [1, 1]} : vector<2x8xf32> to vector<2x1xf32>
    %94 = vector.shape_cast %93 : vector<2x1xf32> to vector<2x1xf32>
    %95 = vector.broadcast %94 : vector<2x1xf32> to vector<2x32xf32>
    %cst_46 = arith.constant dense<0.000000e+00> : vector<2x32xf32>
    %96 = tpu.matmul %91, %2, %cst_46 {dimension_numbers = #tpu.dot_dimension_numbers<[1], [0], [0], [1], [0, 0, 1, 1], [], []>} : vector<2x32xf32>, vector<32x32xf32>, vector<2x32xf32> -> vector<2x32xf32>
    %97 = arith.addf %96, %7 : vector<2x32xf32>
    %cst_47 = arith.constant 0.000000e+00 : f32
    %98 = vector.broadcast %cst_47 : f32 to vector<2x32xf32>
    %99 = arith.maximumf %97, %98 : vector<2x32xf32>
    %cst_48 = arith.constant dense<0.000000e+00> : vector<2x32xf32>
    %100 = tpu.matmul %99, %4, %cst_48 {dimension_numbers = #tpu.dot_dimension_numbers<[1], [0], [0], [1], [0, 0, 1, 1], [], []>} : vector<2x32xf32>, vector<32x32xf32>, vector<2x32xf32> -> vector<2x32xf32>
    %101 = arith.addf %100, %10 : vector<2x32xf32>
    %102 = arith.mulf %101, %95 : vector<2x32xf32>
    %103 = arith.addf %91, %102 : vector<2x32xf32>
    %cst_49 = arith.constant dense<0.000000e+00> : vector<2x32xf32>
    %104 = tpu.matmul %103, %2, %cst_49 {dimension_numbers = #tpu.dot_dimension_numbers<[1], [0], [0], [1], [0, 0, 1, 1], [], []>} : vector<2x32xf32>, vector<32x32xf32>, vector<2x32xf32> -> vector<2x32xf32>
    %105 = arith.addf %104, %7 : vector<2x32xf32>
    %cst_50 = arith.constant 0.000000e+00 : f32
    %106 = vector.broadcast %cst_50 : f32 to vector<2x32xf32>
    %107 = arith.maximumf %105, %106 : vector<2x32xf32>
    %cst_51 = arith.constant dense<0.000000e+00> : vector<2x32xf32>
    %108 = tpu.matmul %107, %4, %cst_51 {dimension_numbers = #tpu.dot_dimension_numbers<[1], [0], [0], [1], [0, 0, 1, 1], [], []>} : vector<2x32xf32>, vector<32x32xf32>, vector<2x32xf32> -> vector<2x32xf32>
    %109 = arith.addf %108, %10 : vector<2x32xf32>
    %110 = arith.mulf %109, %95 : vector<2x32xf32>
    %111 = arith.addf %103, %110 : vector<2x32xf32>
    %cst_52 = arith.constant dense<0.000000e+00> : vector<2x32xf32>
    %112 = tpu.matmul %111, %2, %cst_52 {dimension_numbers = #tpu.dot_dimension_numbers<[1], [0], [0], [1], [0, 0, 1, 1], [], []>} : vector<2x32xf32>, vector<32x32xf32>, vector<2x32xf32> -> vector<2x32xf32>
    %113 = arith.addf %112, %7 : vector<2x32xf32>
    %cst_53 = arith.constant 0.000000e+00 : f32
    %114 = vector.broadcast %cst_53 : f32 to vector<2x32xf32>
    %115 = arith.maximumf %113, %114 : vector<2x32xf32>
    %cst_54 = arith.constant dense<0.000000e+00> : vector<2x32xf32>
    %116 = tpu.matmul %115, %4, %cst_54 {dimension_numbers = #tpu.dot_dimension_numbers<[1], [0], [0], [1], [0, 0, 1, 1], [], []>} : vector<2x32xf32>, vector<32x32xf32>, vector<2x32xf32> -> vector<2x32xf32>
    %117 = arith.addf %116, %10 : vector<2x32xf32>
    %118 = arith.mulf %117, %95 : vector<2x32xf32>
    %119 = arith.addf %111, %118 : vector<2x32xf32>
    %120 = vector.extract_strided_slice %18 {offsets = [6, 0], sizes = [2, 32], strides = [1, 1]} : vector<16x32xf32> to vector<2x32xf32>
    %cst_55 = arith.constant dense<0.000000e+00> : vector<2x32xf32>
    %121 = tpu.matmul %119, %0, %cst_55 {dimension_numbers = #tpu.dot_dimension_numbers<[1], [0], [0], [1], [0, 0, 1, 1], [], []>} : vector<2x32xf32>, vector<32x32xf32>, vector<2x32xf32> -> vector<2x32xf32>
    %122 = arith.addf %120, %121 : vector<2x32xf32>
    %123 = math.tanh %122 : vector<2x32xf32>
    %124 = arith.addf %92, %123 : vector<2x32xf32>
    %125 = vector.extract_strided_slice %21 {offsets = [0, 4], sizes = [2, 1], strides = [1, 1]} : vector<2x8xf32> to vector<2x1xf32>
    %126 = vector.shape_cast %125 : vector<2x1xf32> to vector<2x1xf32>
    %127 = vector.broadcast %126 : vector<2x1xf32> to vector<2x32xf32>
    %cst_56 = arith.constant dense<0.000000e+00> : vector<2x32xf32>
    %128 = tpu.matmul %123, %2, %cst_56 {dimension_numbers = #tpu.dot_dimension_numbers<[1], [0], [0], [1], [0, 0, 1, 1], [], []>} : vector<2x32xf32>, vector<32x32xf32>, vector<2x32xf32> -> vector<2x32xf32>
    %129 = arith.addf %128, %7 : vector<2x32xf32>
    %cst_57 = arith.constant 0.000000e+00 : f32
    %130 = vector.broadcast %cst_57 : f32 to vector<2x32xf32>
    %131 = arith.maximumf %129, %130 : vector<2x32xf32>
    %cst_58 = arith.constant dense<0.000000e+00> : vector<2x32xf32>
    %132 = tpu.matmul %131, %4, %cst_58 {dimension_numbers = #tpu.dot_dimension_numbers<[1], [0], [0], [1], [0, 0, 1, 1], [], []>} : vector<2x32xf32>, vector<32x32xf32>, vector<2x32xf32> -> vector<2x32xf32>
    %133 = arith.addf %132, %10 : vector<2x32xf32>
    %134 = arith.mulf %133, %127 : vector<2x32xf32>
    %135 = arith.addf %123, %134 : vector<2x32xf32>
    %cst_59 = arith.constant dense<0.000000e+00> : vector<2x32xf32>
    %136 = tpu.matmul %135, %2, %cst_59 {dimension_numbers = #tpu.dot_dimension_numbers<[1], [0], [0], [1], [0, 0, 1, 1], [], []>} : vector<2x32xf32>, vector<32x32xf32>, vector<2x32xf32> -> vector<2x32xf32>
    %137 = arith.addf %136, %7 : vector<2x32xf32>
    %cst_60 = arith.constant 0.000000e+00 : f32
    %138 = vector.broadcast %cst_60 : f32 to vector<2x32xf32>
    %139 = arith.maximumf %137, %138 : vector<2x32xf32>
    %cst_61 = arith.constant dense<0.000000e+00> : vector<2x32xf32>
    %140 = tpu.matmul %139, %4, %cst_61 {dimension_numbers = #tpu.dot_dimension_numbers<[1], [0], [0], [1], [0, 0, 1, 1], [], []>} : vector<2x32xf32>, vector<32x32xf32>, vector<2x32xf32> -> vector<2x32xf32>
    %141 = arith.addf %140, %10 : vector<2x32xf32>
    %142 = arith.mulf %141, %127 : vector<2x32xf32>
    %143 = arith.addf %135, %142 : vector<2x32xf32>
    %cst_62 = arith.constant dense<0.000000e+00> : vector<2x32xf32>
    %144 = tpu.matmul %143, %2, %cst_62 {dimension_numbers = #tpu.dot_dimension_numbers<[1], [0], [0], [1], [0, 0, 1, 1], [], []>} : vector<2x32xf32>, vector<32x32xf32>, vector<2x32xf32> -> vector<2x32xf32>
    %145 = arith.addf %144, %7 : vector<2x32xf32>
    %cst_63 = arith.constant 0.000000e+00 : f32
    %146 = vector.broadcast %cst_63 : f32 to vector<2x32xf32>
    %147 = arith.maximumf %145, %146 : vector<2x32xf32>
    %cst_64 = arith.constant dense<0.000000e+00> : vector<2x32xf32>
    %148 = tpu.matmul %147, %4, %cst_64 {dimension_numbers = #tpu.dot_dimension_numbers<[1], [0], [0], [1], [0, 0, 1, 1], [], []>} : vector<2x32xf32>, vector<32x32xf32>, vector<2x32xf32> -> vector<2x32xf32>
    %149 = arith.addf %148, %10 : vector<2x32xf32>
    %150 = arith.mulf %149, %127 : vector<2x32xf32>
    %151 = arith.addf %143, %150 : vector<2x32xf32>
    %152 = vector.extract_strided_slice %18 {offsets = [8, 0], sizes = [2, 32], strides = [1, 1]} : vector<16x32xf32> to vector<2x32xf32>
    %cst_65 = arith.constant dense<0.000000e+00> : vector<2x32xf32>
    %153 = tpu.matmul %151, %0, %cst_65 {dimension_numbers = #tpu.dot_dimension_numbers<[1], [0], [0], [1], [0, 0, 1, 1], [], []>} : vector<2x32xf32>, vector<32x32xf32>, vector<2x32xf32> -> vector<2x32xf32>
    %154 = arith.addf %152, %153 : vector<2x32xf32>
    %155 = math.tanh %154 : vector<2x32xf32>
    %156 = arith.addf %124, %155 : vector<2x32xf32>
    %157 = vector.extract_strided_slice %21 {offsets = [0, 5], sizes = [2, 1], strides = [1, 1]} : vector<2x8xf32> to vector<2x1xf32>
    %158 = vector.shape_cast %157 : vector<2x1xf32> to vector<2x1xf32>
    %159 = vector.broadcast %158 : vector<2x1xf32> to vector<2x32xf32>
    %cst_66 = arith.constant dense<0.000000e+00> : vector<2x32xf32>
    %160 = tpu.matmul %155, %2, %cst_66 {dimension_numbers = #tpu.dot_dimension_numbers<[1], [0], [0], [1], [0, 0, 1, 1], [], []>} : vector<2x32xf32>, vector<32x32xf32>, vector<2x32xf32> -> vector<2x32xf32>
    %161 = arith.addf %160, %7 : vector<2x32xf32>
    %cst_67 = arith.constant 0.000000e+00 : f32
    %162 = vector.broadcast %cst_67 : f32 to vector<2x32xf32>
    %163 = arith.maximumf %161, %162 : vector<2x32xf32>
    %cst_68 = arith.constant dense<0.000000e+00> : vector<2x32xf32>
    %164 = tpu.matmul %163, %4, %cst_68 {dimension_numbers = #tpu.dot_dimension_numbers<[1], [0], [0], [1], [0, 0, 1, 1], [], []>} : vector<2x32xf32>, vector<32x32xf32>, vector<2x32xf32> -> vector<2x32xf32>
    %165 = arith.addf %164, %10 : vector<2x32xf32>
    %166 = arith.mulf %165, %159 : vector<2x32xf32>
    %167 = arith.addf %155, %166 : vector<2x32xf32>
    %cst_69 = arith.constant dense<0.000000e+00> : vector<2x32xf32>
    %168 = tpu.matmul %167, %2, %cst_69 {dimension_numbers = #tpu.dot_dimension_numbers<[1], [0], [0], [1], [0, 0, 1, 1], [], []>} : vector<2x32xf32>, vector<32x32xf32>, vector<2x32xf32> -> vector<2x32xf32>
    %169 = arith.addf %168, %7 : vector<2x32xf32>
    %cst_70 = arith.constant 0.000000e+00 : f32
    %170 = vector.broadcast %cst_70 : f32 to vector<2x32xf32>
    %171 = arith.maximumf %169, %170 : vector<2x32xf32>
    %cst_71 = arith.constant dense<0.000000e+00> : vector<2x32xf32>
    %172 = tpu.matmul %171, %4, %cst_71 {dimension_numbers = #tpu.dot_dimension_numbers<[1], [0], [0], [1], [0, 0, 1, 1], [], []>} : vector<2x32xf32>, vector<32x32xf32>, vector<2x32xf32> -> vector<2x32xf32>
    %173 = arith.addf %172, %10 : vector<2x32xf32>
    %174 = arith.mulf %173, %159 : vector<2x32xf32>
    %175 = arith.addf %167, %174 : vector<2x32xf32>
    %cst_72 = arith.constant dense<0.000000e+00> : vector<2x32xf32>
    %176 = tpu.matmul %175, %2, %cst_72 {dimension_numbers = #tpu.dot_dimension_numbers<[1], [0], [0], [1], [0, 0, 1, 1], [], []>} : vector<2x32xf32>, vector<32x32xf32>, vector<2x32xf32> -> vector<2x32xf32>
    %177 = arith.addf %176, %7 : vector<2x32xf32>
    %cst_73 = arith.constant 0.000000e+00 : f32
    %178 = vector.broadcast %cst_73 : f32 to vector<2x32xf32>
    %179 = arith.maximumf %177, %178 : vector<2x32xf32>
    %cst_74 = arith.constant dense<0.000000e+00> : vector<2x32xf32>
    %180 = tpu.matmul %179, %4, %cst_74 {dimension_numbers = #tpu.dot_dimension_numbers<[1], [0], [0], [1], [0, 0, 1, 1], [], []>} : vector<2x32xf32>, vector<32x32xf32>, vector<2x32xf32> -> vector<2x32xf32>
    %181 = arith.addf %180, %10 : vector<2x32xf32>
    %182 = arith.mulf %181, %159 : vector<2x32xf32>
    %183 = arith.addf %175, %182 : vector<2x32xf32>
    %184 = vector.extract_strided_slice %18 {offsets = [10, 0], sizes = [2, 32], strides = [1, 1]} : vector<16x32xf32> to vector<2x32xf32>
    %cst_75 = arith.constant dense<0.000000e+00> : vector<2x32xf32>
    %185 = tpu.matmul %183, %0, %cst_75 {dimension_numbers = #tpu.dot_dimension_numbers<[1], [0], [0], [1], [0, 0, 1, 1], [], []>} : vector<2x32xf32>, vector<32x32xf32>, vector<2x32xf32> -> vector<2x32xf32>
    %186 = arith.addf %184, %185 : vector<2x32xf32>
    %187 = math.tanh %186 : vector<2x32xf32>
    %188 = arith.addf %156, %187 : vector<2x32xf32>
    %189 = vector.extract_strided_slice %21 {offsets = [0, 6], sizes = [2, 1], strides = [1, 1]} : vector<2x8xf32> to vector<2x1xf32>
    %190 = vector.shape_cast %189 : vector<2x1xf32> to vector<2x1xf32>
    %191 = vector.broadcast %190 : vector<2x1xf32> to vector<2x32xf32>
    %cst_76 = arith.constant dense<0.000000e+00> : vector<2x32xf32>
    %192 = tpu.matmul %187, %2, %cst_76 {dimension_numbers = #tpu.dot_dimension_numbers<[1], [0], [0], [1], [0, 0, 1, 1], [], []>} : vector<2x32xf32>, vector<32x32xf32>, vector<2x32xf32> -> vector<2x32xf32>
    %193 = arith.addf %192, %7 : vector<2x32xf32>
    %cst_77 = arith.constant 0.000000e+00 : f32
    %194 = vector.broadcast %cst_77 : f32 to vector<2x32xf32>
    %195 = arith.maximumf %193, %194 : vector<2x32xf32>
    %cst_78 = arith.constant dense<0.000000e+00> : vector<2x32xf32>
    %196 = tpu.matmul %195, %4, %cst_78 {dimension_numbers = #tpu.dot_dimension_numbers<[1], [0], [0], [1], [0, 0, 1, 1], [], []>} : vector<2x32xf32>, vector<32x32xf32>, vector<2x32xf32> -> vector<2x32xf32>
    %197 = arith.addf %196, %10 : vector<2x32xf32>
    %198 = arith.mulf %197, %191 : vector<2x32xf32>
    %199 = arith.addf %187, %198 : vector<2x32xf32>
    %cst_79 = arith.constant dense<0.000000e+00> : vector<2x32xf32>
    %200 = tpu.matmul %199, %2, %cst_79 {dimension_numbers = #tpu.dot_dimension_numbers<[1], [0], [0], [1], [0, 0, 1, 1], [], []>} : vector<2x32xf32>, vector<32x32xf32>, vector<2x32xf32> -> vector<2x32xf32>
    %201 = arith.addf %200, %7 : vector<2x32xf32>
    %cst_80 = arith.constant 0.000000e+00 : f32
    %202 = vector.broadcast %cst_80 : f32 to vector<2x32xf32>
    %203 = arith.maximumf %201, %202 : vector<2x32xf32>
    %cst_81 = arith.constant dense<0.000000e+00> : vector<2x32xf32>
    %204 = tpu.matmul %203, %4, %cst_81 {dimension_numbers = #tpu.dot_dimension_numbers<[1], [0], [0], [1], [0, 0, 1, 1], [], []>} : vector<2x32xf32>, vector<32x32xf32>, vector<2x32xf32> -> vector<2x32xf32>
    %205 = arith.addf %204, %10 : vector<2x32xf32>
    %206 = arith.mulf %205, %191 : vector<2x32xf32>
    %207 = arith.addf %199, %206 : vector<2x32xf32>
    %cst_82 = arith.constant dense<0.000000e+00> : vector<2x32xf32>
    %208 = tpu.matmul %207, %2, %cst_82 {dimension_numbers = #tpu.dot_dimension_numbers<[1], [0], [0], [1], [0, 0, 1, 1], [], []>} : vector<2x32xf32>, vector<32x32xf32>, vector<2x32xf32> -> vector<2x32xf32>
    %209 = arith.addf %208, %7 : vector<2x32xf32>
    %cst_83 = arith.constant 0.000000e+00 : f32
    %210 = vector.broadcast %cst_83 : f32 to vector<2x32xf32>
    %211 = arith.maximumf %209, %210 : vector<2x32xf32>
    %cst_84 = arith.constant dense<0.000000e+00> : vector<2x32xf32>
    %212 = tpu.matmul %211, %4, %cst_84 {dimension_numbers = #tpu.dot_dimension_numbers<[1], [0], [0], [1], [0, 0, 1, 1], [], []>} : vector<2x32xf32>, vector<32x32xf32>, vector<2x32xf32> -> vector<2x32xf32>
    %213 = arith.addf %212, %10 : vector<2x32xf32>
    %214 = arith.mulf %213, %191 : vector<2x32xf32>
    %215 = arith.addf %207, %214 : vector<2x32xf32>
    %216 = vector.extract_strided_slice %18 {offsets = [12, 0], sizes = [2, 32], strides = [1, 1]} : vector<16x32xf32> to vector<2x32xf32>
    %cst_85 = arith.constant dense<0.000000e+00> : vector<2x32xf32>
    %217 = tpu.matmul %215, %0, %cst_85 {dimension_numbers = #tpu.dot_dimension_numbers<[1], [0], [0], [1], [0, 0, 1, 1], [], []>} : vector<2x32xf32>, vector<32x32xf32>, vector<2x32xf32> -> vector<2x32xf32>
    %218 = arith.addf %216, %217 : vector<2x32xf32>
    %219 = math.tanh %218 : vector<2x32xf32>
    %220 = arith.addf %188, %219 : vector<2x32xf32>
    %221 = vector.extract_strided_slice %21 {offsets = [0, 7], sizes = [2, 1], strides = [1, 1]} : vector<2x8xf32> to vector<2x1xf32>
    %222 = vector.shape_cast %221 : vector<2x1xf32> to vector<2x1xf32>
    %223 = vector.broadcast %222 : vector<2x1xf32> to vector<2x32xf32>
    %cst_86 = arith.constant dense<0.000000e+00> : vector<2x32xf32>
    %224 = tpu.matmul %219, %2, %cst_86 {dimension_numbers = #tpu.dot_dimension_numbers<[1], [0], [0], [1], [0, 0, 1, 1], [], []>} : vector<2x32xf32>, vector<32x32xf32>, vector<2x32xf32> -> vector<2x32xf32>
    %225 = arith.addf %224, %7 : vector<2x32xf32>
    %cst_87 = arith.constant 0.000000e+00 : f32
    %226 = vector.broadcast %cst_87 : f32 to vector<2x32xf32>
    %227 = arith.maximumf %225, %226 : vector<2x32xf32>
    %cst_88 = arith.constant dense<0.000000e+00> : vector<2x32xf32>
    %228 = tpu.matmul %227, %4, %cst_88 {dimension_numbers = #tpu.dot_dimension_numbers<[1], [0], [0], [1], [0, 0, 1, 1], [], []>} : vector<2x32xf32>, vector<32x32xf32>, vector<2x32xf32> -> vector<2x32xf32>
    %229 = arith.addf %228, %10 : vector<2x32xf32>
    %230 = arith.mulf %229, %223 : vector<2x32xf32>
    %231 = arith.addf %219, %230 : vector<2x32xf32>
    %cst_89 = arith.constant dense<0.000000e+00> : vector<2x32xf32>
    %232 = tpu.matmul %231, %2, %cst_89 {dimension_numbers = #tpu.dot_dimension_numbers<[1], [0], [0], [1], [0, 0, 1, 1], [], []>} : vector<2x32xf32>, vector<32x32xf32>, vector<2x32xf32> -> vector<2x32xf32>
    %233 = arith.addf %232, %7 : vector<2x32xf32>
    %cst_90 = arith.constant 0.000000e+00 : f32
    %234 = vector.broadcast %cst_90 : f32 to vector<2x32xf32>
    %235 = arith.maximumf %233, %234 : vector<2x32xf32>
    %cst_91 = arith.constant dense<0.000000e+00> : vector<2x32xf32>
    %236 = tpu.matmul %235, %4, %cst_91 {dimension_numbers = #tpu.dot_dimension_numbers<[1], [0], [0], [1], [0, 0, 1, 1], [], []>} : vector<2x32xf32>, vector<32x32xf32>, vector<2x32xf32> -> vector<2x32xf32>
    %237 = arith.addf %236, %10 : vector<2x32xf32>
    %238 = arith.mulf %237, %223 : vector<2x32xf32>
    %239 = arith.addf %231, %238 : vector<2x32xf32>
    %cst_92 = arith.constant dense<0.000000e+00> : vector<2x32xf32>
    %240 = tpu.matmul %239, %2, %cst_92 {dimension_numbers = #tpu.dot_dimension_numbers<[1], [0], [0], [1], [0, 0, 1, 1], [], []>} : vector<2x32xf32>, vector<32x32xf32>, vector<2x32xf32> -> vector<2x32xf32>
    %241 = arith.addf %240, %7 : vector<2x32xf32>
    %cst_93 = arith.constant 0.000000e+00 : f32
    %242 = vector.broadcast %cst_93 : f32 to vector<2x32xf32>
    %243 = arith.maximumf %241, %242 : vector<2x32xf32>
    %cst_94 = arith.constant dense<0.000000e+00> : vector<2x32xf32>
    %244 = tpu.matmul %243, %4, %cst_94 {dimension_numbers = #tpu.dot_dimension_numbers<[1], [0], [0], [1], [0, 0, 1, 1], [], []>} : vector<2x32xf32>, vector<32x32xf32>, vector<2x32xf32> -> vector<2x32xf32>
    %245 = arith.addf %244, %10 : vector<2x32xf32>
    %246 = arith.mulf %245, %223 : vector<2x32xf32>
    %247 = arith.addf %239, %246 : vector<2x32xf32>
    %248 = vector.extract_strided_slice %18 {offsets = [14, 0], sizes = [2, 32], strides = [1, 1]} : vector<16x32xf32> to vector<2x32xf32>
    %cst_95 = arith.constant dense<0.000000e+00> : vector<2x32xf32>
    %249 = tpu.matmul %247, %0, %cst_95 {dimension_numbers = #tpu.dot_dimension_numbers<[1], [0], [0], [1], [0, 0, 1, 1], [], []>} : vector<2x32xf32>, vector<32x32xf32>, vector<2x32xf32> -> vector<2x32xf32>
    %250 = arith.addf %248, %249 : vector<2x32xf32>
    %251 = math.tanh %250 : vector<2x32xf32>
    %252 = arith.addf %220, %251 : vector<2x32xf32>
    %cst_96 = arith.constant 1.250000e-01 : f32
    %253 = vector.broadcast %cst_96 : f32 to vector<2x32xf32>
    %254 = arith.mulf %252, %253 : vector<2x32xf32>
    %cst_97 = arith.constant dense<0.000000e+00> : vector<2x5xf32>
    %255 = tpu.matmul %254, %11, %cst_97 {dimension_numbers = #tpu.dot_dimension_numbers<[1], [0], [0], [1], [0, 0, 1, 1], [], []>} : vector<2x32xf32>, vector<32x5xf32>, vector<2x5xf32> -> vector<2x5xf32>
    %256 = vector.broadcast %12 : vector<1x5xf32> to vector<2x5xf32>
    %257 = arith.addf %255, %256 : vector<2x5xf32>
    %c0_98 = arith.constant 0 : index
    %c0_99 = arith.constant 0 : index
    %258 = vector.load %arg9[%c0_98, %c0_99] : memref<2x5xf32, #tpu.memory_space<vmem>>, vector<2x5xf32>
    tpu.vector_store %arg9[%c0_98, %c0_99], %257 {strides = array<i32>} : memref<2x5xf32, #tpu.memory_space<vmem>>, vector<2x5xf32>,
    return
  }
}

</mosaic_0001>

<llo_original>
// kernel: tpu_custom_call.1
$region0: #{tpu_custom_call.1}
  #allocation0 [shape = 'u32[]', space=smem, size = 0x4, offset = 0x4, fixed_abs, tag = 'smem constant byte address 0x4 - core index']
  #allocation1 [shape = 'u32[144,128]{1,0:T(1,128)}', space=vmem, size = 0x12000, scoped, tag = 'internal scratch']
  %s0 = inlined_call_operand.vmem [shape: f32[16,8], index: 0, kind: input, shape index: {}]
  %s1 = inlined_call_operand.vmem [shape: f32[2,8], index: 1, kind: input, shape index: {}]
  %s2 = inlined_call_operand.vmem [shape: f32[8,32], index: 2, kind: input, shape index: {}]
  %s3 = inlined_call_operand.vmem [shape: f32[1,32], index: 3, kind: input, shape index: {}]
  %s4 = inlined_call_operand.hbm [shape: f32[32,32], index: 4, kind: input, shape index: {}]
  %s5 = inlined_call_operand.vmem [shape: f32[2,32,32], index: 5, kind: input, shape index: {}]
  %s6 = inlined_call_operand.vmem [shape: f32[2,32], index: 6, kind: input, shape index: {}]
  %s7 = inlined_call_operand.vmem [shape: f32[32,5], index: 7, kind: input, shape index: {}]
  %s8 = inlined_call_operand.vmem [shape: f32[1,5], index: 8, kind: input, shape index: {}]
  %s9 = inlined_call_operand.hbm [shape: f32[2,5], index: 9, kind: output, shape index: {}]
  %s10 = sld [smem:[#allocation0]]
  $region50: #{tpu_custom_call.1} parent=0
    _
  %s12 = ssub.s32 1, %s10
  %s13 = scalar_select 0, %s12, %s10
  $region1: #{tpu_custom_call.1} parent=0
    #allocation2 [shape = 'u8[16384]{0}', space=vmem, size = 0x4000, scoped, tag = 'input window, operand 4, single buffered']
    #allocation3 [shape = 's32[1]{0}', space=sflag, size = 0x4, scoped, tag = 'scoped memory for tpu_custom_call.1']
    #allocation4 [shape = 's32[1]{0}', space=sflag, size = 0x4, scoped, tag = 'scoped memory for tpu_custom_call.1']
    #allocation5 [shape = 'u8[1024]{0}', space=vmem, size = 0x400, scoped, tag = 'output window, operand 0, single buffered']
    %14 = vsyncpa [#allocation3], 0
    %15 = vsyncpa [#allocation4], 0
    // Predicated region
    $region2: #{tpu_custom_call.1} parent=1 // pred_check
      _
    $region3: #{tpu_custom_call.1} parent=1 // pred_check_branch
      %17 = sbr.rel (0) target = $region5
    $region4: #{tpu_custom_call.1} parent=1 // pred_region
      _
    $region5: #{tpu_custom_call.1} parent=1 // pred_fallthru
      _
    // Predicated region
    $region6: #{tpu_custom_call.1} parent=1 // pred_check
      _
    $region7: #{tpu_custom_call.1} parent=1 // pred_check_branch
      %19 = sbr.rel (0) target = $region9
    $region8: #{tpu_custom_call.1} parent=1 // pred_region
      _
    $region9: #{tpu_custom_call.1} parent=1 // pred_fallthru
      _
    // Predicated region
    $region10: #{tpu_custom_call.1} parent=1 // pred_check
      _
    $region11: #{tpu_custom_call.1} parent=1 // pred_check_branch
      %21 = sbr.rel (0) target = $region13
    $region12: #{tpu_custom_call.1} parent=1 // pred_region
      _
    $region13: #{tpu_custom_call.1} parent=1 // pred_fallthru
      _
    // Predicated region
    $region14: #{tpu_custom_call.1} parent=1 // pred_check
      _
    $region15: #{tpu_custom_call.1} parent=1 // pred_check_branch
      %23 = sbr.rel (0) target = $region17
    $region16: #{tpu_custom_call.1} parent=1 // pred_region
      _
    $region17: #{tpu_custom_call.1} parent=1 // pred_fallthru
      _
    // Predicated region
    $region18: #{tpu_custom_call.1} parent=1 // pred_check
      _
    $region19: #{tpu_custom_call.1} parent=1 // pred_check_branch
      %25 = sbr.rel (0) target = $region21
    $region20: #{tpu_custom_call.1} parent=1 // pred_region
      %s27 = ssub.s32 512, 512
      %28 = vsyncadd [#allocation3], %s27
      %s29 = sshll.u32 [#allocation2], 4
      %s30 = int_to_ptr.vmem [resolvable:$true] %s29
      %35 = dma.hbm_to_vmem [thread:$0]  %s4, 512, %s30, [#allocation3], 128, 128, 8
    $region21: #{tpu_custom_call.1} parent=1 // pred_fallthru
      _
    // Predicated region
    $region22: #{tpu_custom_call.1} parent=1 // pred_check
      _
    $region23: #{tpu_custom_call.1} parent=1 // pred_check_branch
      %37 = sbr.rel (0) target = $region25
    $region24: #{tpu_custom_call.1} parent=1 // pred_region
      _
    $region25: #{tpu_custom_call.1} parent=1 // pred_fallthru
      _
    // Predicated region
    $region26: #{tpu_custom_call.1} parent=1 // pred_check
      _
    $region27: #{tpu_custom_call.1} parent=1 // pred_check_branch
      %39 = sbr.rel (0) target = $region29
    $region28: #{tpu_custom_call.1} parent=1 // pred_region
      _
    $region29: #{tpu_custom_call.1} parent=1 // pred_fallthru
      _
    // Predicated region
    $region30: #{tpu_custom_call.1} parent=1 // pred_check
      _
    $region31: #{tpu_custom_call.1} parent=1 // pred_check_branch
      %41 = sbr.rel (0) target = $region33
    $region32: #{tpu_custom_call.1} parent=1 // pred_region
      _
    $region33: #{tpu_custom_call.1} parent=1 // pred_fallthru
      _
    // Predicated region
    $region34: #{tpu_custom_call.1} parent=1 // pred_check
      _
    $region35: #{tpu_custom_call.1} parent=1 // pred_check_branch
      %43 = sbr.rel (0) target = $region37
    $region36: #{tpu_custom_call.1} parent=1 // pred_region
      _
    $region37: #{tpu_custom_call.1} parent=1 // pred_fallthru
      _
    // Predicated region
    $region38: #{tpu_custom_call.1} parent=1 // pred_check
      _
    $region39: #{tpu_custom_call.1} parent=1 // pred_check_branch
      %45 = sbr.rel (0) target = $region41
    $region40: #{tpu_custom_call.1} parent=1 // pred_region
      %46 = dma.done [#allocation3], 512
    $region41: #{tpu_custom_call.1} parent=1 // pred_fallthru
      _
    %v47 = vld [vmem:[#allocation2] sm:$0xff]
    %v48 = vld [vmem:[#allocation2 + $0x8] sm:$0xff]
    %v49 = vld [vmem:[#allocation2 + $0x10] sm:$0xff]
    %v50 = vld [vmem:[#allocation2 + $0x18] sm:$0xff]
    %v51 = vld [vmem:[%s5] sm:$0xff]
    %v52 = vld [vmem:[%s5 + $0x8] sm:$0xff]
    %v53 = vld [vmem:[%s5 + $0x10] sm:$0xff]
    %v54 = vld [vmem:[%s5 + $0x18] sm:$0xff]
    %s55 = scalar_lea.vmem %s5, 32
    %v56 = vld [vmem:[%s55] sm:$0xff]
    %v57 = vld [vmem:[%s55 + $0x8] sm:$0xff]
    %v58 = vld [vmem:[%s55 + $0x10] sm:$0xff]
    %v59 = vld [vmem:[%s55 + $0x18] sm:$0xff]
    %v60 = vld [vmem:[%s6] sm:$0x1]
    %v61 = vlaneseq
    %v62 = vshrl.u32 %v61, 7
    %v63 = vsub.s32 0, %v62
    %v64 = vrot.slane %v60, %v63
    %v65 = vld [vmem:[%s6 + $0x1] sm:$0x1]
    %v66 = vlaneseq
    %v67 = vshrl.u32 %v66, 7
    %v68 = vsub.s32 0, %v67
    %v69 = vrot.slane %v65, %v68
    %v70 = vld [vmem:[%s7] sm:$0xff]
    %v71 = vld [vmem:[%s7 + $0x8] sm:$0xff]
    %v72 = vld [vmem:[%s7 + $0x10] sm:$0xff]
    %v73 = vld [vmem:[%s7 + $0x18] sm:$0xff]
    %v74 = vld [vmem:[%s8] sm:$0x1]
    %v75 = vld [vmem:[%s0] sm:$0xff]
    %v76 = vld [vmem:[%s0 + $0x8] sm:$0xff]
    %v77 = vld [vmem:[%s2] sm:$0xff]
    %v78 = vld [vmem:[%s3] sm:$0x1]
    %v80 = vlaneseq
    %v81 = vshrl.u32 %v80, 7
    %v82 = vsub.s32 0, %v81
    %v83 = vrot.slane %v78, %v82
    %vm85 = vcmask 64512
    %v87 = vsel %vm85, %v75, 0
    %v90 = vsel %vm85, %v76, 0
    %92 = vmatprep.subr.mxu0 0.0
    %93 = vmatpush1.msra.mxu0 %v77
    %94 = vmatprep.subr.mxu0 0.0
    %95 = vmatpush1.msra.mxu0 0.0
    %96 = vmatprep.subr.mxu0 0.0
    %97 = vmatpush1.msra.mxu0 0.0
    %98 = vmatprep.subr.mxu0 0.0
    %99 = vmatpush1.msra.mxu0 0.0
    %100 = vmatprep.subr.mxu0 0.0
    %101 = vmatpush1.msra.mxu0 0.0
    %102 = vmatprep.subr.mxu0 0.0
    %103 = vmatpush1.msra.mxu0 0.0
    %104 = vmatprep.subr.mxu0 0.0
    %105 = vmatpush1.msra.mxu0 0.0
    %106 = vmatprep.subr.mxu0 0.0
    %107 = vmatpush1.msra.mxu0 0.0
    %108 = vmatprep.subr.mxu0 0.0
    %109 = vmatpush1.msra.mxu0 0.0
    %110 = vmatprep.subr.mxu0 0.0
    %111 = vmatpush1.msra.mxu0 0.0
    %112 = vmatprep.subr.mxu0 0.0
    %113 = vmatpush1.msra.mxu0 0.0
    %114 = vmatprep.subr.mxu0 0.0
    %115 = vmatpush1.msra.mxu0 0.0
    %116 = vmatprep.subr.mxu0 0.0
    %117 = vmatpush1.msra.mxu0 0.0
    %118 = vmatprep.subr.mxu0 0.0
    %119 = vmatpush1.msra.mxu0 0.0
    %120 = vmatprep.subr.mxu0 0.0
    %121 = vmatpush1.msra.mxu0 0.0
    %122 = vmatprep.subr.mxu0 0.0
    %123 = vmatpush1.msra.mxu0 0.0
    %124 = vmatprep.subr.mxu0 0.0
    %125 = vmatpush1.msra.mxu0 0.0
    %126 = vmatprep.subr.mxu0 0.0
    %127 = vmatpush1.msra.mxu0 0.0
    %128 = vmatprep.subr.mxu0 0.0
    %129 = vmatpush1.msra.mxu0 0.0
    %130 = vmatprep.subr.mxu0 0.0
    %131 = vmatpush1.msra.mxu0 0.0
    %132 = vmatprep.subr.mxu0 0.0
    %133 = vmatpush1.msra.mxu0 0.0
    %134 = vmatprep.subr.mxu0 0.0
    %135 = vmatpush1.msra.mxu0 0.0
    %136 = vmatprep.subr.mxu0 0.0
    %137 = vmatpush1.msra.mxu0 0.0
    %138 = vmatprep.subr.mxu0 0.0
    %139 = vmatpush1.msra.mxu0 0.0
    %140 = vmatprep.subr.mxu0 0.0
    %141 = vmatpush1.msra.mxu0 0.0
    %142 = vmatprep.subr.mxu0 0.0
    %143 = vmatpush1.msra.mxu0 0.0
    %144 = vmatprep.subr.mxu0 0.0
    %145 = vmatpush1.msra.mxu0 0.0
    %146 = vmatprep.subr.mxu0 0.0
    %147 = vmatpush1.msra.mxu0 0.0
    %148 = vmatprep.subr.mxu0 0.0
    %149 = vmatpush1.msra.mxu0 0.0
    %150 = vmatprep.subr.mxu0 0.0
    %151 = vmatpush1.msra.mxu0 0.0
    %152 = vmatprep.subr.mxu0 0.0
    %153 = vmatpush1.msra.mxu0 0.0
    %154 = vmatprep.subr.mxu0 0.0
    %155 = vmatpush1.msra.mxu0 0.0
    %156 = vmatprep.mubr.f32.mxu0 0.0
    %157 = vmatmul.mubr.f32.gmra.mrb[0].mxu0 %v87
    %v158 = vpop.f32.mrb[0].mxu0
    %v159 = vadd.f32 %v83, %v158
    %v160 = vpop.f32.mrb[0].mxu0
    %161 = vmatprep.mubr.f32.mxu0 0.0
    %162 = vmatmul.mubr.f32.gmra.mrb[0].mxu0 %v90
    %v163 = vpop.f32.mrb[0].mxu0
    %v164 = vadd.f32 %v83, %v163
    %v165 = vpop.f32.mrb[0].mxu0
    %166 = vdwg.mxu0
    %v167 = vld [vmem:[%s1] sm:$0x3]
    %v168 = vmul.f32 %v167, 0.33333334
    %vm169 = vcmask 261120
    %v171 = vsel %vm169, 0.0, 0
    %173 = vmatprep.subr.mxu0 0.0
    %174 = vmatpush1.msra.mxu0 %v47
    %175 = vmatprep.subr.mxu0 0.0
    %176 = vmatpush1.msra.mxu0 %v48
    %177 = vmatprep.subr.mxu0 0.0
    %178 = vmatpush1.msra.mxu0 %v49
    %179 = vmatprep.subr.mxu0 0.0
    %180 = vmatpush1.msra.mxu0 %v50
    %181 = vmatprep.subr.mxu0 0.0
    %182 = vmatpush1.msra.mxu0 0.0
    %183 = vmatprep.subr.mxu0 0.0
    %184 = vmatpush1.msra.mxu0 0.0
    %185 = vmatprep.subr.mxu0 0.0
    %186 = vmatpush1.msra.mxu0 0.0
    %187 = vmatprep.subr.mxu0 0.0
    %188 = vmatpush1.msra.mxu0 0.0
    %189 = vmatprep.subr.mxu0 0.0
    %190 = vmatpush1.msra.mxu0 0.0
    %191 = vmatprep.subr.mxu0 0.0
    %192 = vmatpush1.msra.mxu0 0.0
    %193 = vmatprep.subr.mxu0 0.0
    %194 = vmatpush1.msra.mxu0 0.0
    %195 = vmatprep.subr.mxu0 0.0
    %196 = vmatpush1.msra.mxu0 0.0
    %197 = vmatprep.subr.mxu0 0.0
    %198 = vmatpush1.msra.mxu0 0.0
    %199 = vmatprep.subr.mxu0 0.0
    %200 = vmatpush1.msra.mxu0 0.0
    %201 = vmatprep.subr.mxu0 0.0
    %202 = vmatpush1.msra.mxu0 0.0
    %203 = vmatprep.subr.mxu0 0.0
    %204 = vmatpush1.msra.mxu0 0.0
    %205 = vmatprep.subr.mxu0 0.0
    %206 = vmatpush1.msra.mxu0 0.0
    %207 = vmatprep.subr.mxu0 0.0
    %208 = vmatpush1.msra.mxu0 0.0
    %209 = vmatprep.subr.mxu0 0.0
    %210 = vmatpush1.msra.mxu0 0.0
    %211 = vmatprep.subr.mxu0 0.0
    %212 = vmatpush1.msra.mxu0 0.0
    %213 = vmatprep.subr.mxu0 0.0
    %214 = vmatpush1.msra.mxu0 0.0
    %215 = vmatprep.subr.mxu0 0.0
    %216 = vmatpush1.msra.mxu0 0.0
    %217 = vmatprep.subr.mxu0 0.0
    %218 = vmatpush1.msra.mxu0 0.0
    %219 = vmatprep.subr.mxu0 0.0
    %220 = vmatpush1.msra.mxu0 0.0
    %221 = vmatprep.subr.mxu0 0.0
    %222 = vmatpush1.msra.mxu0 0.0
    %223 = vmatprep.subr.mxu0 0.0
    %224 = vmatpush1.msra.mxu0 0.0
    %225 = vmatprep.subr.mxu0 0.0
    %226 = vmatpush1.msra.mxu0 0.0
    %227 = vmatprep.subr.mxu0 0.0
    %228 = vmatpush1.msra.mxu0 0.0
    %229 = vmatprep.subr.mxu0 0.0
    %230 = vmatpush1.msra.mxu0 0.0
    %231 = vmatprep.subr.mxu0 0.0
    %232 = vmatpush1.msra.mxu0 0.0
    %233 = vmatprep.subr.mxu0 0.0
    %234 = vmatpush1.msra.mxu0 0.0
    %235 = vmatprep.subr.mxu0 0.0
    %236 = vmatpush1.msra.mxu0 0.0
    %237 = vmatprep.mubr.f32.mxu0 0.0
    %238 = vmatmul.mubr.f32.gmra.mrb[0].mxu0 %v171
    %v239 = vpop.f32.mrb[0].mxu0
    %v240 = vadd.f32 0.0, %v239
    %v241 = vpop.f32.mrb[0].mxu0
    %242 = vdwg.mxu0
    %v243 = vadd.f32 %v159, %v240
    %v244 = vtanh.pop %v243
    %v245 = vadd.f32 %v244, 0.0
    %247 = vset.pattern.permute.xlu0 1
    %248 = vperm.xlu0 %247, %v168
    %v249 = vpop.permute.xlu0 %248
    %v252 = vsel %vm169, %v244, 0
    %254 = vmatprep.subr.mxu0 0.0
    %255 = vmatpush1.msra.mxu0 %v51
    %256 = vmatprep.subr.mxu0 0.0
    %257 = vmatpush1.msra.mxu0 %v52
    %258 = vmatprep.subr.mxu0 0.0
    %259 = vmatpush1.msra.mxu0 %v53
    %260 = vmatprep.subr.mxu0 0.0
    %261 = vmatpush1.msra.mxu0 %v54
    %262 = vmatprep.subr.mxu0 0.0
    %263 = vmatpush1.msra.mxu0 0.0
    %264 = vmatprep.subr.mxu0 0.0
    %265 = vmatpush1.msra.mxu0 0.0
    %266 = vmatprep.subr.mxu0 0.0
    %267 = vmatpush1.msra.mxu0 0.0
    %268 = vmatprep.subr.mxu0 0.0
    %269 = vmatpush1.msra.mxu0 0.0
    %270 = vmatprep.subr.mxu0 0.0
    %271 = vmatpush1.msra.mxu0 0.0
    %272 = vmatprep.subr.mxu0 0.0
    %273 = vmatpush1.msra.mxu0 0.0
    %274 = vmatprep.subr.mxu0 0.0
    %275 = vmatpush1.msra.mxu0 0.0
    %276 = vmatprep.subr.mxu0 0.0
    %277 = vmatpush1.msra.mxu0 0.0
    %278 = vmatprep.subr.mxu0 0.0
    %279 = vmatpush1.msra.mxu0 0.0
    %280 = vmatprep.subr.mxu0 0.0
    %281 = vmatpush1.msra.mxu0 0.0
    %282 = vmatprep.subr.mxu0 0.0
    %283 = vmatpush1.msra.mxu0 0.0
    %284 = vmatprep.subr.mxu0 0.0
    %285 = vmatpush1.msra.mxu0 0.0
    %286 = vmatprep.subr.mxu0 0.0
    %287 = vmatpush1.msra.mxu0 0.0
    %288 = vmatprep.subr.mxu0 0.0
    %289 = vmatpush1.msra.mxu0 0.0
    %290 = vmatprep.subr.mxu0 0.0
    %291 = vmatpush1.msra.mxu0 0.0
    %292 = vmatprep.subr.mxu0 0.0
    %293 = vmatpush1.msra.mxu0 0.0
    %294 = vmatprep.subr.mxu0 0.0
    %295 = vmatpush1.msra.mxu0 0.0
    %296 = vmatprep.subr.mxu0 0.0
    %297 = vmatpush1.msra.mxu0 0.0
    %298 = vmatprep.subr.mxu0 0.0
    %299 = vmatpush1.msra.mxu0 0.0
    %300 = vmatprep.subr.mxu0 0.0
    %301 = vmatpush1.msra.mxu0 0.0
    %302 = vmatprep.subr.mxu0 0.0
    %303 = vmatpush1.msra.mxu0 0.0
    %304 = vmatprep.subr.mxu0 0.0
    %305 = vmatpush1.msra.mxu0 0.0
    %306 = vmatprep.subr.mxu0 0.0
    %307 = vmatpush1.msra.mxu0 0.0
    %308 = vmatprep.subr.mxu0 0.0
    %309 = vmatpush1.msra.mxu0 0.0
    %310 = vmatprep.subr.mxu0 0.0
    %311 = vmatpush1.msra.mxu0 0.0
    %312 = vmatprep.subr.mxu0 0.0
    %313 = vmatpush1.msra.mxu0 0.0
    %314 = vmatprep.subr.mxu0 0.0
    %315 = vmatpush1.msra.mxu0 0.0
    %316 = vmatprep.subr.mxu0 0.0
    %317 = vmatpush1.msra.mxu0 0.0
    %318 = vmatprep.mubr.f32.mxu0 0.0
    %319 = vmatmul.mubr.f32.gmra.mrb[0].mxu0 %v252
    %v320 = vpop.f32.mrb[0].mxu0
    %v321 = vadd.f32 %v64, %v320
    %v322 = vpop.f32.mrb[0].mxu0
    %323 = vdwg.mxu0
    %v324 = vmax.f32 %v321, 0.0
    %v326 = vsel %vm169, %v324, 0
    %328 = vmatprep.subr.mxu0 0.0
    %329 = vmatpush1.msra.mxu0 %v56
    %330 = vmatprep.subr.mxu0 0.0
    %331 = vmatpush1.msra.mxu0 %v57
    %332 = vmatprep.subr.mxu0 0.0
    %333 = vmatpush1.msra.mxu0 %v58
    %334 = vmatprep.subr.mxu0 0.0
    %335 = vmatpush1.msra.mxu0 %v59
    %336 = vmatprep.subr.mxu0 0.0
    %337 = vmatpush1.msra.mxu0 0.0
    %338 = vmatprep.subr.mxu0 0.0
    %339 = vmatpush1.msra.mxu0 0.0
    %340 = vmatprep.subr.mxu0 0.0
    %341 = vmatpush1.msra.mxu0 0.0
    %342 = vmatprep.subr.mxu0 0.0
    %343 = vmatpush1.msra.mxu0 0.0
    %344 = vmatprep.subr.mxu0 0.0
    %345 = vmatpush1.msra.mxu0 0.0
    %346 = vmatprep.subr.mxu0 0.0
    %347 = vmatpush1.msra.mxu0 0.0
    %348 = vmatprep.subr.mxu0 0.0
    %349 = vmatpush1.msra.mxu0 0.0
    %350 = vmatprep.subr.mxu0 0.0
    %351 = vmatpush1.msra.mxu0 0.0
    %352 = vmatprep.subr.mxu0 0.0
    %353 = vmatpush1.msra.mxu0 0.0
    %354 = vmatprep.subr.mxu0 0.0
    %355 = vmatpush1.msra.mxu0 0.0
    %356 = vmatprep.subr.mxu0 0.0
    %357 = vmatpush1.msra.mxu0 0.0
    %358 = vmatprep.subr.mxu0 0.0
    %359 = vmatpush1.msra.mxu0 0.0
    %360 = vmatprep.subr.mxu0 0.0
    %361 = vmatpush1.msra.mxu0 0.0
    %362 = vmatprep.subr.mxu0 0.0
    %363 = vmatpush1.msra.mxu0 0.0
    %364 = vmatprep.subr.mxu0 0.0
    %365 = vmatpush1.msra.mxu0 0.0
    %366 = vmatprep.subr.mxu0 0.0
    %367 = vmatpush1.msra.mxu0 0.0
    %368 = vmatprep.subr.mxu0 0.0
    %369 = vmatpush1.msra.mxu0 0.0
    %370 = vmatprep.subr.mxu0 0.0
    %371 = vmatpush1.msra.mxu0 0.0
    %372 = vmatprep.subr.mxu0 0.0
    %373 = vmatpush1.msra.mxu0 0.0
    %374 = vmatprep.subr.mxu0 0.0
    %375 = vmatpush1.msra.mxu0 0.0
    %376 = vmatprep.subr.mxu0 0.0
    %377 = vmatpush1.msra.mxu0 0.0
    %378 = vmatprep.subr.mxu0 0.0
    %379 = vmatpush1.msra.mxu0 0.0
    %380 = vmatprep.subr.mxu0 0.0
    %381 = vmatpush1.msra.mxu0 0.0
    %382 = vmatprep.subr.mxu0 0.0
    %383 = vmatpush1.msra.mxu0 0.0
    %384 = vmatprep.subr.mxu0 0.0
    %385 = vmatpush1.msra.mxu0 0.0
    %386 = vmatprep.subr.mxu0 0.0
    %387 = vmatpush1.msra.mxu0 0.0
    %388 = vmatprep.subr.mxu0 0.0
    %389 = vmatpush1.msra.mxu0 0.0
    %390 = vmatprep.subr.mxu0 0.0
    %391 = vmatpush1.msra.mxu0 0.0
    %392 = vmatprep.mubr.f32.mxu0 0.0
    %393 = vmatmul.mubr.f32.gmra.mrb[0].mxu0 %v326
    %v394 = vpop.f32.mrb[0].mxu0
    %v395 = vadd.f32 %v69, %v394
    %v396 = vpop.f32.mrb[0].mxu0
    %397 = vdwg.mxu0
    %v398 = vmul.f32 %v395, %v249
    %v399 = vadd.f32 %v244, %v398
    %v401 = vsel %vm169, %v399, 0
    %403 = vmatprep.subr.mxu0 0.0
    %404 = vmatpush1.msra.mxu0 %v51
    %405 = vmatprep.subr.mxu0 0.0
    %406 = vmatpush1.msra.mxu0 %v52
    %407 = vmatprep.subr.mxu0 0.0
    %408 = vmatpush1.msra.mxu0 %v53
    %409 = vmatprep.subr.mxu0 0.0
    %410 = vmatpush1.msra.mxu0 %v54
    %411 = vmatprep.subr.mxu0 0.0
    %412 = vmatpush1.msra.mxu0 0.0
    %413 = vmatprep.subr.mxu0 0.0
    %414 = vmatpush1.msra.mxu0 0.0
    %415 = vmatprep.subr.mxu0 0.0
    %416 = vmatpush1.msra.mxu0 0.0
    %417 = vmatprep.subr.mxu0 0.0
    %418 = vmatpush1.msra.mxu0 0.0
    %419 = vmatprep.subr.mxu0 0.0
    %420 = vmatpush1.msra.mxu0 0.0
    %421 = vmatprep.subr.mxu0 0.0
    %422 = vmatpush1.msra.mxu0 0.0
    %423 = vmatprep.subr.mxu0 0.0
    %424 = vmatpush1.msra.mxu0 0.0
    %425 = vmatprep.subr.mxu0 0.0
    %426 = vmatpush1.msra.mxu0 0.0
    %427 = vmatprep.subr.mxu0 0.0
    %428 = vmatpush1.msra.mxu0 0.0
    %429 = vmatprep.subr.mxu0 0.0
    %430 = vmatpush1.msra.mxu0 0.0
    %431 = vmatprep.subr.mxu0 0.0
    %432 = vmatpush1.msra.mxu0 0.0
    %433 = vmatprep.subr.mxu0 0.0
    %434 = vmatpush1.msra.mxu0 0.0
    %435 = vmatprep.subr.mxu0 0.0
    %436 = vmatpush1.msra.mxu0 0.0
    %437 = vmatprep.subr.mxu0 0.0
    %438 = vmatpush1.msra.mxu0 0.0
    %439 = vmatprep.subr.mxu0 0.0
    %440 = vmatpush1.msra.mxu0 0.0
    %441 = vmatprep.subr.mxu0 0.0
    %442 = vmatpush1.msra.mxu0 0.0
    %443 = vmatprep.subr.mxu0 0.0
    %444 = vmatpush1.msra.mxu0 0.0
    %445 = vmatprep.subr.mxu0 0.0
    %446 = vmatpush1.msra.mxu0 0.0
    %447 = vmatprep.subr.mxu0 0.0
    %448 = vmatpush1.msra.mxu0 0.0
    %449 = vmatprep.subr.mxu0 0.0
    %450 = vmatpush1.msra.mxu0 0.0
    %451 = vmatprep.subr.mxu0 0.0
    %452 = vmatpush1.msra.mxu0 0.0
    %453 = vmatprep.subr.mxu0 0.0
    %454 = vmatpush1.msra.mxu0 0.0
    %455 = vmatprep.subr.mxu0 0.0
    %456 = vmatpush1.msra.mxu0 0.0
    %457 = vmatprep.subr.mxu0 0.0
    %458 = vmatpush1.msra.mxu0 0.0
    %459 = vmatprep.subr.mxu0 0.0
    %460 = vmatpush1.msra.mxu0 0.0
    %461 = vmatprep.subr.mxu0 0.0
    %462 = vmatpush1.msra.mxu0 0.0
    %463 = vmatprep.subr.mxu0 0.0
    %464 = vmatpush1.msra.mxu0 0.0
    %465 = vmatprep.subr.mxu0 0.0
    %466 = vmatpush1.msra.mxu0 0.0
    %467 = vmatprep.mubr.f32.mxu0 0.0
    %468 = vmatmul.mubr.f32.gmra.mrb[0].mxu0 %v401
    %v469 = vpop.f32.mrb[0].mxu0
    %v470 = vadd.f32 %v64, %v469
    %v471 = vpop.f32.mrb[0].mxu0
    %472 = vdwg.mxu0
    %v473 = vmax.f32 %v470, 0.0
    %v475 = vsel %vm169, %v473, 0
    %477 = vmatprep.subr.mxu0 0.0
    %478 = vmatpush1.msra.mxu0 %v56
    %479 = vmatprep.subr.mxu0 0.0
    %480 = vmatpush1.msra.mxu0 %v57
    %481 = vmatprep.subr.mxu0 0.0
    %482 = vmatpush1.msra.mxu0 %v58
    %483 = vmatprep.subr.mxu0 0.0
    %484 = vmatpush1.msra.mxu0 %v59
    %485 = vmatprep.subr.mxu0 0.0
    %486 = vmatpush1.msra.mxu0 0.0
    %487 = vmatprep.subr.mxu0 0.0
    %488 = vmatpush1.msra.mxu0 0.0
    %489 = vmatprep.subr.mxu0 0.0
    %490 = vmatpush1.msra.mxu0 0.0
    %491 = vmatprep.subr.mxu0 0.0
    %492 = vmatpush1.msra.mxu0 0.0
    %493 = vmatprep.subr.mxu0 0.0
    %494 = vmatpush1.msra.mxu0 0.0
    %495 = vmatprep.subr.mxu0 0.0
    %496 = vmatpush1.msra.mxu0 0.0
    %497 = vmatprep.subr.mxu0 0.0
    %498 = vmatpush1.msra.mxu0 0.0
    %499 = vmatprep.subr.mxu0 0.0
    %500 = vmatpush1.msra.mxu0 0.0
    %501 = vmatprep.subr.mxu0 0.0
    %502 = vmatpush1.msra.mxu0 0.0
    %503 = vmatprep.subr.mxu0 0.0
    %504 = vmatpush1.msra.mxu0 0.0
    %505 = vmatprep.subr.mxu0 0.0
    %506 = vmatpush1.msra.mxu0 0.0
    %507 = vmatprep.subr.mxu0 0.0
    %508 = vmatpush1.msra.mxu0 0.0
    %509 = vmatprep.subr.mxu0 0.0
    %510 = vmatpush1.msra.mxu0 0.0
    %511 = vmatprep.subr.mxu0 0.0
    %512 = vmatpush1.msra.mxu0 0.0
    %513 = vmatprep.subr.mxu0 0.0
    %514 = vmatpush1.msra.mxu0 0.0
    %515 = vmatprep.subr.mxu0 0.0
    %516 = vmatpush1.msra.mxu0 0.0
    %517 = vmatprep.subr.mxu0 0.0
    %518 = vmatpush1.msra.mxu0 0.0
    %519 = vmatprep.subr.mxu0 0.0
    %520 = vmatpush1.msra.mxu0 0.0
    %521 = vmatprep.subr.mxu0 0.0
    %522 = vmatpush1.msra.mxu0 0.0
    %523 = vmatprep.subr.mxu0 0.0
    %524 = vmatpush1.msra.mxu0 0.0
    %525 = vmatprep.subr.mxu0 0.0
    %526 = vmatpush1.msra.mxu0 0.0
    %527 = vmatprep.subr.mxu0 0.0
    %528 = vmatpush1.msra.mxu0 0.0
    %529 = vmatprep.subr.mxu0 0.0
    %530 = vmatpush1.msra.mxu0 0.0
    %531 = vmatprep.subr.mxu0 0.0
    %532 = vmatpush1.msra.mxu0 0.0
    %533 = vmatprep.subr.mxu0 0.0
    %534 = vmatpush1.msra.mxu0 0.0
    %535 = vmatprep.subr.mxu0 0.0
    %536 = vmatpush1.msra.mxu0 0.0
    %537 = vmatprep.subr.mxu0 0.0
    %538 = vmatpush1.msra.mxu0 0.0
    %539 = vmatprep.subr.mxu0 0.0
    %540 = vmatpush1.msra.mxu0 0.0
    %541 = vmatprep.mubr.f32.mxu0 0.0
    %542 = vmatmul.mubr.f32.gmra.mrb[0].mxu0 %v475
    %v543 = vpop.f32.mrb[0].mxu0
    %v544 = vadd.f32 %v69, %v543
    %v545 = vpop.f32.mrb[0].mxu0
    %546 = vdwg.mxu0
    %v547 = vmul.f32 %v544, %v249
    %v548 = vadd.f32 %v399, %v547
    %v550 = vsel %vm169, %v548, 0
    %552 = vmatprep.subr.mxu0 0.0
    %553 = vmatpush1.msra.mxu0 %v51
    %554 = vmatprep.subr.mxu0 0.0
    %555 = vmatpush1.msra.mxu0 %v52
    %556 = vmatprep.subr.mxu0 0.0
    %557 = vmatpush1.msra.mxu0 %v53
    %558 = vmatprep.subr.mxu0 0.0
    %559 = vmatpush1.msra.mxu0 %v54
    %560 = vmatprep.subr.mxu0 0.0
    %561 = vmatpush1.msra.mxu0 0.0
    %562 = vmatprep.subr.mxu0 0.0
    %563 = vmatpush1.msra.mxu0 0.0
    %564 = vmatprep.subr.mxu0 0.0
    %565 = vmatpush1.msra.mxu0 0.0
    %566 = vmatprep.subr.mxu0 0.0
    %567 = vmatpush1.msra.mxu0 0.0
    %568 = vmatprep.subr.mxu0 0.0
    %569 = vmatpush1.msra.mxu0 0.0
    %570 = vmatprep.subr.mxu0 0.0
    %571 = vmatpush1.msra.mxu0 0.0
    %572 = vmatprep.subr.mxu0 0.0
    %573 = vmatpush1.msra.mxu0 0.0
    %574 = vmatprep.subr.mxu0 0.0
    %575 = vmatpush1.msra.mxu0 0.0
    %576 = vmatprep.subr.mxu0 0.0
    %577 = vmatpush1.msra.mxu0 0.0
    %578 = vmatprep.subr.mxu0 0.0
    %579 = vmatpush1.msra.mxu0 0.0
    %580 = vmatprep.subr.mxu0 0.0
    %581 = vmatpush1.msra.mxu0 0.0
    %582 = vmatprep.subr.mxu0 0.0
    %583 = vmatpush1.msra.mxu0 0.0
    %584 = vmatprep.subr.mxu0 0.0
    %585 = vmatpush1.msra.mxu0 0.0
    %586 = vmatprep.subr.mxu0 0.0
    %587 = vmatpush1.msra.mxu0 0.0
    %588 = vmatprep.subr.mxu0 0.0
    %589 = vmatpush1.msra.mxu0 0.0
    %590 = vmatprep.subr.mxu0 0.0
    %591 = vmatpush1.msra.mxu0 0.0
    %592 = vmatprep.subr.mxu0 0.0
    %593 = vmatpush1.msra.mxu0 0.0
    %594 = vmatprep.subr.mxu0 0.0
    %595 = vmatpush1.msra.mxu0 0.0
    %596 = vmatprep.subr.mxu0 0.0
    %597 = vmatpush1.msra.mxu0 0.0
    %598 = vmatprep.subr.mxu0 0.0
    %599 = vmatpush1.msra.mxu0 0.0
    %600 = vmatprep.subr.mxu0 0.0
    %601 = vmatpush1.msra.mxu0 0.0
    %602 = vmatprep.subr.mxu0 0.0
    %603 = vmatpush1.msra.mxu0 0.0
    %604 = vmatprep.subr.mxu0 0.0
    %605 = vmatpush1.msra.mxu0 0.0
    %606 = vmatprep.subr.mxu0 0.0
    %607 = vmatpush1.msra.mxu0 0.0
    %608 = vmatprep.subr.mxu0 0.0
    %609 = vmatpush1.msra.mxu0 0.0
    %610 = vmatprep.subr.mxu0 0.0
    %611 = vmatpush1.msra.mxu0 0.0
    %612 = vmatprep.subr.mxu0 0.0
    %613 = vmatpush1.msra.mxu0 0.0
    %614 = vmatprep.subr.mxu0 0.0
    %615 = vmatpush1.msra.mxu0 0.0
    %616 = vmatprep.mubr.f32.mxu0 0.0
    %617 = vmatmul.mubr.f32.gmra.mrb[0].mxu0 %v550
    %v618 = vpop.f32.mrb[0].mxu0
    %v619 = vadd.f32 %v64, %v618
    %v620 = vpop.f32.mrb[0].mxu0
    %621 = vdwg.mxu0
    %v622 = vmax.f32 %v619, 0.0
    %v624 = vsel %vm169, %v622, 0
    %626 = vmatprep.subr.mxu0 0.0
    %627 = vmatpush1.msra.mxu0 %v56
    %628 = vmatprep.subr.mxu0 0.0
    %629 = vmatpush1.msra.mxu0 %v57
    %630 = vmatprep.subr.mxu0 0.0
    %631 = vmatpush1.msra.mxu0 %v58
    %632 = vmatprep.subr.mxu0 0.0
    %633 = vmatpush1.msra.mxu0 %v59
    %634 = vmatprep.subr.mxu0 0.0
    %635 = vmatpush1.msra.mxu0 0.0
    %636 = vmatprep.subr.mxu0 0.0
    %637 = vmatpush1.msra.mxu0 0.0
    %638 = vmatprep.subr.mxu0 0.0
    %639 = vmatpush1.msra.mxu0 0.0
    %640 = vmatprep.subr.mxu0 0.0
    %641 = vmatpush1.msra.mxu0 0.0
    %642 = vmatprep.subr.mxu0 0.0
    %643 = vmatpush1.msra.mxu0 0.0
    %644 = vmatprep.subr.mxu0 0.0
    %645 = vmatpush1.msra.mxu0 0.0
    %646 = vmatprep.subr.mxu0 0.0
    %647 = vmatpush1.msra.mxu0 0.0
    %648 = vmatprep.subr.mxu0 0.0
    %649 = vmatpush1.msra.mxu0 0.0
    %650 = vmatprep.subr.mxu0 0.0
    %651 = vmatpush1.msra.mxu0 0.0
    %652 = vmatprep.subr.mxu0 0.0
    %653 = vmatpush1.msra.mxu0 0.0
    %654 = vmatprep.subr.mxu0 0.0
    %655 = vmatpush1.msra.mxu0 0.0
    %656 = vmatprep.subr.mxu0 0.0
    %657 = vmatpush1.msra.mxu0 0.0
    %658 = vmatprep.subr.mxu0 0.0
    %659 = vmatpush1.msra.mxu0 0.0
    %660 = vmatprep.subr.mxu0 0.0
    %661 = vmatpush1.msra.mxu0 0.0
    %662 = vmatprep.subr.mxu0 0.0
    %663 = vmatpush1.msra.mxu0 0.0
    %664 = vmatprep.subr.mxu0 0.0
    %665 = vmatpush1.msra.mxu0 0.0
    %666 = vmatprep.subr.mxu0 0.0
    %667 = vmatpush1.msra.mxu0 0.0
    %668 = vmatprep.subr.mxu0 0.0
    %669 = vmatpush1.msra.mxu0 0.0
    %670 = vmatprep.subr.mxu0 0.0
    %671 = vmatpush1.msra.mxu0 0.0
    %672 = vmatprep.subr.mxu0 0.0
    %673 = vmatpush1.msra.mxu0 0.0
    %674 = vmatprep.subr.mxu0 0.0
    %675 = vmatpush1.msra.mxu0 0.0
    %676 = vmatprep.subr.mxu0 0.0
    %677 = vmatpush1.msra.mxu0 0.0
    %678 = vmatprep.subr.mxu0 0.0
    %679 = vmatpush1.msra.mxu0 0.0
    %680 = vmatprep.subr.mxu0 0.0
    %681 = vmatpush1.msra.mxu0 0.0
    %682 = vmatprep.subr.mxu0 0.0
    %683 = vmatpush1.msra.mxu0 0.0
    %684 = vmatprep.subr.mxu0 0.0
    %685 = vmatpush1.msra.mxu0 0.0
    %686 = vmatprep.subr.mxu0 0.0
    %687 = vmatpush1.msra.mxu0 0.0
    %688 = vmatprep.subr.mxu0 0.0
    %689 = vmatpush1.msra.mxu0 0.0
    %690 = vmatprep.mubr.f32.mxu0 0.0
    %691 = vmatmul.mubr.f32.gmra.mrb[0].mxu0 %v624
    %v692 = vpop.f32.mrb[0].mxu0
    %v693 = vadd.f32 %v69, %v692
    %v694 = vpop.f32.mrb[0].mxu0
    %695 = vdwg.mxu0
    %v696 = vmul.f32 %v693, %v249
    %v697 = vadd.f32 %v548, %v696
    %v699 = vsel %vm169, %v697, 0
    %701 = vmatprep.subr.mxu0 0.0
    %702 = vmatpush1.msra.mxu0 %v47
    %703 = vmatprep.subr.mxu0 0.0
    %704 = vmatpush1.msra.mxu0 %v48
    %705 = vmatprep.subr.mxu0 0.0
    %706 = vmatpush1.msra.mxu0 %v49
    %707 = vmatprep.subr.mxu0 0.0
    %708 = vmatpush1.msra.mxu0 %v50
    %709 = vmatprep.subr.mxu0 0.0
    %710 = vmatpush1.msra.mxu0 0.0
    %711 = vmatprep.subr.mxu0 0.0
    %712 = vmatpush1.msra.mxu0 0.0
    %713 = vmatprep.subr.mxu0 0.0
    %714 = vmatpush1.msra.mxu0 0.0
    %715 = vmatprep.subr.mxu0 0.0
    %716 = vmatpush1.msra.mxu0 0.0
    %717 = vmatprep.subr.mxu0 0.0
    %718 = vmatpush1.msra.mxu0 0.0
    %719 = vmatprep.subr.mxu0 0.0
    %720 = vmatpush1.msra.mxu0 0.0
    %721 = vmatprep.subr.mxu0 0.0
    %722 = vmatpush1.msra.mxu0 0.0
    %723 = vmatprep.subr.mxu0 0.0
    %724 = vmatpush1.msra.mxu0 0.0
    %725 = vmatprep.subr.mxu0 0.0
    %726 = vmatpush1.msra.mxu0 0.0
    %727 = vmatprep.subr.mxu0 0.0
    %728 = vmatpush1.msra.mxu0 0.0
    %729 = vmatprep.subr.mxu0 0.0
    %730 = vmatpush1.msra.mxu0 0.0
    %731 = vmatprep.subr.mxu0 0.0
    %732 = vmatpush1.msra.mxu0 0.0
    %733 = vmatprep.subr.mxu0 0.0
    %734 = vmatpush1.msra.mxu0 0.0
    %735 = vmatprep.subr.mxu0 0.0
    %736 = vmatpush1.msra.mxu0 0.0
    %737 = vmatprep.subr.mxu0 0.0
    %738 = vmatpush1.msra.mxu0 0.0
    %739 = vmatprep.subr.mxu0 0.0
    %740 = vmatpush1.msra.mxu0 0.0
    %741 = vmatprep.subr.mxu0 0.0
    %742 = vmatpush1.msra.mxu0 0.0
    %743 = vmatprep.subr.mxu0 0.0
    %744 = vmatpush1.msra.mxu0 0.0
    %745 = vmatprep.subr.mxu0 0.0
    %746 = vmatpush1.msra.mxu0 0.0
    %747 = vmatprep.subr.mxu0 0.0
    %748 = vmatpush1.msra.mxu0 0.0
    %749 = vmatprep.subr.mxu0 0.0
    %750 = vmatpush1.msra.mxu0 0.0
    %751 = vmatprep.subr.mxu0 0.0
    %752 = vmatpush1.msra.mxu0 0.0
    %753 = vmatprep.subr.mxu0 0.0
    %754 = vmatpush1.msra.mxu0 0.0
    %755 = vmatprep.subr.mxu0 0.0
    %756 = vmatpush1.msra.mxu0 0.0
    %757 = vmatprep.subr.mxu0 0.0
    %758 = vmatpush1.msra.mxu0 0.0
    %759 = vmatprep.subr.mxu0 0.0
    %760 = vmatpush1.msra.mxu0 0.0
    %761 = vmatprep.subr.mxu0 0.0
    %762 = vmatpush1.msra.mxu0 0.0
    %763 = vmatprep.subr.mxu0 0.0
    %764 = vmatpush1.msra.mxu0 0.0
    %765 = vmatprep.mubr.f32.mxu0 0.0
    %766 = vmatmul.mubr.f32.gmra.mrb[0].mxu0 %v699
    %v767 = vpop.f32.mrb[0].mxu0
    %v768 = vadd.f32 0.0, %v767
    %v769 = vpop.f32.mrb[0].mxu0
    %770 = vdwg.mxu0
    %v772 = vrot.slane %v768, 6
    %v774 = vadd.f32 %v159, %v772
    %v775 = vtanh.pop %v774
    %v777 = vrot.slane %v775, 2
    %v779 = vadd.f32 %v245, %v777
    %780 = vset.pattern.permute.xlu0 2
    %781 = vperm.xlu0 %780, %v168
    %v782 = vpop.permute.xlu0 %781
    %v784 = vsel %vm169, %v777, 0
    %786 = vmatprep.subr.mxu0 0.0
    %787 = vmatpush1.msra.mxu0 %v51
    %788 = vmatprep.subr.mxu0 0.0
    %789 = vmatpush1.msra.mxu0 %v52
    %790 = vmatprep.subr.mxu0 0.0
    %791 = vmatpush1.msra.mxu0 %v53
    %792 = vmatprep.subr.mxu0 0.0
    %793 = vmatpush1.msra.mxu0 %v54
    %794 = vmatprep.subr.mxu0 0.0
    %795 = vmatpush1.msra.mxu0 0.0
    %796 = vmatprep.subr.mxu0 0.0
    %797 = vmatpush1.msra.mxu0 0.0
    %798 = vmatprep.subr.mxu0 0.0
    %799 = vmatpush1.msra.mxu0 0.0
    %800 = vmatprep.subr.mxu0 0.0
    %801 = vmatpush1.msra.mxu0 0.0
    %802 = vmatprep.subr.mxu0 0.0
    %803 = vmatpush1.msra.mxu0 0.0
    %804 = vmatprep.subr.mxu0 0.0
    %805 = vmatpush1.msra.mxu0 0.0
    %806 = vmatprep.subr.mxu0 0.0
    %807 = vmatpush1.msra.mxu0 0.0
    %808 = vmatprep.subr.mxu0 0.0
    %809 = vmatpush1.msra.mxu0 0.0
    %810 = vmatprep.subr.mxu0 0.0
    %811 = vmatpush1.msra.mxu0 0.0
    %812 = vmatprep.subr.mxu0 0.0
    %813 = vmatpush1.msra.mxu0 0.0
    %814 = vmatprep.subr.mxu0 0.0
    %815 = vmatpush1.msra.mxu0 0.0
    %816 = vmatprep.subr.mxu0 0.0
    %817 = vmatpush1.msra.mxu0 0.0
    %818 = vmatprep.subr.mxu0 0.0
    %819 = vmatpush1.msra.mxu0 0.0
    %820 = vmatprep.subr.mxu0 0.0
    %821 = vmatpush1.msra.mxu0 0.0
    %822 = vmatprep.subr.mxu0 0.0
    %823 = vmatpush1.msra.mxu0 0.0
    %824 = vmatprep.subr.mxu0 0.0
    %825 = vmatpush1.msra.mxu0 0.0
    %826 = vmatprep.subr.mxu0 0.0
    %827 = vmatpush1.msra.mxu0 0.0
    %828 = vmatprep.subr.mxu0 0.0
    %829 = vmatpush1.msra.mxu0 0.0
    %830 = vmatprep.subr.mxu0 0.0
    %831 = vmatpush1.msra.mxu0 0.0
    %832 = vmatprep.subr.mxu0 0.0
    %833 = vmatpush1.msra.mxu0 0.0
    %834 = vmatprep.subr.mxu0 0.0
    %835 = vmatpush1.msra.mxu0 0.0
    %836 = vmatprep.subr.mxu0 0.0
    %837 = vmatpush1.msra.mxu0 0.0
    %838 = vmatprep.subr.mxu0 0.0
    %839 = vmatpush1.msra.mxu0 0.0
    %840 = vmatprep.subr.mxu0 0.0
    %841 = vmatpush1.msra.mxu0 0.0
    %842 = vmatprep.subr.mxu0 0.0
    %843 = vmatpush1.msra.mxu0 0.0
    %844 = vmatprep.subr.mxu0 0.0
    %845 = vmatpush1.msra.mxu0 0.0
    %846 = vmatprep.subr.mxu0 0.0
    %847 = vmatpush1.msra.mxu0 0.0
    %848 = vmatprep.subr.mxu0 0.0
    %849 = vmatpush1.msra.mxu0 0.0
    %850 = vmatprep.mubr.f32.mxu0 0.0
    %851 = vmatmul.mubr.f32.gmra.mrb[0].mxu0 %v784
    %v852 = vpop.f32.mrb[0].mxu0
    %v853 = vadd.f32 %v64, %v852
    %v854 = vpop.f32.mrb[0].mxu0
    %855 = vdwg.mxu0
    %v856 = vmax.f32 %v853, 0.0
    %v858 = vsel %vm169, %v856, 0
    %860 = vmatprep.subr.mxu0 0.0
    %861 = vmatpush1.msra.mxu0 %v56
    %862 = vmatprep.subr.mxu0 0.0
    %863 = vmatpush1.msra.mxu0 %v57
    %864 = vmatprep.subr.mxu0 0.0
    %865 = vmatpush1.msra.mxu0 %v58
    %866 = vmatprep.subr.mxu0 0.0
    %867 = vmatpush1.msra.mxu0 %v59
    %868 = vmatprep.subr.mxu0 0.0
    %869 = vmatpush1.msra.mxu0 0.0
    %870 = vmatprep.subr.mxu0 0.0
    %871 = vmatpush1.msra.mxu0 0.0
    %872 = vmatprep.subr.mxu0 0.0
    %873 = vmatpush1.msra.mxu0 0.0
    %874 = vmatprep.subr.mxu0 0.0
    %875 = vmatpush1.msra.mxu0 0.0
    %876 = vmatprep.subr.mxu0 0.0
    %877 = vmatpush1.msra.mxu0 0.0
    %878 = vmatprep.subr.mxu0 0.0
    %879 = vmatpush1.msra.mxu0 0.0
    %880 = vmatprep.subr.mxu0 0.0
    %881 = vmatpush1.msra.mxu0 0.0
    %882 = vmatprep.subr.mxu0 0.0
    %883 = vmatpush1.msra.mxu0 0.0
    %884 = vmatprep.subr.mxu0 0.0
    %885 = vmatpush1.msra.mxu0 0.0
    %886 = vmatprep.subr.mxu0 0.0
    %887 = vmatpush1.msra.mxu0 0.0
    %888 = vmatprep.subr.mxu0 0.0
    %889 = vmatpush1.msra.mxu0 0.0
    %890 = vmatprep.subr.mxu0 0.0
    %891 = vmatpush1.msra.mxu0 0.0
    %892 = vmatprep.subr.mxu0 0.0
    %893 = vmatpush1.msra.mxu0 0.0
    %894 = vmatprep.subr.mxu0 0.0
    %895 = vmatpush1.msra.mxu0 0.0
    %896 = vmatprep.subr.mxu0 0.0
    %897 = vmatpush1.msra.mxu0 0.0
    %898 = vmatprep.subr.mxu0 0.0
    %899 = vmatpush1.msra.mxu0 0.0
    %900 = vmatprep.subr.mxu0 0.0
    %901 = vmatpush1.msra.mxu0 0.0
    %902 = vmatprep.subr.mxu0 0.0
    %903 = vmatpush1.msra.mxu0 0.0
    %904 = vmatprep.subr.mxu0 0.0
    %905 = vmatpush1.msra.mxu0 0.0
    %906 = vmatprep.subr.mxu0 0.0
    %907 = vmatpush1.msra.mxu0 0.0
    %908 = vmatprep.subr.mxu0 0.0
    %909 = vmatpush1.msra.mxu0 0.0
    %910 = vmatprep.subr.mxu0 0.0
    %911 = vmatpush1.msra.mxu0 0.0
    %912 = vmatprep.subr.mxu0 0.0
    %913 = vmatpush1.msra.mxu0 0.0
    %914 = vmatprep.subr.mxu0 0.0
    %915 = vmatpush1.msra.mxu0 0.0
    %916 = vmatprep.subr.mxu0 0.0
    %917 = vmatpush1.msra.mxu0 0.0
    %918 = vmatprep.subr.mxu0 0.0
    %919 = vmatpush1.msra.mxu0 0.0
    %920 = vmatprep.subr.mxu0 0.0
    %921 = vmatpush1.msra.mxu0 0.0
    %922 = vmatprep.subr.mxu0 0.0
    %923 = vmatpush1.msra.mxu0 0.0
    %924 = vmatprep.mubr.f32.mxu0 0.0
    %925 = vmatmul.mubr.f32.gmra.mrb[0].mxu0 %v858
    %v926 = vpop.f32.mrb[0].mxu0
    %v927 = vadd.f32 %v69, %v926
    %v928 = vpop.f32.mrb[0].mxu0
    %929 = vdwg.mxu0
    %v930 = vmul.f32 %v927, %v782
    %v932 = vrot.slane %v930, 6
    %v934 = vadd.f32 %v775, %v932
    %v936 = vrot.slane %v934, 2
    %v937 = vsel %vm169, %v936, 0
    %939 = vmatprep.subr.mxu0 0.0
    %940 = vmatpush1.msra.mxu0 %v51
    %941 = vmatprep.subr.mxu0 0.0
    %942 = vmatpush1.msra.mxu0 %v52
    %943 = vmatprep.subr.mxu0 0.0
    %944 = vmatpush1.msra.mxu0 %v53
    %945 = vmatprep.subr.mxu0 0.0
    %946 = vmatpush1.msra.mxu0 %v54
    %947 = vmatprep.subr.mxu0 0.0
    %948 = vmatpush1.msra.mxu0 0.0
    %949 = vmatprep.subr.mxu0 0.0
    %950 = vmatpush1.msra.mxu0 0.0
    %951 = vmatprep.subr.mxu0 0.0
    %952 = vmatpush1.msra.mxu0 0.0
    %953 = vmatprep.subr.mxu0 0.0
    %954 = vmatpush1.msra.mxu0 0.0
    %955 = vmatprep.subr.mxu0 0.0
    %956 = vmatpush1.msra.mxu0 0.0
    %957 = vmatprep.subr.mxu0 0.0
    %958 = vmatpush1.msra.mxu0 0.0
    %959 = vmatprep.subr.mxu0 0.0
    %960 = vmatpush1.msra.mxu0 0.0
    %961 = vmatprep.subr.mxu0 0.0
    %962 = vmatpush1.msra.mxu0 0.0
    %963 = vmatprep.subr.mxu0 0.0
    %964 = vmatpush1.msra.mxu0 0.0
    %965 = vmatprep.subr.mxu0 0.0
    %966 = vmatpush1.msra.mxu0 0.0
    %967 = vmatprep.subr.mxu0 0.0
    %968 = vmatpush1.msra.mxu0 0.0
    %969 = vmatprep.subr.mxu0 0.0
    %970 = vmatpush1.msra.mxu0 0.0
    %971 = vmatprep.subr.mxu0 0.0
    %972 = vmatpush1.msra.mxu0 0.0
    %973 = vmatprep.subr.mxu0 0.0
    %974 = vmatpush1.msra.mxu0 0.0
    %975 = vmatprep.subr.mxu0 0.0
    %976 = vmatpush1.msra.mxu0 0.0
    %977 = vmatprep.subr.mxu0 0.0
    %978 = vmatpush1.msra.mxu0 0.0
    %979 = vmatprep.subr.mxu0 0.0
    %980 = vmatpush1.msra.mxu0 0.0
    %981 = vmatprep.subr.mxu0 0.0
    %982 = vmatpush1.msra.mxu0 0.0
    %983 = vmatprep.subr.mxu0 0.0
    %984 = vmatpush1.msra.mxu0 0.0
    %985 = vmatprep.subr.mxu0 0.0
    %986 = vmatpush1.msra.mxu0 0.0
    %987 = vmatprep.subr.mxu0 0.0
    %988 = vmatpush1.msra.mxu0 0.0
    %989 = vmatprep.subr.mxu0 0.0
    %990 = vmatpush1.msra.mxu0 0.0
    %991 = vmatprep.subr.mxu0 0.0
    %992 = vmatpush1.msra.mxu0 0.0
    %993 = vmatprep.subr.mxu0 0.0
    %994 = vmatpush1.msra.mxu0 0.0
    %995 = vmatprep.subr.mxu0 0.0
    %996 = vmatpush1.msra.mxu0 0.0
    %997 = vmatprep.subr.mxu0 0.0
    %998 = vmatpush1.msra.mxu0 0.0
    %999 = vmatprep.subr.mxu0 0.0
    %1000 = vmatpush1.msra.mxu0 0.0
    %1001 = vmatprep.subr.mxu0 0.0
    %1002 = vmatpush1.msra.mxu0 0.0
    %1003 = vmatprep.mubr.f32.mxu0 0.0
    %1004 = vmatmul.mubr.f32.gmra.mrb[0].mxu0 %v937
    %v1005 = vpop.f32.mrb[0].mxu0
    %v1006 = vadd.f32 %v64, %v1005
    %v1007 = vpop.f32.mrb[0].mxu0
    %1008 = vdwg.mxu0
    %v1009 = vmax.f32 %v1006, 0.0
    %v1011 = vsel %vm169, %v1009, 0
    %1013 = vmatprep.subr.mxu0 0.0
    %1014 = vmatpush1.msra.mxu0 %v56
    %1015 = vmatprep.subr.mxu0 0.0
    %1016 = vmatpush1.msra.mxu0 %v57
    %1017 = vmatprep.subr.mxu0 0.0
    %1018 = vmatpush1.msra.mxu0 %v58
    %1019 = vmatprep.subr.mxu0 0.0
    %1020 = vmatpush1.msra.mxu0 %v59
    %1021 = vmatprep.subr.mxu0 0.0
    %1022 = vmatpush1.msra.mxu0 0.0
    %1023 = vmatprep.subr.mxu0 0.0
    %1024 = vmatpush1.msra.mxu0 0.0
    %1025 = vmatprep.subr.mxu0 0.0
    %1026 = vmatpush1.msra.mxu0 0.0
    %1027 = vmatprep.subr.mxu0 0.0
    %1028 = vmatpush1.msra.mxu0 0.0
    %1029 = vmatprep.subr.mxu0 0.0
    %1030 = vmatpush1.msra.mxu0 0.0
    %1031 = vmatprep.subr.mxu0 0.0
    %1032 = vmatpush1.msra.mxu0 0.0
    %1033 = vmatprep.subr.mxu0 0.0
    %1034 = vmatpush1.msra.mxu0 0.0
    %1035 = vmatprep.subr.mxu0 0.0
    %1036 = vmatpush1.msra.mxu0 0.0
    %1037 = vmatprep.subr.mxu0 0.0
    %1038 = vmatpush1.msra.mxu0 0.0
    %1039 = vmatprep.subr.mxu0 0.0
    %1040 = vmatpush1.msra.mxu0 0.0
    %1041 = vmatprep.subr.mxu0 0.0
    %1042 = vmatpush1.msra.mxu0 0.0
    %1043 = vmatprep.subr.mxu0 0.0
    %1044 = vmatpush1.msra.mxu0 0.0
    %1045 = vmatprep.subr.mxu0 0.0
    %1046 = vmatpush1.msra.mxu0 0.0
    %1047 = vmatprep.subr.mxu0 0.0
    %1048 = vmatpush1.msra.mxu0 0.0
    %1049 = vmatprep.subr.mxu0 0.0
    %1050 = vmatpush1.msra.mxu0 0.0
    %1051 = vmatprep.subr.mxu0 0.0
    %1052 = vmatpush1.msra.mxu0 0.0
    %1053 = vmatprep.subr.mxu0 0.0
    %1054 = vmatpush1.msra.mxu0 0.0
    %1055 = vmatprep.subr.mxu0 0.0
    %1056 = vmatpush1.msra.mxu0 0.0
    %1057 = vmatprep.subr.mxu0 0.0
    %1058 = vmatpush1.msra.mxu0 0.0
    %1059 = vmatprep.subr.mxu0 0.0
    %1060 = vmatpush1.msra.mxu0 0.0
    %1061 = vmatprep.subr.mxu0 0.0
    %1062 = vmatpush1.msra.mxu0 0.0
    %1063 = vmatprep.subr.mxu0 0.0
    %1064 = vmatpush1.msra.mxu0 0.0
    %1065 = vmatprep.subr.mxu0 0.0
    %1066 = vmatpush1.msra.mxu0 0.0
    %1067 = vmatprep.subr.mxu0 0.0
    %1068 = vmatpush1.msra.mxu0 0.0
    %1069 = vmatprep.subr.mxu0 0.0
    %1070 = vmatpush1.msra.mxu0 0.0
    %1071 = vmatprep.subr.mxu0 0.0
    %1072 = vmatpush1.msra.mxu0 0.0
    %1073 = vmatprep.subr.mxu0 0.0
    %1074 = vmatpush1.msra.mxu0 0.0
    %1075 = vmatprep.subr.mxu0 0.0
    %1076 = vmatpush1.msra.mxu0 0.0
    %1077 = vmatprep.mubr.f32.mxu0 0.0
    %1078 = vmatmul.mubr.f32.gmra.mrb[0].mxu0 %v1011
    %v1079 = vpop.f32.mrb[0].mxu0
    %v1080 = vadd.f32 %v69, %v1079
    %v1081 = vpop.f32.mrb[0].mxu0
    %1082 = vdwg.mxu0
    %v1083 = vmul.f32 %v1080, %v782
    %v1085 = vrot.slane %v1083, 6
    %v1087 = vadd.f32 %v934, %v1085
    %v1089 = vrot.slane %v1087, 2
    %v1090 = vsel %vm169, %v1089, 0
    %1092 = vmatprep.subr.mxu0 0.0
    %1093 = vmatpush1.msra.mxu0 %v51
    %1094 = vmatprep.subr.mxu0 0.0
    %1095 = vmatpush1.msra.mxu0 %v52
    %1096 = vmatprep.subr.mxu0 0.0
    %1097 = vmatpush1.msra.mxu0 %v53
    %1098 = vmatprep.subr.mxu0 0.0
    %1099 = vmatpush1.msra.mxu0 %v54
    %1100 = vmatprep.subr.mxu0 0.0
    %1101 = vmatpush1.msra.mxu0 0.0
    %1102 = vmatprep.subr.mxu0 0.0
    %1103 = vmatpush1.msra.mxu0 0.0
    %1104 = vmatprep.subr.mxu0 0.0
    %1105 = vmatpush1.msra.mxu0 0.0
    %1106 = vmatprep.subr.mxu0 0.0
    %1107 = vmatpush1.msra.mxu0 0.0
    %1108 = vmatprep.subr.mxu0 0.0
    %1109 = vmatpush1.msra.mxu0 0.0
    %1110 = vmatprep.subr.mxu0 0.0
    %1111 = vmatpush1.msra.mxu0 0.0
    %1112 = vmatprep.subr.mxu0 0.0
    %1113 = vmatpush1.msra.mxu0 0.0
    %1114 = vmatprep.subr.mxu0 0.0
    %1115 = vmatpush1.msra.mxu0 0.0
    %1116 = vmatprep.subr.mxu0 0.0
    %1117 = vmatpush1.msra.mxu0 0.0
    %1118 = vmatprep.subr.mxu0 0.0
    %1119 = vmatpush1.msra.mxu0 0.0
    %1120 = vmatprep.subr.mxu0 0.0
    %1121 = vmatpush1.msra.mxu0 0.0
    %1122 = vmatprep.subr.mxu0 0.0
    %1123 = vmatpush1.msra.mxu0 0.0
    %1124 = vmatprep.subr.mxu0 0.0
    %1125 = vmatpush1.msra.mxu0 0.0
    %1126 = vmatprep.subr.mxu0 0.0
    %1127 = vmatpush1.msra.mxu0 0.0
    %1128 = vmatprep.subr.mxu0 0.0
    %1129 = vmatpush1.msra.mxu0 0.0
    %1130 = vmatprep.subr.mxu0 0.0
    %1131 = vmatpush1.msra.mxu0 0.0
    %1132 = vmatprep.subr.mxu0 0.0
    %1133 = vmatpush1.msra.mxu0 0.0
    %1134 = vmatprep.subr.mxu0 0.0
    %1135 = vmatpush1.msra.mxu0 0.0
    %1136 = vmatprep.subr.mxu0 0.0
    %1137 = vmatpush1.msra.mxu0 0.0
    %1138 = vmatprep.subr.mxu0 0.0
    %1139 = vmatpush1.msra.mxu0 0.0
    %1140 = vmatprep.subr.mxu0 0.0
    %1141 = vmatpush1.msra.mxu0 0.0
    %1142 = vmatprep.subr.mxu0 0.0
    %1143 = vmatpush1.msra.mxu0 0.0
    %1144 = vmatprep.subr.mxu0 0.0
    %1145 = vmatpush1.msra.mxu0 0.0
    %1146 = vmatprep.subr.mxu0 0.0
    %1147 = vmatpush1.msra.mxu0 0.0
    %1148 = vmatprep.subr.mxu0 0.0
    %1149 = vmatpush1.msra.mxu0 0.0
    %1150 = vmatprep.subr.mxu0 0.0
    %1151 = vmatpush1.msra.mxu0 0.0
    %1152 = vmatprep.subr.mxu0 0.0
    %1153 = vmatpush1.msra.mxu0 0.0
    %1154 = vmatprep.subr.mxu0 0.0
    %1155 = vmatpush1.msra.mxu0 0.0
    %1156 = vmatprep.mubr.f32.mxu0 0.0
    %1157 = vmatmul.mubr.f32.gmra.mrb[0].mxu0 %v1090
    %v1158 = vpop.f32.mrb[0].mxu0
    %v1159 = vadd.f32 %v64, %v1158
    %v1160 = vpop.f32.mrb[0].mxu0
    %1161 = vdwg.mxu0
    %v1162 = vmax.f32 %v1159, 0.0
    %v1164 = vsel %vm169, %v1162, 0
    %1166 = vmatprep.subr.mxu0 0.0
    %1167 = vmatpush1.msra.mxu0 %v56
    %1168 = vmatprep.subr.mxu0 0.0
    %1169 = vmatpush1.msra.mxu0 %v57
    %1170 = vmatprep.subr.mxu0 0.0
    %1171 = vmatpush1.msra.mxu0 %v58
    %1172 = vmatprep.subr.mxu0 0.0
    %1173 = vmatpush1.msra.mxu0 %v59
    %1174 = vmatprep.subr.mxu0 0.0
    %1175 = vmatpush1.msra.mxu0 0.0
    %1176 = vmatprep.subr.mxu0 0.0
    %1177 = vmatpush1.msra.mxu0 0.0
    %1178 = vmatprep.subr.mxu0 0.0
    %1179 = vmatpush1.msra.mxu0 0.0
    %1180 = vmatprep.subr.mxu0 0.0
    %1181 = vmatpush1.msra.mxu0 0.0
    %1182 = vmatprep.subr.mxu0 0.0
    %1183 = vmatpush1.msra.mxu0 0.0
    %1184 = vmatprep.subr.mxu0 0.0
    %1185 = vmatpush1.msra.mxu0 0.0
    %1186 = vmatprep.subr.mxu0 0.0
    %1187 = vmatpush1.msra.mxu0 0.0
    %1188 = vmatprep.subr.mxu0 0.0
    %1189 = vmatpush1.msra.mxu0 0.0
    %1190 = vmatprep.subr.mxu0 0.0
    %1191 = vmatpush1.msra.mxu0 0.0
    %1192 = vmatprep.subr.mxu0 0.0
    %1193 = vmatpush1.msra.mxu0 0.0
    %1194 = vmatprep.subr.mxu0 0.0
    %1195 = vmatpush1.msra.mxu0 0.0
    %1196 = vmatprep.subr.mxu0 0.0
    %1197 = vmatpush1.msra.mxu0 0.0
    %1198 = vmatprep.subr.mxu0 0.0
    %1199 = vmatpush1.msra.mxu0 0.0
    %1200 = vmatprep.subr.mxu0 0.0
    %1201 = vmatpush1.msra.mxu0 0.0
    %1202 = vmatprep.subr.mxu0 0.0
    %1203 = vmatpush1.msra.mxu0 0.0
    %1204 = vmatprep.subr.mxu0 0.0
    %1205 = vmatpush1.msra.mxu0 0.0
    %1206 = vmatprep.subr.mxu0 0.0
    %1207 = vmatpush1.msra.mxu0 0.0
    %1208 = vmatprep.subr.mxu0 0.0
    %1209 = vmatpush1.msra.mxu0 0.0
    %1210 = vmatprep.subr.mxu0 0.0
    %1211 = vmatpush1.msra.mxu0 0.0
    %1212 = vmatprep.subr.mxu0 0.0
    %1213 = vmatpush1.msra.mxu0 0.0
    %1214 = vmatprep.subr.mxu0 0.0
    %1215 = vmatpush1.msra.mxu0 0.0
    %1216 = vmatprep.subr.mxu0 0.0
    %1217 = vmatpush1.msra.mxu0 0.0
    %1218 = vmatprep.subr.mxu0 0.0
    %1219 = vmatpush1.msra.mxu0 0.0
    %1220 = vmatprep.subr.mxu0 0.0
    %1221 = vmatpush1.msra.mxu0 0.0
    %1222 = vmatprep.subr.mxu0 0.0
    %1223 = vmatpush1.msra.mxu0 0.0
    %1224 = vmatprep.subr.mxu0 0.0
    %1225 = vmatpush1.msra.mxu0 0.0
    %1226 = vmatprep.subr.mxu0 0.0
    %1227 = vmatpush1.msra.mxu0 0.0
    %1228 = vmatprep.subr.mxu0 0.0
    %1229 = vmatpush1.msra.mxu0 0.0
    %1230 = vmatprep.mubr.f32.mxu0 0.0
    %1231 = vmatmul.mubr.f32.gmra.mrb[0].mxu0 %v1164
    %v1232 = vpop.f32.mrb[0].mxu0
    %v1233 = vadd.f32 %v69, %v1232
    %v1234 = vpop.f32.mrb[0].mxu0
    %1235 = vdwg.mxu0
    %v1236 = vmul.f32 %v1233, %v782
    %v1238 = vrot.slane %v1236, 6
    %v1240 = vadd.f32 %v1087, %v1238
    %v1242 = vrot.slane %v1240, 2
    %v1243 = vsel %vm169, %v1242, 0
    %1245 = vmatprep.subr.mxu0 0.0
    %1246 = vmatpush1.msra.mxu0 %v47
    %1247 = vmatprep.subr.mxu0 0.0
    %1248 = vmatpush1.msra.mxu0 %v48
    %1249 = vmatprep.subr.mxu0 0.0
    %1250 = vmatpush1.msra.mxu0 %v49
    %1251 = vmatprep.subr.mxu0 0.0
    %1252 = vmatpush1.msra.mxu0 %v50
    %1253 = vmatprep.subr.mxu0 0.0
    %1254 = vmatpush1.msra.mxu0 0.0
    %1255 = vmatprep.subr.mxu0 0.0
    %1256 = vmatpush1.msra.mxu0 0.0
    %1257 = vmatprep.subr.mxu0 0.0
    %1258 = vmatpush1.msra.mxu0 0.0
    %1259 = vmatprep.subr.mxu0 0.0
    %1260 = vmatpush1.msra.mxu0 0.0
    %1261 = vmatprep.subr.mxu0 0.0
    %1262 = vmatpush1.msra.mxu0 0.0
    %1263 = vmatprep.subr.mxu0 0.0
    %1264 = vmatpush1.msra.mxu0 0.0
    %1265 = vmatprep.subr.mxu0 0.0
    %1266 = vmatpush1.msra.mxu0 0.0
    %1267 = vmatprep.subr.mxu0 0.0
    %1268 = vmatpush1.msra.mxu0 0.0
    %1269 = vmatprep.subr.mxu0 0.0
    %1270 = vmatpush1.msra.mxu0 0.0
    %1271 = vmatprep.subr.mxu0 0.0
    %1272 = vmatpush1.msra.mxu0 0.0
    %1273 = vmatprep.subr.mxu0 0.0
    %1274 = vmatpush1.msra.mxu0 0.0
    %1275 = vmatprep.subr.mxu0 0.0
    %1276 = vmatpush1.msra.mxu0 0.0
    %1277 = vmatprep.subr.mxu0 0.0
    %1278 = vmatpush1.msra.mxu0 0.0
    %1279 = vmatprep.subr.mxu0 0.0
    %1280 = vmatpush1.msra.mxu0 0.0
    %1281 = vmatprep.subr.mxu0 0.0
    %1282 = vmatpush1.msra.mxu0 0.0
    %1283 = vmatprep.subr.mxu0 0.0
    %1284 = vmatpush1.msra.mxu0 0.0
    %1285 = vmatprep.subr.mxu0 0.0
    %1286 = vmatpush1.msra.mxu0 0.0
    %1287 = vmatprep.subr.mxu0 0.0
    %1288 = vmatpush1.msra.mxu0 0.0
    %1289 = vmatprep.subr.mxu0 0.0
    %1290 = vmatpush1.msra.mxu0 0.0
    %1291 = vmatprep.subr.mxu0 0.0
    %1292 = vmatpush1.msra.mxu0 0.0
    %1293 = vmatprep.subr.mxu0 0.0
    %1294 = vmatpush1.msra.mxu0 0.0
    %1295 = vmatprep.subr.mxu0 0.0
    %1296 = vmatpush1.msra.mxu0 0.0
    %1297 = vmatprep.subr.mxu0 0.0
    %1298 = vmatpush1.msra.mxu0 0.0
    %1299 = vmatprep.subr.mxu0 0.0
    %1300 = vmatpush1.msra.mxu0 0.0
    %1301 = vmatprep.subr.mxu0 0.0
    %1302 = vmatpush1.msra.mxu0 0.0
    %1303 = vmatprep.subr.mxu0 0.0
    %1304 = vmatpush1.msra.mxu0 0.0
    %1305 = vmatprep.subr.mxu0 0.0
    %1306 = vmatpush1.msra.mxu0 0.0
    %1307 = vmatprep.subr.mxu0 0.0
    %1308 = vmatpush1.msra.mxu0 0.0
    %1309 = vmatprep.mubr.f32.mxu0 0.0
    %1310 = vmatmul.mubr.f32.gmra.mrb[0].mxu0 %v1243
    %v1311 = vpop.f32.mrb[0].mxu0
    %v1312 = vadd.f32 0.0, %v1311
    %v1313 = vpop.f32.mrb[0].mxu0
    %1314 = vdwg.mxu0
    %v1316 = vrot.slane %v1312, 4
    %v1318 = vadd.f32 %v159, %v1316
    %v1319 = vtanh.pop %v1318
    %v1321 = vrot.slane %v1319, 4
    %v1323 = vadd.f32 %v779, %v1321
    %1324 = vset.pattern.permute.xlu0 3
    %1325 = vperm.xlu0 %1324, %v168
    %v1326 = vpop.permute.xlu0 %1325
    %v1328 = vsel %vm169, %v1321, 0
    %1330 = vmatprep.subr.mxu0 0.0
    %1331 = vmatpush1.msra.mxu0 %v51
    %1332 = vmatprep.subr.mxu0 0.0
    %1333 = vmatpush1.msra.mxu0 %v52
    %1334 = vmatprep.subr.mxu0 0.0
    %1335 = vmatpush1.msra.mxu0 %v53
    %1336 = vmatprep.subr.mxu0 0.0
    %1337 = vmatpush1.msra.mxu0 %v54
    %1338 = vmatprep.subr.mxu0 0.0
    %1339 = vmatpush1.msra.mxu0 0.0
    %1340 = vmatprep.subr.mxu0 0.0
    %1341 = vmatpush1.msra.mxu0 0.0
    %1342 = vmatprep.subr.mxu0 0.0
    %1343 = vmatpush1.msra.mxu0 0.0
    %1344 = vmatprep.subr.mxu0 0.0
    %1345 = vmatpush1.msra.mxu0 0.0
    %1346 = vmatprep.subr.mxu0 0.0
    %1347 = vmatpush1.msra.mxu0 0.0
    %1348 = vmatprep.subr.mxu0 0.0
    %1349 = vmatpush1.msra.mxu0 0.0
    %1350 = vmatprep.subr.mxu0 0.0
    %1351 = vmatpush1.msra.mxu0 0.0
    %1352 = vmatprep.subr.mxu0 0.0
    %1353 = vmatpush1.msra.mxu0 0.0
    %1354 = vmatprep.subr.mxu0 0.0
    %1355 = vmatpush1.msra.mxu0 0.0
    %1356 = vmatprep.subr.mxu0 0.0
    %1357 = vmatpush1.msra.mxu0 0.0
    %1358 = vmatprep.subr.mxu0 0.0
    %1359 = vmatpush1.msra.mxu0 0.0
    %1360 = vmatprep.subr.mxu0 0.0
    %1361 = vmatpush1.msra.mxu0 0.0
    %1362 = vmatprep.subr.mxu0 0.0
    %1363 = vmatpush1.msra.mxu0 0.0
    %1364 = vmatprep.subr.mxu0 0.0
    %1365 = vmatpush1.msra.mxu0 0.0
    %1366 = vmatprep.subr.mxu0 0.0
    %1367 = vmatpush1.msra.mxu0 0.0
    %1368 = vmatprep.subr.mxu0 0.0
    %1369 = vmatpush1.msra.mxu0 0.0
    %1370 = vmatprep.subr.mxu0 0.0
    %1371 = vmatpush1.msra.mxu0 0.0
    %1372 = vmatprep.subr.mxu0 0.0
    %1373 = vmatpush1.msra.mxu0 0.0
    %1374 = vmatprep.subr.mxu0 0.0
    %1375 = vmatpush1.msra.mxu0 0.0
    %1376 = vmatprep.subr.mxu0 0.0
    %1377 = vmatpush1.msra.mxu0 0.0
    %1378 = vmatprep.subr.mxu0 0.0
    %1379 = vmatpush1.msra.mxu0 0.0
    %1380 = vmatprep.subr.mxu0 0.0
    %1381 = vmatpush1.msra.mxu0 0.0
    %1382 = vmatprep.subr.mxu0 0.0
    %1383 = vmatpush1.msra.mxu0 0.0
    %1384 = vmatprep.subr.mxu0 0.0
    %1385 = vmatpush1.msra.mxu0 0.0
    %1386 = vmatprep.subr.mxu0 0.0
    %1387 = vmatpush1.msra.mxu0 0.0
    %1388 = vmatprep.subr.mxu0 0.0
    %1389 = vmatpush1.msra.mxu0 0.0
    %1390 = vmatprep.subr.mxu0 0.0
    %1391 = vmatpush1.msra.mxu0 0.0
    %1392 = vmatprep.subr.mxu0 0.0
    %1393 = vmatpush1.msra.mxu0 0.0
    %1394 = vmatprep.mubr.f32.mxu0 0.0
    %1395 = vmatmul.mubr.f32.gmra.mrb[0].mxu0 %v1328
    %v1396 = vpop.f32.mrb[0].mxu0
    %v1397 = vadd.f32 %v64, %v1396
    %v1398 = vpop.f32.mrb[0].mxu0
    %1399 = vdwg.mxu0
    %v1400 = vmax.f32 %v1397, 0.0
    %v1402 = vsel %vm169, %v1400, 0
    %1404 = vmatprep.subr.mxu0 0.0
    %1405 = vmatpush1.msra.mxu0 %v56
    %1406 = vmatprep.subr.mxu0 0.0
    %1407 = vmatpush1.msra.mxu0 %v57
    %1408 = vmatprep.subr.mxu0 0.0
    %1409 = vmatpush1.msra.mxu0 %v58
    %1410 = vmatprep.subr.mxu0 0.0
    %1411 = vmatpush1.msra.mxu0 %v59
    %1412 = vmatprep.subr.mxu0 0.0
    %1413 = vmatpush1.msra.mxu0 0.0
    %1414 = vmatprep.subr.mxu0 0.0
    %1415 = vmatpush1.msra.mxu0 0.0
    %1416 = vmatprep.subr.mxu0 0.0
    %1417 = vmatpush1.msra.mxu0 0.0
    %1418 = vmatprep.subr.mxu0 0.0
    %1419 = vmatpush1.msra.mxu0 0.0
    %1420 = vmatprep.subr.mxu0 0.0
    %1421 = vmatpush1.msra.mxu0 0.0
    %1422 = vmatprep.subr.mxu0 0.0
    %1423 = vmatpush1.msra.mxu0 0.0
    %1424 = vmatprep.subr.mxu0 0.0
    %1425 = vmatpush1.msra.mxu0 0.0
    %1426 = vmatprep.subr.mxu0 0.0
    %1427 = vmatpush1.msra.mxu0 0.0
    %1428 = vmatprep.subr.mxu0 0.0
    %1429 = vmatpush1.msra.mxu0 0.0
    %1430 = vmatprep.subr.mxu0 0.0
    %1431 = vmatpush1.msra.mxu0 0.0
    %1432 = vmatprep.subr.mxu0 0.0
    %1433 = vmatpush1.msra.mxu0 0.0
    %1434 = vmatprep.subr.mxu0 0.0
    %1435 = vmatpush1.msra.mxu0 0.0
    %1436 = vmatprep.subr.mxu0 0.0
    %1437 = vmatpush1.msra.mxu0 0.0
    %1438 = vmatprep.subr.mxu0 0.0
    %1439 = vmatpush1.msra.mxu0 0.0
    %1440 = vmatprep.subr.mxu0 0.0
    %1441 = vmatpush1.msra.mxu0 0.0
    %1442 = vmatprep.subr.mxu0 0.0
    %1443 = vmatpush1.msra.mxu0 0.0
    %1444 = vmatprep.subr.mxu0 0.0
    %1445 = vmatpush1.msra.mxu0 0.0
    %1446 = vmatprep.subr.mxu0 0.0
    %1447 = vmatpush1.msra.mxu0 0.0
    %1448 = vmatprep.subr.mxu0 0.0
    %1449 = vmatpush1.msra.mxu0 0.0
    %1450 = vmatprep.subr.mxu0 0.0
    %1451 = vmatpush1.msra.mxu0 0.0
    %1452 = vmatprep.subr.mxu0 0.0
    %1453 = vmatpush1.msra.mxu0 0.0
    %1454 = vmatprep.subr.mxu0 0.0
    %1455 = vmatpush1.msra.mxu0 0.0
    %1456 = vmatprep.subr.mxu0 0.0
    %1457 = vmatpush1.msra.mxu0 0.0
    %1458 = vmatprep.subr.mxu0 0.0
    %1459 = vmatpush1.msra.mxu0 0.0
    %1460 = vmatprep.subr.mxu0 0.0
    %1461 = vmatpush1.msra.mxu0 0.0
    %1462 = vmatprep.subr.mxu0 0.0
    %1463 = vmatpush1.msra.mxu0 0.0
    %1464 = vmatprep.subr.mxu0 0.0
    %1465 = vmatpush1.msra.mxu0 0.0
    %1466 = vmatprep.subr.mxu0 0.0
    %1467 = vmatpush1.msra.mxu0 0.0
    %1468 = vmatprep.mubr.f32.mxu0 0.0
    %1469 = vmatmul.mubr.f32.gmra.mrb[0].mxu0 %v1402
    %v1470 = vpop.f32.mrb[0].mxu0
    %v1471 = vadd.f32 %v69, %v1470
    %v1472 = vpop.f32.mrb[0].mxu0
    %1473 = vdwg.mxu0
    %v1474 = vmul.f32 %v1471, %v1326
    %v1476 = vrot.slane %v1474, 4
    %v1478 = vadd.f32 %v1319, %v1476
    %v1480 = vrot.slane %v1478, 4
    %v1481 = vsel %vm169, %v1480, 0
    %1483 = vmatprep.subr.mxu0 0.0
    %1484 = vmatpush1.msra.mxu0 %v51
    %1485 = vmatprep.subr.mxu0 0.0
    %1486 = vmatpush1.msra.mxu0 %v52
    %1487 = vmatprep.subr.mxu0 0.0
    %1488 = vmatpush1.msra.mxu0 %v53
    %1489 = vmatprep.subr.mxu0 0.0
    %1490 = vmatpush1.msra.mxu0 %v54
    %1491 = vmatprep.subr.mxu0 0.0
    %1492 = vmatpush1.msra.mxu0 0.0
    %1493 = vmatprep.subr.mxu0 0.0
    %1494 = vmatpush1.msra.mxu0 0.0
    %1495 = vmatprep.subr.mxu0 0.0
    %1496 = vmatpush1.msra.mxu0 0.0
    %1497 = vmatprep.subr.mxu0 0.0
    %1498 = vmatpush1.msra.mxu0 0.0
    %1499 = vmatprep.subr.mxu0 0.0
    %1500 = vmatpush1.msra.mxu0 0.0
    %1501 = vmatprep.subr.mxu0 0.0
    %1502 = vmatpush1.msra.mxu0 0.0
    %1503 = vmatprep.subr.mxu0 0.0
    %1504 = vmatpush1.msra.mxu0 0.0
    %1505 = vmatprep.subr.mxu0 0.0
    %1506 = vmatpush1.msra.mxu0 0.0
    %1507 = vmatprep.subr.mxu0 0.0
    %1508 = vmatpush1.msra.mxu0 0.0
    %1509 = vmatprep.subr.mxu0 0.0
    %1510 = vmatpush1.msra.mxu0 0.0
    %1511 = vmatprep.subr.mxu0 0.0
    %1512 = vmatpush1.msra.mxu0 0.0
    %1513 = vmatprep.subr.mxu0 0.0
    %1514 = vmatpush1.msra.mxu0 0.0
    %1515 = vmatprep.subr.mxu0 0.0
    %1516 = vmatpush1.msra.mxu0 0.0
    %1517 = vmatprep.subr.mxu0 0.0
    %1518 = vmatpush1.msra.mxu0 0.0
    %1519 = vmatprep.subr.mxu0 0.0
    %1520 = vmatpush1.msra.mxu0 0.0
    %1521 = vmatprep.subr.mxu0 0.0
    %1522 = vmatpush1.msra.mxu0 0.0
    %1523 = vmatprep.subr.mxu0 0.0
    %1524 = vmatpush1.msra.mxu0 0.0
    %1525 = vmatprep.subr.mxu0 0.0
    %1526 = vmatpush1.msra.mxu0 0.0
    %1527 = vmatprep.subr.mxu0 0.0
    %1528 = vmatpush1.msra.mxu0 0.0
    %1529 = vmatprep.subr.mxu0 0.0
    %1530 = vmatpush1.msra.mxu0 0.0
    %1531 = vmatprep.subr.mxu0 0.0
    %1532 = vmatpush1.msra.mxu0 0.0
    %1533 = vmatprep.subr.mxu0 0.0
    %1534 = vmatpush1.msra.mxu0 0.0
    %1535 = vmatprep.subr.mxu0 0.0
    %1536 = vmatpush1.msra.mxu0 0.0
    %1537 = vmatprep.subr.mxu0 0.0
    %1538 = vmatpush1.msra.mxu0 0.0
    %1539 = vmatprep.subr.mxu0 0.0
    %1540 = vmatpush1.msra.mxu0 0.0
    %1541 = vmatprep.subr.mxu0 0.0
    %1542 = vmatpush1.msra.mxu0 0.0
    %1543 = vmatprep.subr.mxu0 0.0
    %1544 = vmatpush1.msra.mxu0 0.0
    %1545 = vmatprep.subr.mxu0 0.0
    %1546 = vmatpush1.msra.mxu0 0.0
    %1547 = vmatprep.mubr.f32.mxu0 0.0
    %1548 = vmatmul.mubr.f32.gmra.mrb[0].mxu0 %v1481
    %v1549 = vpop.f32.mrb[0].mxu0
    %v1550 = vadd.f32 %v64, %v1549
    %v1551 = vpop.f32.mrb[0].mxu0
    %1552 = vdwg.mxu0
    %v1553 = vmax.f32 %v1550, 0.0
    %v1555 = vsel %vm169, %v1553, 0
    %1557 = vmatprep.subr.mxu0 0.0
    %1558 = vmatpush1.msra.mxu0 %v56
    %1559 = vmatprep.subr.mxu0 0.0
    %1560 = vmatpush1.msra.mxu0 %v57
    %1561 = vmatprep.subr.mxu0 0.0
    %1562 = vmatpush1.msra.mxu0 %v58
    %1563 = vmatprep.subr.mxu0 0.0
    %1564 = vmatpush1.msra.mxu0 %v59
    %1565 = vmatprep.subr.mxu0 0.0
    %1566 = vmatpush1.msra.mxu0 0.0
    %1567 = vmatprep.subr.mxu0 0.0
    %1568 = vmatpush1.msra.mxu0 0.0
    %1569 = vmatprep.subr.mxu0 0.0
    %1570 = vmatpush1.msra.mxu0 0.0
    %1571 = vmatprep.subr.mxu0 0.0
    %1572 = vmatpush1.msra.mxu0 0.0
    %1573 = vmatprep.subr.mxu0 0.0
    %1574 = vmatpush1.msra.mxu0 0.0
    %1575 = vmatprep.subr.mxu0 0.0
    %1576 = vmatpush1.msra.mxu0 0.0
    %1577 = vmatprep.subr.mxu0 0.0
    %1578 = vmatpush1.msra.mxu0 0.0
    %1579 = vmatprep.subr.mxu0 0.0
    %1580 = vmatpush1.msra.mxu0 0.0
    %1581 = vmatprep.subr.mxu0 0.0
    %1582 = vmatpush1.msra.mxu0 0.0
    %1583 = vmatprep.subr.mxu0 0.0
    %1584 = vmatpush1.msra.mxu0 0.0
    %1585 = vmatprep.subr.mxu0 0.0
    %1586 = vmatpush1.msra.mxu0 0.0
    %1587 = vmatprep.subr.mxu0 0.0
    %1588 = vmatpush1.msra.mxu0 0.0
    %1589 = vmatprep.subr.mxu0 0.0
    %1590 = vmatpush1.msra.mxu0 0.0
    %1591 = vmatprep.subr.mxu0 0.0
    %1592 = vmatpush1.msra.mxu0 0.0
    %1593 = vmatprep.subr.mxu0 0.0
    %1594 = vmatpush1.msra.mxu0 0.0
    %1595 = vmatprep.subr.mxu0 0.0
    %1596 = vmatpush1.msra.mxu0 0.0
    %1597 = vmatprep.subr.mxu0 0.0
    %1598 = vmatpush1.msra.mxu0 0.0
    %1599 = vmatprep.subr.mxu0 0.0
    %1600 = vmatpush1.msra.mxu0 0.0
    %1601 = vmatprep.subr.mxu0 0.0
    %1602 = vmatpush1.msra.mxu0 0.0
    %1603 = vmatprep.subr.mxu0 0.0
    %1604 = vmatpush1.msra.mxu0 0.0
    %1605 = vmatprep.subr.mxu0 0.0
    %1606 = vmatpush1.msra.mxu0 0.0
    %1607 = vmatprep.subr.mxu0 0.0
    %1608 = vmatpush1.msra.mxu0 0.0
    %1609 = vmatprep.subr.mxu0 0.0
    %1610 = vmatpush1.msra.mxu0 0.0
    %1611 = vmatprep.subr.mxu0 0.0
    %1612 = vmatpush1.msra.mxu0 0.0
    %1613 = vmatprep.subr.mxu0 0.0
    %1614 = vmatpush1.msra.mxu0 0.0
    %1615 = vmatprep.subr.mxu0 0.0
    %1616 = vmatpush1.msra.mxu0 0.0
    %1617 = vmatprep.subr.mxu0 0.0
    %1618 = vmatpush1.msra.mxu0 0.0
    %1619 = vmatprep.subr.mxu0 0.0
    %1620 = vmatpush1.msra.mxu0 0.0
    %1621 = vmatprep.mubr.f32.mxu0 0.0
    %1622 = vmatmul.mubr.f32.gmra.mrb[0].mxu0 %v1555
    %v1623 = vpop.f32.mrb[0].mxu0
    %v1624 = vadd.f32 %v69, %v1623
    %v1625 = vpop.f32.mrb[0].mxu0
    %1626 = vdwg.mxu0
    %v1627 = vmul.f32 %v1624, %v1326
    %v1629 = vrot.slane %v1627, 4
    %v1631 = vadd.f32 %v1478, %v1629
    %v1633 = vrot.slane %v1631, 4
    %v1634 = vsel %vm169, %v1633, 0
    %1636 = vmatprep.subr.mxu0 0.0
    %1637 = vmatpush1.msra.mxu0 %v51
    %1638 = vmatprep.subr.mxu0 0.0
    %1639 = vmatpush1.msra.mxu0 %v52
    %1640 = vmatprep.subr.mxu0 0.0
    %1641 = vmatpush1.msra.mxu0 %v53
    %1642 = vmatprep.subr.mxu0 0.0
    %1643 = vmatpush1.msra.mxu0 %v54
    %1644 = vmatprep.subr.mxu0 0.0
    %1645 = vmatpush1.msra.mxu0 0.0
    %1646 = vmatprep.subr.mxu0 0.0
    %1647 = vmatpush1.msra.mxu0 0.0
    %1648 = vmatprep.subr.mxu0 0.0
    %1649 = vmatpush1.msra.mxu0 0.0
    %1650 = vmatprep.subr.mxu0 0.0
    %1651 = vmatpush1.msra.mxu0 0.0
    %1652 = vmatprep.subr.mxu0 0.0
    %1653 = vmatpush1.msra.mxu0 0.0
    %1654 = vmatprep.subr.mxu0 0.0
    %1655 = vmatpush1.msra.mxu0 0.0
    %1656 = vmatprep.subr.mxu0 0.0
    %1657 = vmatpush1.msra.mxu0 0.0
    %1658 = vmatprep.subr.mxu0 0.0
    %1659 = vmatpush1.msra.mxu0 0.0
    %1660 = vmatprep.subr.mxu0 0.0
    %1661 = vmatpush1.msra.mxu0 0.0
    %1662 = vmatprep.subr.mxu0 0.0
    %1663 = vmatpush1.msra.mxu0 0.0
    %1664 = vmatprep.subr.mxu0 0.0
    %1665 = vmatpush1.msra.mxu0 0.0
    %1666 = vmatprep.subr.mxu0 0.0
    %1667 = vmatpush1.msra.mxu0 0.0
    %1668 = vmatprep.subr.mxu0 0.0
    %1669 = vmatpush1.msra.mxu0 0.0
    %1670 = vmatprep.subr.mxu0 0.0
    %1671 = vmatpush1.msra.mxu0 0.0
    %1672 = vmatprep.subr.mxu0 0.0
    %1673 = vmatpush1.msra.mxu0 0.0
    %1674 = vmatprep.subr.mxu0 0.0
    %1675 = vmatpush1.msra.mxu0 0.0
    %1676 = vmatprep.subr.mxu0 0.0
    %1677 = vmatpush1.msra.mxu0 0.0
    %1678 = vmatprep.subr.mxu0 0.0
    %1679 = vmatpush1.msra.mxu0 0.0
    %1680 = vmatprep.subr.mxu0 0.0
    %1681 = vmatpush1.msra.mxu0 0.0
    %1682 = vmatprep.subr.mxu0 0.0
    %1683 = vmatpush1.msra.mxu0 0.0
    %1684 = vmatprep.subr.mxu0 0.0
    %1685 = vmatpush1.msra.mxu0 0.0
    %1686 = vmatprep.subr.mxu0 0.0
    %1687 = vmatpush1.msra.mxu0 0.0
    %1688 = vmatprep.subr.mxu0 0.0
    %1689 = vmatpush1.msra.mxu0 0.0
    %1690 = vmatprep.subr.mxu0 0.0
    %1691 = vmatpush1.msra.mxu0 0.0
    %1692 = vmatprep.subr.mxu0 0.0
    %1693 = vmatpush1.msra.mxu0 0.0
    %1694 = vmatprep.subr.mxu0 0.0
    %1695 = vmatpush1.msra.mxu0 0.0
    %1696 = vmatprep.subr.mxu0 0.0
    %1697 = vmatpush1.msra.mxu0 0.0
    %1698 = vmatprep.subr.mxu0 0.0
    %1699 = vmatpush1.msra.mxu0 0.0
    %1700 = vmatprep.mubr.f32.mxu0 0.0
    %1701 = vmatmul.mubr.f32.gmra.mrb[0].mxu0 %v1634
    %v1702 = vpop.f32.mrb[0].mxu0
    %v1703 = vadd.f32 %v64, %v1702
    %v1704 = vpop.f32.mrb[0].mxu0
    %1705 = vdwg.mxu0
    %v1706 = vmax.f32 %v1703, 0.0
    %v1708 = vsel %vm169, %v1706, 0
    %1710 = vmatprep.subr.mxu0 0.0
    %1711 = vmatpush1.msra.mxu0 %v56
    %1712 = vmatprep.subr.mxu0 0.0
    %1713 = vmatpush1.msra.mxu0 %v57
    %1714 = vmatprep.subr.mxu0 0.0
    %1715 = vmatpush1.msra.mxu0 %v58
    %1716 = vmatprep.subr.mxu0 0.0
    %1717 = vmatpush1.msra.mxu0 %v59
    %1718 = vmatprep.subr.mxu0 0.0
    %1719 = vmatpush1.msra.mxu0 0.0
    %1720 = vmatprep.subr.mxu0 0.0
    %1721 = vmatpush1.msra.mxu0 0.0
    %1722 = vmatprep.subr.mxu0 0.0
    %1723 = vmatpush1.msra.mxu0 0.0
    %1724 = vmatprep.subr.mxu0 0.0
    %1725 = vmatpush1.msra.mxu0 0.0
    %1726 = vmatprep.subr.mxu0 0.0
    %1727 = vmatpush1.msra.mxu0 0.0
    %1728 = vmatprep.subr.mxu0 0.0
    %1729 = vmatpush1.msra.mxu0 0.0
    %1730 = vmatprep.subr.mxu0 0.0
    %1731 = vmatpush1.msra.mxu0 0.0
    %1732 = vmatprep.subr.mxu0 0.0
    %1733 = vmatpush1.msra.mxu0 0.0
    %1734 = vmatprep.subr.mxu0 0.0
    %1735 = vmatpush1.msra.mxu0 0.0
    %1736 = vmatprep.subr.mxu0 0.0
    %1737 = vmatpush1.msra.mxu0 0.0
    %1738 = vmatprep.subr.mxu0 0.0
    %1739 = vmatpush1.msra.mxu0 0.0
    %1740 = vmatprep.subr.mxu0 0.0
    %1741 = vmatpush1.msra.mxu0 0.0
    %1742 = vmatprep.subr.mxu0 0.0
    %1743 = vmatpush1.msra.mxu0 0.0
    %1744 = vmatprep.subr.mxu0 0.0
    %1745 = vmatpush1.msra.mxu0 0.0
    %1746 = vmatprep.subr.mxu0 0.0
    %1747 = vmatpush1.msra.mxu0 0.0
    %1748 = vmatprep.subr.mxu0 0.0
    %1749 = vmatpush1.msra.mxu0 0.0
    %1750 = vmatprep.subr.mxu0 0.0
    %1751 = vmatpush1.msra.mxu0 0.0
    %1752 = vmatprep.subr.mxu0 0.0
    %1753 = vmatpush1.msra.mxu0 0.0
    %1754 = vmatprep.subr.mxu0 0.0
    %1755 = vmatpush1.msra.mxu0 0.0
    %1756 = vmatprep.subr.mxu0 0.0
    %1757 = vmatpush1.msra.mxu0 0.0
    %1758 = vmatprep.subr.mxu0 0.0
    %1759 = vmatpush1.msra.mxu0 0.0
    %1760 = vmatprep.subr.mxu0 0.0
    %1761 = vmatpush1.msra.mxu0 0.0
    %1762 = vmatprep.subr.mxu0 0.0
    %1763 = vmatpush1.msra.mxu0 0.0
    %1764 = vmatprep.subr.mxu0 0.0
    %1765 = vmatpush1.msra.mxu0 0.0
    %1766 = vmatprep.subr.mxu0 0.0
    %1767 = vmatpush1.msra.mxu0 0.0
    %1768 = vmatprep.subr.mxu0 0.0
    %1769 = vmatpush1.msra.mxu0 0.0
    %1770 = vmatprep.subr.mxu0 0.0
    %1771 = vmatpush1.msra.mxu0 0.0
    %1772 = vmatprep.subr.mxu0 0.0
    %1773 = vmatpush1.msra.mxu0 0.0
    %1774 = vmatprep.mubr.f32.mxu0 0.0
    %1775 = vmatmul.mubr.f32.gmra.mrb[0].mxu0 %v1708
    %v1776 = vpop.f32.mrb[0].mxu0
    %v1777 = vadd.f32 %v69, %v1776
    %v1778 = vpop.f32.mrb[0].mxu0
    %1779 = vdwg.mxu0
    %v1780 = vmul.f32 %v1777, %v1326
    %v1782 = vrot.slane %v1780, 4
    %v1784 = vadd.f32 %v1631, %v1782
    %v1786 = vrot.slane %v1784, 4
    %v1787 = vsel %vm169, %v1786, 0
    %1789 = vmatprep.subr.mxu0 0.0
    %1790 = vmatpush1.msra.mxu0 %v47
    %1791 = vmatprep.subr.mxu0 0.0
    %1792 = vmatpush1.msra.mxu0 %v48
    %1793 = vmatprep.subr.mxu0 0.0
    %1794 = vmatpush1.msra.mxu0 %v49
    %1795 = vmatprep.subr.mxu0 0.0
    %1796 = vmatpush1.msra.mxu0 %v50
    %1797 = vmatprep.subr.mxu0 0.0
    %1798 = vmatpush1.msra.mxu0 0.0
    %1799 = vmatprep.subr.mxu0 0.0
    %1800 = vmatpush1.msra.mxu0 0.0
    %1801 = vmatprep.subr.mxu0 0.0
    %1802 = vmatpush1.msra.mxu0 0.0
    %1803 = vmatprep.subr.mxu0 0.0
    %1804 = vmatpush1.msra.mxu0 0.0
    %1805 = vmatprep.subr.mxu0 0.0
    %1806 = vmatpush1.msra.mxu0 0.0
    %1807 = vmatprep.subr.mxu0 0.0
    %1808 = vmatpush1.msra.mxu0 0.0
    %1809 = vmatprep.subr.mxu0 0.0
    %1810 = vmatpush1.msra.mxu0 0.0
    %1811 = vmatprep.subr.mxu0 0.0
    %1812 = vmatpush1.msra.mxu0 0.0
    %1813 = vmatprep.subr.mxu0 0.0
    %1814 = vmatpush1.msra.mxu0 0.0
    %1815 = vmatprep.subr.mxu0 0.0
    %1816 = vmatpush1.msra.mxu0 0.0
    %1817 = vmatprep.subr.mxu0 0.0
    %1818 = vmatpush1.msra.mxu0 0.0
    %1819 = vmatprep.subr.mxu0 0.0
    %1820 = vmatpush1.msra.mxu0 0.0
    %1821 = vmatprep.subr.mxu0 0.0
    %1822 = vmatpush1.msra.mxu0 0.0
    %1823 = vmatprep.subr.mxu0 0.0
    %1824 = vmatpush1.msra.mxu0 0.0
    %1825 = vmatprep.subr.mxu0 0.0
    %1826 = vmatpush1.msra.mxu0 0.0
    %1827 = vmatprep.subr.mxu0 0.0
    %1828 = vmatpush1.msra.mxu0 0.0
    %1829 = vmatprep.subr.mxu0 0.0
    %1830 = vmatpush1.msra.mxu0 0.0
    %1831 = vmatprep.subr.mxu0 0.0
    %1832 = vmatpush1.msra.mxu0 0.0
    %1833 = vmatprep.subr.mxu0 0.0
    %1834 = vmatpush1.msra.mxu0 0.0
    %1835 = vmatprep.subr.mxu0 0.0
    %1836 = vmatpush1.msra.mxu0 0.0
    %1837 = vmatprep.subr.mxu0 0.0
    %1838 = vmatpush1.msra.mxu0 0.0
    %1839 = vmatprep.subr.mxu0 0.0
    %1840 = vmatpush1.msra.mxu0 0.0
    %1841 = vmatprep.subr.mxu0 0.0
    %1842 = vmatpush1.msra.mxu0 0.0
    %1843 = vmatprep.subr.mxu0 0.0
    %1844 = vmatpush1.msra.mxu0 0.0
    %1845 = vmatprep.subr.mxu0 0.0
    %1846 = vmatpush1.msra.mxu0 0.0
    %1847 = vmatprep.subr.mxu0 0.0
    %1848 = vmatpush1.msra.mxu0 0.0
    %1849 = vmatprep.subr.mxu0 0.0
    %1850 = vmatpush1.msra.mxu0 0.0
    %1851 = vmatprep.subr.mxu0 0.0
    %1852 = vmatpush1.msra.mxu0 0.0
    %1853 = vmatprep.mubr.f32.mxu0 0.0
    %1854 = vmatmul.mubr.f32.gmra.mrb[0].mxu0 %v1787
    %v1855 = vpop.f32.mrb[0].mxu0
    %v1856 = vadd.f32 0.0, %v1855
    %v1857 = vpop.f32.mrb[0].mxu0
    %1858 = vdwg.mxu0
    %v1860 = vrot.slane %v1856, 2
    %v1862 = vadd.f32 %v159, %v1860
    %v1863 = vtanh.pop %v1862
    %v1865 = vrot.slane %v1863, 6
    %v1867 = vadd.f32 %v1323, %v1865
    %1868 = vset.pattern.permute.xlu0 4
    %1869 = vperm.xlu0 %1868, %v168
    %v1870 = vpop.permute.xlu0 %1869
    %v1872 = vsel %vm169, %v1865, 0
    %1874 = vmatprep.subr.mxu0 0.0
    %1875 = vmatpush1.msra.mxu0 %v51
    %1876 = vmatprep.subr.mxu0 0.0
    %1877 = vmatpush1.msra.mxu0 %v52
    %1878 = vmatprep.subr.mxu0 0.0
    %1879 = vmatpush1.msra.mxu0 %v53
    %1880 = vmatprep.subr.mxu0 0.0
    %1881 = vmatpush1.msra.mxu0 %v54
    %1882 = vmatprep.subr.mxu0 0.0
    %1883 = vmatpush1.msra.mxu0 0.0
    %1884 = vmatprep.subr.mxu0 0.0
    %1885 = vmatpush1.msra.mxu0 0.0
    %1886 = vmatprep.subr.mxu0 0.0
    %1887 = vmatpush1.msra.mxu0 0.0
    %1888 = vmatprep.subr.mxu0 0.0
    %1889 = vmatpush1.msra.mxu0 0.0
    %1890 = vmatprep.subr.mxu0 0.0
    %1891 = vmatpush1.msra.mxu0 0.0
    %1892 = vmatprep.subr.mxu0 0.0
    %1893 = vmatpush1.msra.mxu0 0.0
    %1894 = vmatprep.subr.mxu0 0.0
    %1895 = vmatpush1.msra.mxu0 0.0
    %1896 = vmatprep.subr.mxu0 0.0
    %1897 = vmatpush1.msra.mxu0 0.0
    %1898 = vmatprep.subr.mxu0 0.0
    %1899 = vmatpush1.msra.mxu0 0.0
    %1900 = vmatprep.subr.mxu0 0.0
    %1901 = vmatpush1.msra.mxu0 0.0
    %1902 = vmatprep.subr.mxu0 0.0
    %1903 = vmatpush1.msra.mxu0 0.0
    %1904 = vmatprep.subr.mxu0 0.0
    %1905 = vmatpush1.msra.mxu0 0.0
    %1906 = vmatprep.subr.mxu0 0.0
    %1907 = vmatpush1.msra.mxu0 0.0
    %1908 = vmatprep.subr.mxu0 0.0
    %1909 = vmatpush1.msra.mxu0 0.0
    %1910 = vmatprep.subr.mxu0 0.0
    %1911 = vmatpush1.msra.mxu0 0.0
    %1912 = vmatprep.subr.mxu0 0.0
    %1913 = vmatpush1.msra.mxu0 0.0
    %1914 = vmatprep.subr.mxu0 0.0
    %1915 = vmatpush1.msra.mxu0 0.0
    %1916 = vmatprep.subr.mxu0 0.0
    %1917 = vmatpush1.msra.mxu0 0.0
    %1918 = vmatprep.subr.mxu0 0.0
    %1919 = vmatpush1.msra.mxu0 0.0
    %1920 = vmatprep.subr.mxu0 0.0
    %1921 = vmatpush1.msra.mxu0 0.0
    %1922 = vmatprep.subr.mxu0 0.0
    %1923 = vmatpush1.msra.mxu0 0.0
    %1924 = vmatprep.subr.mxu0 0.0
    %1925 = vmatpush1.msra.mxu0 0.0
    %1926 = vmatprep.subr.mxu0 0.0
    %1927 = vmatpush1.msra.mxu0 0.0
    %1928 = vmatprep.subr.mxu0 0.0
    %1929 = vmatpush1.msra.mxu0 0.0
    %1930 = vmatprep.subr.mxu0 0.0
    %1931 = vmatpush1.msra.mxu0 0.0
    %1932 = vmatprep.subr.mxu0 0.0
    %1933 = vmatpush1.msra.mxu0 0.0
    %1934 = vmatprep.subr.mxu0 0.0
    %1935 = vmatpush1.msra.mxu0 0.0
    %1936 = vmatprep.subr.mxu0 0.0
    %1937 = vmatpush1.msra.mxu0 0.0
    %1938 = vmatprep.mubr.f32.mxu0 0.0
    %1939 = vmatmul.mubr.f32.gmra.mrb[0].mxu0 %v1872
    %v1940 = vpop.f32.mrb[0].mxu0
    %v1941 = vadd.f32 %v64, %v1940
    %v1942 = vpop.f32.mrb[0].mxu0
    %1943 = vdwg.mxu0
    %v1944 = vmax.f32 %v1941, 0.0
    %v1946 = vsel %vm169, %v1944, 0
    %1948 = vmatprep.subr.mxu0 0.0
    %1949 = vmatpush1.msra.mxu0 %v56
    %1950 = vmatprep.subr.mxu0 0.0
    %1951 = vmatpush1.msra.mxu0 %v57
    %1952 = vmatprep.subr.mxu0 0.0
    %1953 = vmatpush1.msra.mxu0 %v58
    %1954 = vmatprep.subr.mxu0 0.0
    %1955 = vmatpush1.msra.mxu0 %v59
    %1956 = vmatprep.subr.mxu0 0.0
    %1957 = vmatpush1.msra.mxu0 0.0
    %1958 = vmatprep.subr.mxu0 0.0
    %1959 = vmatpush1.msra.mxu0 0.0
    %1960 = vmatprep.subr.mxu0 0.0
    %1961 = vmatpush1.msra.mxu0 0.0
    %1962 = vmatprep.subr.mxu0 0.0
    %1963 = vmatpush1.msra.mxu0 0.0
    %1964 = vmatprep.subr.mxu0 0.0
    %1965 = vmatpush1.msra.mxu0 0.0
    %1966 = vmatprep.subr.mxu0 0.0
    %1967 = vmatpush1.msra.mxu0 0.0
    %1968 = vmatprep.subr.mxu0 0.0
    %1969 = vmatpush1.msra.mxu0 0.0
    %1970 = vmatprep.subr.mxu0 0.0
    %1971 = vmatpush1.msra.mxu0 0.0
    %1972 = vmatprep.subr.mxu0 0.0
    %1973 = vmatpush1.msra.mxu0 0.0
    %1974 = vmatprep.subr.mxu0 0.0
    %1975 = vmatpush1.msra.mxu0 0.0
    %1976 = vmatprep.subr.mxu0 0.0
    %1977 = vmatpush1.msra.mxu0 0.0
    %1978 = vmatprep.subr.mxu0 0.0
    %1979 = vmatpush1.msra.mxu0 0.0
    %1980 = vmatprep.subr.mxu0 0.0
    %1981 = vmatpush1.msra.mxu0 0.0
    %1982 = vmatprep.subr.mxu0 0.0
    %1983 = vmatpush1.msra.mxu0 0.0
    %1984 = vmatprep.subr.mxu0 0.0
    %1985 = vmatpush1.msra.mxu0 0.0
    %1986 = vmatprep.subr.mxu0 0.0
    %1987 = vmatpush1.msra.mxu0 0.0
    %1988 = vmatprep.subr.mxu0 0.0
    %1989 = vmatpush1.msra.mxu0 0.0
    %1990 = vmatprep.subr.mxu0 0.0
    %1991 = vmatpush1.msra.mxu0 0.0
    %1992 = vmatprep.subr.mxu0 0.0
    %1993 = vmatpush1.msra.mxu0 0.0
    %1994 = vmatprep.subr.mxu0 0.0
    %1995 = vmatpush1.msra.mxu0 0.0
    %1996 = vmatprep.subr.mxu0 0.0
    %1997 = vmatpush1.msra.mxu0 0.0
    %1998 = vmatprep.subr.mxu0 0.0
    %1999 = vmatpush1.msra.mxu0 0.0
    %2000 = vmatprep.subr.mxu0 0.0
    %2001 = vmatpush1.msra.mxu0 0.0
    %2002 = vmatprep.subr.mxu0 0.0
    %2003 = vmatpush1.msra.mxu0 0.0
    %2004 = vmatprep.subr.mxu0 0.0
    %2005 = vmatpush1.msra.mxu0 0.0
    %2006 = vmatprep.subr.mxu0 0.0
    %2007 = vmatpush1.msra.mxu0 0.0
    %2008 = vmatprep.subr.mxu0 0.0
    %2009 = vmatpush1.msra.mxu0 0.0
    %2010 = vmatprep.subr.mxu0 0.0
    %2011 = vmatpush1.msra.mxu0 0.0
    %2012 = vmatprep.mubr.f32.mxu0 0.0
    %2013 = vmatmul.mubr.f32.gmra.mrb[0].mxu0 %v1946
    %v2014 = vpop.f32.mrb[0].mxu0
    %v2015 = vadd.f32 %v69, %v2014
    %v2016 = vpop.f32.mrb[0].mxu0
    %2017 = vdwg.mxu0
    %v2018 = vmul.f32 %v2015, %v1870
    %v2020 = vrot.slane %v2018, 2
    %v2022 = vadd.f32 %v1863, %v2020
    %v2024 = vrot.slane %v2022, 6
    %v2025 = vsel %vm169, %v2024, 0
    %2027 = vmatprep.subr.mxu0 0.0
    %2028 = vmatpush1.msra.mxu0 %v51
    %2029 = vmatprep.subr.mxu0 0.0
    %2030 = vmatpush1.msra.mxu0 %v52
    %2031 = vmatprep.subr.mxu0 0.0
    %2032 = vmatpush1.msra.mxu0 %v53
    %2033 = vmatprep.subr.mxu0 0.0
    %2034 = vmatpush1.msra.mxu0 %v54
    %2035 = vmatprep.subr.mxu0 0.0
    %2036 = vmatpush1.msra.mxu0 0.0
    %2037 = vmatprep.subr.mxu0 0.0
    %2038 = vmatpush1.msra.mxu0 0.0
    %2039 = vmatprep.subr.mxu0 0.0
    %2040 = vmatpush1.msra.mxu0 0.0
    %2041 = vmatprep.subr.mxu0 0.0
    %2042 = vmatpush1.msra.mxu0 0.0
    %2043 = vmatprep.subr.mxu0 0.0
    %2044 = vmatpush1.msra.mxu0 0.0
    %2045 = vmatprep.subr.mxu0 0.0
    %2046 = vmatpush1.msra.mxu0 0.0
    %2047 = vmatprep.subr.mxu0 0.0
    %2048 = vmatpush1.msra.mxu0 0.0
    %2049 = vmatprep.subr.mxu0 0.0
    %2050 = vmatpush1.msra.mxu0 0.0
    %2051 = vmatprep.subr.mxu0 0.0
    %2052 = vmatpush1.msra.mxu0 0.0
    %2053 = vmatprep.subr.mxu0 0.0
    %2054 = vmatpush1.msra.mxu0 0.0
    %2055 = vmatprep.subr.mxu0 0.0
    %2056 = vmatpush1.msra.mxu0 0.0
    %2057 = vmatprep.subr.mxu0 0.0
    %2058 = vmatpush1.msra.mxu0 0.0
    %2059 = vmatprep.subr.mxu0 0.0
    %2060 = vmatpush1.msra.mxu0 0.0
    %2061 = vmatprep.subr.mxu0 0.0
    %2062 = vmatpush1.msra.mxu0 0.0
    %2063 = vmatprep.subr.mxu0 0.0
    %2064 = vmatpush1.msra.mxu0 0.0
    %2065 = vmatprep.subr.mxu0 0.0
    %2066 = vmatpush1.msra.mxu0 0.0
    %2067 = vmatprep.subr.mxu0 0.0
    %2068 = vmatpush1.msra.mxu0 0.0
    %2069 = vmatprep.subr.mxu0 0.0
    %2070 = vmatpush1.msra.mxu0 0.0
    %2071 = vmatprep.subr.mxu0 0.0
    %2072 = vmatpush1.msra.mxu0 0.0
    %2073 = vmatprep.subr.mxu0 0.0
    %2074 = vmatpush1.msra.mxu0 0.0
    %2075 = vmatprep.subr.mxu0 0.0
    %2076 = vmatpush1.msra.mxu0 0.0
    %2077 = vmatprep.subr.mxu0 0.0
    %2078 = vmatpush1.msra.mxu0 0.0
    %2079 = vmatprep.subr.mxu0 0.0
    %2080 = vmatpush1.msra.mxu0 0.0
    %2081 = vmatprep.subr.mxu0 0.0
    %2082 = vmatpush1.msra.mxu0 0.0
    %2083 = vmatprep.subr.mxu0 0.0
    %2084 = vmatpush1.msra.mxu0 0.0
    %2085 = vmatprep.subr.mxu0 0.0
    %2086 = vmatpush1.msra.mxu0 0.0
    %2087 = vmatprep.subr.mxu0 0.0
    %2088 = vmatpush1.msra.mxu0 0.0
    %2089 = vmatprep.subr.mxu0 0.0
    %2090 = vmatpush1.msra.mxu0 0.0
    %2091 = vmatprep.mubr.f32.mxu0 0.0
    %2092 = vmatmul.mubr.f32.gmra.mrb[0].mxu0 %v2025
    %v2093 = vpop.f32.mrb[0].mxu0
    %v2094 = vadd.f32 %v64, %v2093
    %v2095 = vpop.f32.mrb[0].mxu0
    %2096 = vdwg.mxu0
    %v2097 = vmax.f32 %v2094, 0.0
    %v2099 = vsel %vm169, %v2097, 0
    %2101 = vmatprep.subr.mxu0 0.0
    %2102 = vmatpush1.msra.mxu0 %v56
    %2103 = vmatprep.subr.mxu0 0.0
    %2104 = vmatpush1.msra.mxu0 %v57
    %2105 = vmatprep.subr.mxu0 0.0
    %2106 = vmatpush1.msra.mxu0 %v58
    %2107 = vmatprep.subr.mxu0 0.0
    %2108 = vmatpush1.msra.mxu0 %v59
    %2109 = vmatprep.subr.mxu0 0.0
    %2110 = vmatpush1.msra.mxu0 0.0
    %2111 = vmatprep.subr.mxu0 0.0
    %2112 = vmatpush1.msra.mxu0 0.0
    %2113 = vmatprep.subr.mxu0 0.0
    %2114 = vmatpush1.msra.mxu0 0.0
    %2115 = vmatprep.subr.mxu0 0.0
    %2116 = vmatpush1.msra.mxu0 0.0
    %2117 = vmatprep.subr.mxu0 0.0
    %2118 = vmatpush1.msra.mxu0 0.0
    %2119 = vmatprep.subr.mxu0 0.0
    %2120 = vmatpush1.msra.mxu0 0.0
    %2121 = vmatprep.subr.mxu0 0.0
    %2122 = vmatpush1.msra.mxu0 0.0
    %2123 = vmatprep.subr.mxu0 0.0
    %2124 = vmatpush1.msra.mxu0 0.0
    %2125 = vmatprep.subr.mxu0 0.0
    %2126 = vmatpush1.msra.mxu0 0.0
    %2127 = vmatprep.subr.mxu0 0.0
    %2128 = vmatpush1.msra.mxu0 0.0
    %2129 = vmatprep.subr.mxu0 0.0
    %2130 = vmatpush1.msra.mxu0 0.0
    %2131 = vmatprep.subr.mxu0 0.0
    %2132 = vmatpush1.msra.mxu0 0.0
    %2133 = vmatprep.subr.mxu0 0.0
    %2134 = vmatpush1.msra.mxu0 0.0
    %2135 = vmatprep.subr.mxu0 0.0
    %2136 = vmatpush1.msra.mxu0 0.0
    %2137 = vmatprep.subr.mxu0 0.0
    %2138 = vmatpush1.msra.mxu0 0.0
    %2139 = vmatprep.subr.mxu0 0.0
    %2140 = vmatpush1.msra.mxu0 0.0
    %2141 = vmatprep.subr.mxu0 0.0
    %2142 = vmatpush1.msra.mxu0 0.0
    %2143 = vmatprep.subr.mxu0 0.0
    %2144 = vmatpush1.msra.mxu0 0.0
    %2145 = vmatprep.subr.mxu0 0.0
    %2146 = vmatpush1.msra.mxu0 0.0
    %2147 = vmatprep.subr.mxu0 0.0
    %2148 = vmatpush1.msra.mxu0 0.0
    %2149 = vmatprep.subr.mxu0 0.0
    %2150 = vmatpush1.msra.mxu0 0.0
    %2151 = vmatprep.subr.mxu0 0.0
    %2152 = vmatpush1.msra.mxu0 0.0
    %2153 = vmatprep.subr.mxu0 0.0
    %2154 = vmatpush1.msra.mxu0 0.0
    %2155 = vmatprep.subr.mxu0 0.0
    %2156 = vmatpush1.msra.mxu0 0.0
    %2157 = vmatprep.subr.mxu0 0.0
    %2158 = vmatpush1.msra.mxu0 0.0
    %2159 = vmatprep.subr.mxu0 0.0
    %2160 = vmatpush1.msra.mxu0 0.0
    %2161 = vmatprep.subr.mxu0 0.0
    %2162 = vmatpush1.msra.mxu0 0.0
    %2163 = vmatprep.subr.mxu0 0.0
    %2164 = vmatpush1.msra.mxu0 0.0
    %2165 = vmatprep.mubr.f32.mxu0 0.0
    %2166 = vmatmul.mubr.f32.gmra.mrb[0].mxu0 %v2099
    %v2167 = vpop.f32.mrb[0].mxu0
    %v2168 = vadd.f32 %v69, %v2167
    %v2169 = vpop.f32.mrb[0].mxu0
    %2170 = vdwg.mxu0
    %v2171 = vmul.f32 %v2168, %v1870
    %v2173 = vrot.slane %v2171, 2
    %v2175 = vadd.f32 %v2022, %v2173
    %v2177 = vrot.slane %v2175, 6
    %v2178 = vsel %vm169, %v2177, 0
    %2180 = vmatprep.subr.mxu0 0.0
    %2181 = vmatpush1.msra.mxu0 %v51
    %2182 = vmatprep.subr.mxu0 0.0
    %2183 = vmatpush1.msra.mxu0 %v52
    %2184 = vmatprep.subr.mxu0 0.0
    %2185 = vmatpush1.msra.mxu0 %v53
    %2186 = vmatprep.subr.mxu0 0.0
    %2187 = vmatpush1.msra.mxu0 %v54
    %2188 = vmatprep.subr.mxu0 0.0
    %2189 = vmatpush1.msra.mxu0 0.0
    %2190 = vmatprep.subr.mxu0 0.0
    %2191 = vmatpush1.msra.mxu0 0.0
    %2192 = vmatprep.subr.mxu0 0.0
    %2193 = vmatpush1.msra.mxu0 0.0
    %2194 = vmatprep.subr.mxu0 0.0
    %2195 = vmatpush1.msra.mxu0 0.0
    %2196 = vmatprep.subr.mxu0 0.0
    %2197 = vmatpush1.msra.mxu0 0.0
    %2198 = vmatprep.subr.mxu0 0.0
    %2199 = vmatpush1.msra.mxu0 0.0
    %2200 = vmatprep.subr.mxu0 0.0
    %2201 = vmatpush1.msra.mxu0 0.0
    %2202 = vmatprep.subr.mxu0 0.0
    %2203 = vmatpush1.msra.mxu0 0.0
    %2204 = vmatprep.subr.mxu0 0.0
    %2205 = vmatpush1.msra.mxu0 0.0
    %2206 = vmatprep.subr.mxu0 0.0
    %2207 = vmatpush1.msra.mxu0 0.0
    %2208 = vmatprep.subr.mxu0 0.0
    %2209 = vmatpush1.msra.mxu0 0.0
    %2210 = vmatprep.subr.mxu0 0.0
    %2211 = vmatpush1.msra.mxu0 0.0
    %2212 = vmatprep.subr.mxu0 0.0
    %2213 = vmatpush1.msra.mxu0 0.0
    %2214 = vmatprep.subr.mxu0 0.0
    %2215 = vmatpush1.msra.mxu0 0.0
    %2216 = vmatprep.subr.mxu0 0.0
    %2217 = vmatpush1.msra.mxu0 0.0
    %2218 = vmatprep.subr.mxu0 0.0
    %2219 = vmatpush1.msra.mxu0 0.0
    %2220 = vmatprep.subr.mxu0 0.0
    %2221 = vmatpush1.msra.mxu0 0.0
    %2222 = vmatprep.subr.mxu0 0.0
    %2223 = vmatpush1.msra.mxu0 0.0
    %2224 = vmatprep.subr.mxu0 0.0
    %2225 = vmatpush1.msra.mxu0 0.0
    %2226 = vmatprep.subr.mxu0 0.0
    %2227 = vmatpush1.msra.mxu0 0.0
    %2228 = vmatprep.subr.mxu0 0.0
    %2229 = vmatpush1.msra.mxu0 0.0
    %2230 = vmatprep.subr.mxu0 0.0
    %2231 = vmatpush1.msra.mxu0 0.0
    %2232 = vmatprep.subr.mxu0 0.0
    %2233 = vmatpush1.msra.mxu0 0.0
    %2234 = vmatprep.subr.mxu0 0.0
    %2235 = vmatpush1.msra.mxu0 0.0
    %2236 = vmatprep.subr.mxu0 0.0
    %2237 = vmatpush1.msra.mxu0 0.0
    %2238 = vmatprep.subr.mxu0 0.0
    %2239 = vmatpush1.msra.mxu0 0.0
    %2240 = vmatprep.subr.mxu0 0.0
    %2241 = vmatpush1.msra.mxu0 0.0
    %2242 = vmatprep.subr.mxu0 0.0
    %2243 = vmatpush1.msra.mxu0 0.0
    %2244 = vmatprep.mubr.f32.mxu0 0.0
    %2245 = vmatmul.mubr.f32.gmra.mrb[0].mxu0 %v2178
    %v2246 = vpop.f32.mrb[0].mxu0
    %v2247 = vadd.f32 %v64, %v2246
    %v2248 = vpop.f32.mrb[0].mxu0
    %2249 = vdwg.mxu0
    %v2250 = vmax.f32 %v2247, 0.0
    %v2252 = vsel %vm169, %v2250, 0
    %2254 = vmatprep.subr.mxu0 0.0
    %2255 = vmatpush1.msra.mxu0 %v56
    %2256 = vmatprep.subr.mxu0 0.0
    %2257 = vmatpush1.msra.mxu0 %v57
    %2258 = vmatprep.subr.mxu0 0.0
    %2259 = vmatpush1.msra.mxu0 %v58
    %2260 = vmatprep.subr.mxu0 0.0
    %2261 = vmatpush1.msra.mxu0 %v59
    %2262 = vmatprep.subr.mxu0 0.0
    %2263 = vmatpush1.msra.mxu0 0.0
    %2264 = vmatprep.subr.mxu0 0.0
    %2265 = vmatpush1.msra.mxu0 0.0
    %2266 = vmatprep.subr.mxu0 0.0
    %2267 = vmatpush1.msra.mxu0 0.0
    %2268 = vmatprep.subr.mxu0 0.0
    %2269 = vmatpush1.msra.mxu0 0.0
    %2270 = vmatprep.subr.mxu0 0.0
    %2271 = vmatpush1.msra.mxu0 0.0
    %2272 = vmatprep.subr.mxu0 0.0
    %2273 = vmatpush1.msra.mxu0 0.0
    %2274 = vmatprep.subr.mxu0 0.0
    %2275 = vmatpush1.msra.mxu0 0.0
    %2276 = vmatprep.subr.mxu0 0.0
    %2277 = vmatpush1.msra.mxu0 0.0
    %2278 = vmatprep.subr.mxu0 0.0
    %2279 = vmatpush1.msra.mxu0 0.0
    %2280 = vmatprep.subr.mxu0 0.0
    %2281 = vmatpush1.msra.mxu0 0.0
    %2282 = vmatprep.subr.mxu0 0.0
    %2283 = vmatpush1.msra.mxu0 0.0
    %2284 = vmatprep.subr.mxu0 0.0
    %2285 = vmatpush1.msra.mxu0 0.0
    %2286 = vmatprep.subr.mxu0 0.0
    %2287 = vmatpush1.msra.mxu0 0.0
    %2288 = vmatprep.subr.mxu0 0.0
    %2289 = vmatpush1.msra.mxu0 0.0
    %2290 = vmatprep.subr.mxu0 0.0
    %2291 = vmatpush1.msra.mxu0 0.0
    %2292 = vmatprep.subr.mxu0 0.0
    %2293 = vmatpush1.msra.mxu0 0.0
    %2294 = vmatprep.subr.mxu0 0.0
    %2295 = vmatpush1.msra.mxu0 0.0
    %2296 = vmatprep.subr.mxu0 0.0
    %2297 = vmatpush1.msra.mxu0 0.0
    %2298 = vmatprep.subr.mxu0 0.0
    %2299 = vmatpush1.msra.mxu0 0.0
    %2300 = vmatprep.subr.mxu0 0.0
    %2301 = vmatpush1.msra.mxu0 0.0
    %2302 = vmatprep.subr.mxu0 0.0
    %2303 = vmatpush1.msra.mxu0 0.0
    %2304 = vmatprep.subr.mxu0 0.0
    %2305 = vmatpush1.msra.mxu0 0.0
    %2306 = vmatprep.subr.mxu0 0.0
    %2307 = vmatpush1.msra.mxu0 0.0
    %2308 = vmatprep.subr.mxu0 0.0
    %2309 = vmatpush1.msra.mxu0 0.0
    %2310 = vmatprep.subr.mxu0 0.0
    %2311 = vmatpush1.msra.mxu0 0.0
    %2312 = vmatprep.subr.mxu0 0.0
    %2313 = vmatpush1.msra.mxu0 0.0
    %2314 = vmatprep.subr.mxu0 0.0
    %2315 = vmatpush1.msra.mxu0 0.0
    %2316 = vmatprep.subr.mxu0 0.0
    %2317 = vmatpush1.msra.mxu0 0.0
    %2318 = vmatprep.mubr.f32.mxu0 0.0
    %2319 = vmatmul.mubr.f32.gmra.mrb[0].mxu0 %v2252
    %v2320 = vpop.f32.mrb[0].mxu0
    %v2321 = vadd.f32 %v69, %v2320
    %v2322 = vpop.f32.mrb[0].mxu0
    %2323 = vdwg.mxu0
    %v2324 = vmul.f32 %v2321, %v1870
    %v2326 = vrot.slane %v2324, 2
    %v2328 = vadd.f32 %v2175, %v2326
    %v2330 = vrot.slane %v2328, 6
    %v2331 = vsel %vm169, %v2330, 0
    %2333 = vmatprep.subr.mxu0 0.0
    %2334 = vmatpush1.msra.mxu0 %v47
    %2335 = vmatprep.subr.mxu0 0.0
    %2336 = vmatpush1.msra.mxu0 %v48
    %2337 = vmatprep.subr.mxu0 0.0
    %2338 = vmatpush1.msra.mxu0 %v49
    %2339 = vmatprep.subr.mxu0 0.0
    %2340 = vmatpush1.msra.mxu0 %v50
    %2341 = vmatprep.subr.mxu0 0.0
    %2342 = vmatpush1.msra.mxu0 0.0
    %2343 = vmatprep.subr.mxu0 0.0
    %2344 = vmatpush1.msra.mxu0 0.0
    %2345 = vmatprep.subr.mxu0 0.0
    %2346 = vmatpush1.msra.mxu0 0.0
    %2347 = vmatprep.subr.mxu0 0.0
    %2348 = vmatpush1.msra.mxu0 0.0
    %2349 = vmatprep.subr.mxu0 0.0
    %2350 = vmatpush1.msra.mxu0 0.0
    %2351 = vmatprep.subr.mxu0 0.0
    %2352 = vmatpush1.msra.mxu0 0.0
    %2353 = vmatprep.subr.mxu0 0.0
    %2354 = vmatpush1.msra.mxu0 0.0
    %2355 = vmatprep.subr.mxu0 0.0
    %2356 = vmatpush1.msra.mxu0 0.0
    %2357 = vmatprep.subr.mxu0 0.0
    %2358 = vmatpush1.msra.mxu0 0.0
    %2359 = vmatprep.subr.mxu0 0.0
    %2360 = vmatpush1.msra.mxu0 0.0
    %2361 = vmatprep.subr.mxu0 0.0
    %2362 = vmatpush1.msra.mxu0 0.0
    %2363 = vmatprep.subr.mxu0 0.0
    %2364 = vmatpush1.msra.mxu0 0.0
    %2365 = vmatprep.subr.mxu0 0.0
    %2366 = vmatpush1.msra.mxu0 0.0
    %2367 = vmatprep.subr.mxu0 0.0
    %2368 = vmatpush1.msra.mxu0 0.0
    %2369 = vmatprep.subr.mxu0 0.0
    %2370 = vmatpush1.msra.mxu0 0.0
    %2371 = vmatprep.subr.mxu0 0.0
    %2372 = vmatpush1.msra.mxu0 0.0
    %2373 = vmatprep.subr.mxu0 0.0
    %2374 = vmatpush1.msra.mxu0 0.0
    %2375 = vmatprep.subr.mxu0 0.0
    %2376 = vmatpush1.msra.mxu0 0.0
    %2377 = vmatprep.subr.mxu0 0.0
    %2378 = vmatpush1.msra.mxu0 0.0
    %2379 = vmatprep.subr.mxu0 0.0
    %2380 = vmatpush1.msra.mxu0 0.0
    %2381 = vmatprep.subr.mxu0 0.0
    %2382 = vmatpush1.msra.mxu0 0.0
    %2383 = vmatprep.subr.mxu0 0.0
    %2384 = vmatpush1.msra.mxu0 0.0
    %2385 = vmatprep.subr.mxu0 0.0
    %2386 = vmatpush1.msra.mxu0 0.0
    %2387 = vmatprep.subr.mxu0 0.0
    %2388 = vmatpush1.msra.mxu0 0.0
    %2389 = vmatprep.subr.mxu0 0.0
    %2390 = vmatpush1.msra.mxu0 0.0
    %2391 = vmatprep.subr.mxu0 0.0
    %2392 = vmatpush1.msra.mxu0 0.0
    %2393 = vmatprep.subr.mxu0 0.0
    %2394 = vmatpush1.msra.mxu0 0.0
    %2395 = vmatprep.subr.mxu0 0.0
    %2396 = vmatpush1.msra.mxu0 0.0
    %2397 = vmatprep.mubr.f32.mxu0 0.0
    %2398 = vmatmul.mubr.f32.gmra.mrb[0].mxu0 %v2331
    %v2399 = vpop.f32.mrb[0].mxu0
    %v2400 = vadd.f32 0.0, %v2399
    %v2401 = vpop.f32.mrb[0].mxu0
    %2402 = vdwg.mxu0
    %v2403 = vadd.f32 %v164, %v2400
    %v2404 = vtanh.pop %v2403
    %v2405 = vadd.f32 %v1867, %v2404
    %2406 = vset.pattern.permute.xlu0 5
    %2407 = vperm.xlu0 %2406, %v168
    %v2408 = vpop.permute.xlu0 %2407
    %v2411 = vsel %vm169, %v2404, 0
    %2413 = vmatprep.subr.mxu0 0.0
    %2414 = vmatpush1.msra.mxu0 %v51
    %2415 = vmatprep.subr.mxu0 0.0
    %2416 = vmatpush1.msra.mxu0 %v52
    %2417 = vmatprep.subr.mxu0 0.0
    %2418 = vmatpush1.msra.mxu0 %v53
    %2419 = vmatprep.subr.mxu0 0.0
    %2420 = vmatpush1.msra.mxu0 %v54
    %2421 = vmatprep.subr.mxu0 0.0
    %2422 = vmatpush1.msra.mxu0 0.0
    %2423 = vmatprep.subr.mxu0 0.0
    %2424 = vmatpush1.msra.mxu0 0.0
    %2425 = vmatprep.subr.mxu0 0.0
    %2426 = vmatpush1.msra.mxu0 0.0
    %2427 = vmatprep.subr.mxu0 0.0
    %2428 = vmatpush1.msra.mxu0 0.0
    %2429 = vmatprep.subr.mxu0 0.0
    %2430 = vmatpush1.msra.mxu0 0.0
    %2431 = vmatprep.subr.mxu0 0.0
    %2432 = vmatpush1.msra.mxu0 0.0
    %2433 = vmatprep.subr.mxu0 0.0
    %2434 = vmatpush1.msra.mxu0 0.0
    %2435 = vmatprep.subr.mxu0 0.0
    %2436 = vmatpush1.msra.mxu0 0.0
    %2437 = vmatprep.subr.mxu0 0.0
    %2438 = vmatpush1.msra.mxu0 0.0
    %2439 = vmatprep.subr.mxu0 0.0
    %2440 = vmatpush1.msra.mxu0 0.0
    %2441 = vmatprep.subr.mxu0 0.0
    %2442 = vmatpush1.msra.mxu0 0.0
    %2443 = vmatprep.subr.mxu0 0.0
    %2444 = vmatpush1.msra.mxu0 0.0
    %2445 = vmatprep.subr.mxu0 0.0
    %2446 = vmatpush1.msra.mxu0 0.0
    %2447 = vmatprep.subr.mxu0 0.0
    %2448 = vmatpush1.msra.mxu0 0.0
    %2449 = vmatprep.subr.mxu0 0.0
    %2450 = vmatpush1.msra.mxu0 0.0
    %2451 = vmatprep.subr.mxu0 0.0
    %2452 = vmatpush1.msra.mxu0 0.0
    %2453 = vmatprep.subr.mxu0 0.0
    %2454 = vmatpush1.msra.mxu0 0.0
    %2455 = vmatprep.subr.mxu0 0.0
    %2456 = vmatpush1.msra.mxu0 0.0
    %2457 = vmatprep.subr.mxu0 0.0
    %2458 = vmatpush1.msra.mxu0 0.0
    %2459 = vmatprep.subr.mxu0 0.0
    %2460 = vmatpush1.msra.mxu0 0.0
    %2461 = vmatprep.subr.mxu0 0.0
    %2462 = vmatpush1.msra.mxu0 0.0
    %2463 = vmatprep.subr.mxu0 0.0
    %2464 = vmatpush1.msra.mxu0 0.0
    %2465 = vmatprep.subr.mxu0 0.0
    %2466 = vmatpush1.msra.mxu0 0.0
    %2467 = vmatprep.subr.mxu0 0.0
    %2468 = vmatpush1.msra.mxu0 0.0
    %2469 = vmatprep.subr.mxu0 0.0
    %2470 = vmatpush1.msra.mxu0 0.0
    %2471 = vmatprep.subr.mxu0 0.0
    %2472 = vmatpush1.msra.mxu0 0.0
    %2473 = vmatprep.subr.mxu0 0.0
    %2474 = vmatpush1.msra.mxu0 0.0
    %2475 = vmatprep.subr.mxu0 0.0
    %2476 = vmatpush1.msra.mxu0 0.0
    %2477 = vmatprep.mubr.f32.mxu0 0.0
    %2478 = vmatmul.mubr.f32.gmra.mrb[0].mxu0 %v2411
    %v2479 = vpop.f32.mrb[0].mxu0
    %v2480 = vadd.f32 %v64, %v2479
    %v2481 = vpop.f32.mrb[0].mxu0
    %2482 = vdwg.mxu0
    %v2483 = vmax.f32 %v2480, 0.0
    %v2485 = vsel %vm169, %v2483, 0
    %2487 = vmatprep.subr.mxu0 0.0
    %2488 = vmatpush1.msra.mxu0 %v56
    %2489 = vmatprep.subr.mxu0 0.0
    %2490 = vmatpush1.msra.mxu0 %v57
    %2491 = vmatprep.subr.mxu0 0.0
    %2492 = vmatpush1.msra.mxu0 %v58
    %2493 = vmatprep.subr.mxu0 0.0
    %2494 = vmatpush1.msra.mxu0 %v59
    %2495 = vmatprep.subr.mxu0 0.0
    %2496 = vmatpush1.msra.mxu0 0.0
    %2497 = vmatprep.subr.mxu0 0.0
    %2498 = vmatpush1.msra.mxu0 0.0
    %2499 = vmatprep.subr.mxu0 0.0
    %2500 = vmatpush1.msra.mxu0 0.0
    %2501 = vmatprep.subr.mxu0 0.0
    %2502 = vmatpush1.msra.mxu0 0.0
    %2503 = vmatprep.subr.mxu0 0.0
    %2504 = vmatpush1.msra.mxu0 0.0
    %2505 = vmatprep.subr.mxu0 0.0
    %2506 = vmatpush1.msra.mxu0 0.0
    %2507 = vmatprep.subr.mxu0 0.0
    %2508 = vmatpush1.msra.mxu0 0.0
    %2509 = vmatprep.subr.mxu0 0.0
    %2510 = vmatpush1.msra.mxu0 0.0
    %2511 = vmatprep.subr.mxu0 0.0
    %2512 = vmatpush1.msra.mxu0 0.0
    %2513 = vmatprep.subr.mxu0 0.0
    %2514 = vmatpush1.msra.mxu0 0.0
    %2515 = vmatprep.subr.mxu0 0.0
    %2516 = vmatpush1.msra.mxu0 0.0
    %2517 = vmatprep.subr.mxu0 0.0
    %2518 = vmatpush1.msra.mxu0 0.0
    %2519 = vmatprep.subr.mxu0 0.0
    %2520 = vmatpush1.msra.mxu0 0.0
    %2521 = vmatprep.subr.mxu0 0.0
    %2522 = vmatpush1.msra.mxu0 0.0
    %2523 = vmatprep.subr.mxu0 0.0
    %2524 = vmatpush1.msra.mxu0 0.0
    %2525 = vmatprep.subr.mxu0 0.0
    %2526 = vmatpush1.msra.mxu0 0.0
    %2527 = vmatprep.subr.mxu0 0.0
    %2528 = vmatpush1.msra.mxu0 0.0
    %2529 = vmatprep.subr.mxu0 0.0
    %2530 = vmatpush1.msra.mxu0 0.0
    %2531 = vmatprep.subr.mxu0 0.0
    %2532 = vmatpush1.msra.mxu0 0.0
    %2533 = vmatprep.subr.mxu0 0.0
    %2534 = vmatpush1.msra.mxu0 0.0
    %2535 = vmatprep.subr.mxu0 0.0
    %2536 = vmatpush1.msra.mxu0 0.0
    %2537 = vmatprep.subr.mxu0 0.0
    %2538 = vmatpush1.msra.mxu0 0.0
    %2539 = vmatprep.subr.mxu0 0.0
    %2540 = vmatpush1.msra.mxu0 0.0
    %2541 = vmatprep.subr.mxu0 0.0
    %2542 = vmatpush1.msra.mxu0 0.0
    %2543 = vmatprep.subr.mxu0 0.0
    %2544 = vmatpush1.msra.mxu0 0.0
    %2545 = vmatprep.subr.mxu0 0.0
    %2546 = vmatpush1.msra.mxu0 0.0
    %2547 = vmatprep.subr.mxu0 0.0
    %2548 = vmatpush1.msra.mxu0 0.0
    %2549 = vmatprep.subr.mxu0 0.0
    %2550 = vmatpush1.msra.mxu0 0.0
    %2551 = vmatprep.mubr.f32.mxu0 0.0
    %2552 = vmatmul.mubr.f32.gmra.mrb[0].mxu0 %v2485
    %v2553 = vpop.f32.mrb[0].mxu0
    %v2554 = vadd.f32 %v69, %v2553
    %v2555 = vpop.f32.mrb[0].mxu0
    %2556 = vdwg.mxu0
    %v2557 = vmul.f32 %v2554, %v2408
    %v2558 = vadd.f32 %v2404, %v2557
    %v2560 = vsel %vm169, %v2558, 0
    %2562 = vmatprep.subr.mxu0 0.0
    %2563 = vmatpush1.msra.mxu0 %v51
    %2564 = vmatprep.subr.mxu0 0.0
    %2565 = vmatpush1.msra.mxu0 %v52
    %2566 = vmatprep.subr.mxu0 0.0
    %2567 = vmatpush1.msra.mxu0 %v53
    %2568 = vmatprep.subr.mxu0 0.0
    %2569 = vmatpush1.msra.mxu0 %v54
    %2570 = vmatprep.subr.mxu0 0.0
    %2571 = vmatpush1.msra.mxu0 0.0
    %2572 = vmatprep.subr.mxu0 0.0
    %2573 = vmatpush1.msra.mxu0 0.0
    %2574 = vmatprep.subr.mxu0 0.0
    %2575 = vmatpush1.msra.mxu0 0.0
    %2576 = vmatprep.subr.mxu0 0.0
    %2577 = vmatpush1.msra.mxu0 0.0
    %2578 = vmatprep.subr.mxu0 0.0
    %2579 = vmatpush1.msra.mxu0 0.0
    %2580 = vmatprep.subr.mxu0 0.0
    %2581 = vmatpush1.msra.mxu0 0.0
    %2582 = vmatprep.subr.mxu0 0.0
    %2583 = vmatpush1.msra.mxu0 0.0
    %2584 = vmatprep.subr.mxu0 0.0
    %2585 = vmatpush1.msra.mxu0 0.0
    %2586 = vmatprep.subr.mxu0 0.0
    %2587 = vmatpush1.msra.mxu0 0.0
    %2588 = vmatprep.subr.mxu0 0.0
    %2589 = vmatpush1.msra.mxu0 0.0
    %2590 = vmatprep.subr.mxu0 0.0
    %2591 = vmatpush1.msra.mxu0 0.0
    %2592 = vmatprep.subr.mxu0 0.0
    %2593 = vmatpush1.msra.mxu0 0.0
    %2594 = vmatprep.subr.mxu0 0.0
    %2595 = vmatpush1.msra.mxu0 0.0
    %2596 = vmatprep.subr.mxu0 0.0
    %2597 = vmatpush1.msra.mxu0 0.0
    %2598 = vmatprep.subr.mxu0 0.0
    %2599 = vmatpush1.msra.mxu0 0.0
    %2600 = vmatprep.subr.mxu0 0.0
    %2601 = vmatpush1.msra.mxu0 0.0
    %2602 = vmatprep.subr.mxu0 0.0
    %2603 = vmatpush1.msra.mxu0 0.0
    %2604 = vmatprep.subr.mxu0 0.0
    %2605 = vmatpush1.msra.mxu0 0.0
    %2606 = vmatprep.subr.mxu0 0.0
    %2607 = vmatpush1.msra.mxu0 0.0
    %2608 = vmatprep.subr.mxu0 0.0
    %2609 = vmatpush1.msra.mxu0 0.0
    %2610 = vmatprep.subr.mxu0 0.0
    %2611 = vmatpush1.msra.mxu0 0.0
    %2612 = vmatprep.subr.mxu0 0.0
    %2613 = vmatpush1.msra.mxu0 0.0
    %2614 = vmatprep.subr.mxu0 0.0
    %2615 = vmatpush1.msra.mxu0 0.0
    %2616 = vmatprep.subr.mxu0 0.0
    %2617 = vmatpush1.msra.mxu0 0.0
    %2618 = vmatprep.subr.mxu0 0.0
    %2619 = vmatpush1.msra.mxu0 0.0
    %2620 = vmatprep.subr.mxu0 0.0
    %2621 = vmatpush1.msra.mxu0 0.0
    %2622 = vmatprep.subr.mxu0 0.0
    %2623 = vmatpush1.msra.mxu0 0.0
    %2624 = vmatprep.subr.mxu0 0.0
    %2625 = vmatpush1.msra.mxu0 0.0
    %2626 = vmatprep.mubr.f32.mxu0 0.0
    %2627 = vmatmul.mubr.f32.gmra.mrb[0].mxu0 %v2560
    %v2628 = vpop.f32.mrb[0].mxu0
    %v2629 = vadd.f32 %v64, %v2628
    %v2630 = vpop.f32.mrb[0].mxu0
    %2631 = vdwg.mxu0
    %v2632 = vmax.f32 %v2629, 0.0
    %v2634 = vsel %vm169, %v2632, 0
    %2636 = vmatprep.subr.mxu0 0.0
    %2637 = vmatpush1.msra.mxu0 %v56
    %2638 = vmatprep.subr.mxu0 0.0
    %2639 = vmatpush1.msra.mxu0 %v57
    %2640 = vmatprep.subr.mxu0 0.0
    %2641 = vmatpush1.msra.mxu0 %v58
    %2642 = vmatprep.subr.mxu0 0.0
    %2643 = vmatpush1.msra.mxu0 %v59
    %2644 = vmatprep.subr.mxu0 0.0
    %2645 = vmatpush1.msra.mxu0 0.0
    %2646 = vmatprep.subr.mxu0 0.0
    %2647 = vmatpush1.msra.mxu0 0.0
    %2648 = vmatprep.subr.mxu0 0.0
    %2649 = vmatpush1.msra.mxu0 0.0
    %2650 = vmatprep.subr.mxu0 0.0
    %2651 = vmatpush1.msra.mxu0 0.0
    %2652 = vmatprep.subr.mxu0 0.0
    %2653 = vmatpush1.msra.mxu0 0.0
    %2654 = vmatprep.subr.mxu0 0.0
    %2655 = vmatpush1.msra.mxu0 0.0
    %2656 = vmatprep.subr.mxu0 0.0
    %2657 = vmatpush1.msra.mxu0 0.0
    %2658 = vmatprep.subr.mxu0 0.0
    %2659 = vmatpush1.msra.mxu0 0.0
    %2660 = vmatprep.subr.mxu0 0.0
    %2661 = vmatpush1.msra.mxu0 0.0
    %2662 = vmatprep.subr.mxu0 0.0
    %2663 = vmatpush1.msra.mxu0 0.0
    %2664 = vmatprep.subr.mxu0 0.0
    %2665 = vmatpush1.msra.mxu0 0.0
    %2666 = vmatprep.subr.mxu0 0.0
    %2667 = vmatpush1.msra.mxu0 0.0
    %2668 = vmatprep.subr.mxu0 0.0
    %2669 = vmatpush1.msra.mxu0 0.0
    %2670 = vmatprep.subr.mxu0 0.0
    %2671 = vmatpush1.msra.mxu0 0.0
    %2672 = vmatprep.subr.mxu0 0.0
    %2673 = vmatpush1.msra.mxu0 0.0
    %2674 = vmatprep.subr.mxu0 0.0
    %2675 = vmatpush1.msra.mxu0 0.0
    %2676 = vmatprep.subr.mxu0 0.0
    %2677 = vmatpush1.msra.mxu0 0.0
    %2678 = vmatprep.subr.mxu0 0.0
    %2679 = vmatpush1.msra.mxu0 0.0
    %2680 = vmatprep.subr.mxu0 0.0
    %2681 = vmatpush1.msra.mxu0 0.0
    %2682 = vmatprep.subr.mxu0 0.0
    %2683 = vmatpush1.msra.mxu0 0.0
    %2684 = vmatprep.subr.mxu0 0.0
    %2685 = vmatpush1.msra.mxu0 0.0
    %2686 = vmatprep.subr.mxu0 0.0
    %2687 = vmatpush1.msra.mxu0 0.0
    %2688 = vmatprep.subr.mxu0 0.0
    %2689 = vmatpush1.msra.mxu0 0.0
    %2690 = vmatprep.subr.mxu0 0.0
    %2691 = vmatpush1.msra.mxu0 0.0
    %2692 = vmatprep.subr.mxu0 0.0
    %2693 = vmatpush1.msra.mxu0 0.0
    %2694 = vmatprep.subr.mxu0 0.0
    %2695 = vmatpush1.msra.mxu0 0.0
    %2696 = vmatprep.subr.mxu0 0.0
    %2697 = vmatpush1.msra.mxu0 0.0
    %2698 = vmatprep.subr.mxu0 0.0
    %2699 = vmatpush1.msra.mxu0 0.0
    %2700 = vmatprep.mubr.f32.mxu0 0.0
    %2701 = vmatmul.mubr.f32.gmra.mrb[0].mxu0 %v2634
    %v2702 = vpop.f32.mrb[0].mxu0
    %v2703 = vadd.f32 %v69, %v2702
    %v2704 = vpop.f32.mrb[0].mxu0
    %2705 = vdwg.mxu0
    %v2706 = vmul.f32 %v2703, %v2408
    %v2707 = vadd.f32 %v2558, %v2706
    %v2709 = vsel %vm169, %v2707, 0
    %2711 = vmatprep.subr.mxu0 0.0
    %2712 = vmatpush1.msra.mxu0 %v51
    %2713 = vmatprep.subr.mxu0 0.0
    %2714 = vmatpush1.msra.mxu0 %v52
    %2715 = vmatprep.subr.mxu0 0.0
    %2716 = vmatpush1.msra.mxu0 %v53
    %2717 = vmatprep.subr.mxu0 0.0
    %2718 = vmatpush1.msra.mxu0 %v54
    %2719 = vmatprep.subr.mxu0 0.0
    %2720 = vmatpush1.msra.mxu0 0.0
    %2721 = vmatprep.subr.mxu0 0.0
    %2722 = vmatpush1.msra.mxu0 0.0
    %2723 = vmatprep.subr.mxu0 0.0
    %2724 = vmatpush1.msra.mxu0 0.0
    %2725 = vmatprep.subr.mxu0 0.0
    %2726 = vmatpush1.msra.mxu0 0.0
    %2727 = vmatprep.subr.mxu0 0.0
    %2728 = vmatpush1.msra.mxu0 0.0
    %2729 = vmatprep.subr.mxu0 0.0
    %2730 = vmatpush1.msra.mxu0 0.0
    %2731 = vmatprep.subr.mxu0 0.0
    %2732 = vmatpush1.msra.mxu0 0.0
    %2733 = vmatprep.subr.mxu0 0.0
    %2734 = vmatpush1.msra.mxu0 0.0
    %2735 = vmatprep.subr.mxu0 0.0
    %2736 = vmatpush1.msra.mxu0 0.0
    %2737 = vmatprep.subr.mxu0 0.0
    %2738 = vmatpush1.msra.mxu0 0.0
    %2739 = vmatprep.subr.mxu0 0.0
    %2740 = vmatpush1.msra.mxu0 0.0
    %2741 = vmatprep.subr.mxu0 0.0
    %2742 = vmatpush1.msra.mxu0 0.0
    %2743 = vmatprep.subr.mxu0 0.0
    %2744 = vmatpush1.msra.mxu0 0.0
    %2745 = vmatprep.subr.mxu0 0.0
    %2746 = vmatpush1.msra.mxu0 0.0
    %2747 = vmatprep.subr.mxu0 0.0
    %2748 = vmatpush1.msra.mxu0 0.0
    %2749 = vmatprep.subr.mxu0 0.0
    %2750 = vmatpush1.msra.mxu0 0.0
    %2751 = vmatprep.subr.mxu0 0.0
    %2752 = vmatpush1.msra.mxu0 0.0
    %2753 = vmatprep.subr.mxu0 0.0
    %2754 = vmatpush1.msra.mxu0 0.0
    %2755 = vmatprep.subr.mxu0 0.0
    %2756 = vmatpush1.msra.mxu0 0.0
    %2757 = vmatprep.subr.mxu0 0.0
    %2758 = vmatpush1.msra.mxu0 0.0
    %2759 = vmatprep.subr.mxu0 0.0
    %2760 = vmatpush1.msra.mxu0 0.0
    %2761 = vmatprep.subr.mxu0 0.0
    %2762 = vmatpush1.msra.mxu0 0.0
    %2763 = vmatprep.subr.mxu0 0.0
    %2764 = vmatpush1.msra.mxu0 0.0
    %2765 = vmatprep.subr.mxu0 0.0
    %2766 = vmatpush1.msra.mxu0 0.0
    %2767 = vmatprep.subr.mxu0 0.0
    %2768 = vmatpush1.msra.mxu0 0.0
    %2769 = vmatprep.subr.mxu0 0.0
    %2770 = vmatpush1.msra.mxu0 0.0
    %2771 = vmatprep.subr.mxu0 0.0
    %2772 = vmatpush1.msra.mxu0 0.0
    %2773 = vmatprep.subr.mxu0 0.0
    %2774 = vmatpush1.msra.mxu0 0.0
    %2775 = vmatprep.mubr.f32.mxu0 0.0
    %2776 = vmatmul.mubr.f32.gmra.mrb[0].mxu0 %v2709
    %v2777 = vpop.f32.mrb[0].mxu0
    %v2778 = vadd.f32 %v64, %v2777
    %v2779 = vpop.f32.mrb[0].mxu0
    %2780 = vdwg.mxu0
    %v2781 = vmax.f32 %v2778, 0.0
    %v2783 = vsel %vm169, %v2781, 0
    %2785 = vmatprep.subr.mxu0 0.0
    %2786 = vmatpush1.msra.mxu0 %v56
    %2787 = vmatprep.subr.mxu0 0.0
    %2788 = vmatpush1.msra.mxu0 %v57
    %2789 = vmatprep.subr.mxu0 0.0
    %2790 = vmatpush1.msra.mxu0 %v58
    %2791 = vmatprep.subr.mxu0 0.0
    %2792 = vmatpush1.msra.mxu0 %v59
    %2793 = vmatprep.subr.mxu0 0.0
    %2794 = vmatpush1.msra.mxu0 0.0
    %2795 = vmatprep.subr.mxu0 0.0
    %2796 = vmatpush1.msra.mxu0 0.0
    %2797 = vmatprep.subr.mxu0 0.0
    %2798 = vmatpush1.msra.mxu0 0.0
    %2799 = vmatprep.subr.mxu0 0.0
    %2800 = vmatpush1.msra.mxu0 0.0
    %2801 = vmatprep.subr.mxu0 0.0
    %2802 = vmatpush1.msra.mxu0 0.0
    %2803 = vmatprep.subr.mxu0 0.0
    %2804 = vmatpush1.msra.mxu0 0.0
    %2805 = vmatprep.subr.mxu0 0.0
    %2806 = vmatpush1.msra.mxu0 0.0
    %2807 = vmatprep.subr.mxu0 0.0
    %2808 = vmatpush1.msra.mxu0 0.0
    %2809 = vmatprep.subr.mxu0 0.0
    %2810 = vmatpush1.msra.mxu0 0.0
    %2811 = vmatprep.subr.mxu0 0.0
    %2812 = vmatpush1.msra.mxu0 0.0
    %2813 = vmatprep.subr.mxu0 0.0
    %2814 = vmatpush1.msra.mxu0 0.0
    %2815 = vmatprep.subr.mxu0 0.0
    %2816 = vmatpush1.msra.mxu0 0.0
    %2817 = vmatprep.subr.mxu0 0.0
    %2818 = vmatpush1.msra.mxu0 0.0
    %2819 = vmatprep.subr.mxu0 0.0
    %2820 = vmatpush1.msra.mxu0 0.0
    %2821 = vmatprep.subr.mxu0 0.0
    %2822 = vmatpush1.msra.mxu0 0.0
    %2823 = vmatprep.subr.mxu0 0.0
    %2824 = vmatpush1.msra.mxu0 0.0
    %2825 = vmatprep.subr.mxu0 0.0
    %2826 = vmatpush1.msra.mxu0 0.0
    %2827 = vmatprep.subr.mxu0 0.0
    %2828 = vmatpush1.msra.mxu0 0.0
    %2829 = vmatprep.subr.mxu0 0.0
    %2830 = vmatpush1.msra.mxu0 0.0
    %2831 = vmatprep.subr.mxu0 0.0
    %2832 = vmatpush1.msra.mxu0 0.0
    %2833 = vmatprep.subr.mxu0 0.0
    %2834 = vmatpush1.msra.mxu0 0.0
    %2835 = vmatprep.subr.mxu0 0.0
    %2836 = vmatpush1.msra.mxu0 0.0
    %2837 = vmatprep.subr.mxu0 0.0
    %2838 = vmatpush1.msra.mxu0 0.0
    %2839 = vmatprep.subr.mxu0 0.0
    %2840 = vmatpush1.msra.mxu0 0.0
    %2841 = vmatprep.subr.mxu0 0.0
    %2842 = vmatpush1.msra.mxu0 0.0
    %2843 = vmatprep.subr.mxu0 0.0
    %2844 = vmatpush1.msra.mxu0 0.0
    %2845 = vmatprep.subr.mxu0 0.0
    %2846 = vmatpush1.msra.mxu0 0.0
    %2847 = vmatprep.subr.mxu0 0.0
    %2848 = vmatpush1.msra.mxu0 0.0
    %2849 = vmatprep.mubr.f32.mxu0 0.0
    %2850 = vmatmul.mubr.f32.gmra.mrb[0].mxu0 %v2783
    %v2851 = vpop.f32.mrb[0].mxu0
    %v2852 = vadd.f32 %v69, %v2851
    %v2853 = vpop.f32.mrb[0].mxu0
    %2854 = vdwg.mxu0
    %v2855 = vmul.f32 %v2852, %v2408
    %v2856 = vadd.f32 %v2707, %v2855
    %v2858 = vsel %vm169, %v2856, 0
    %2860 = vmatprep.subr.mxu0 0.0
    %2861 = vmatpush1.msra.mxu0 %v47
    %2862 = vmatprep.subr.mxu0 0.0
    %2863 = vmatpush1.msra.mxu0 %v48
    %2864 = vmatprep.subr.mxu0 0.0
    %2865 = vmatpush1.msra.mxu0 %v49
    %2866 = vmatprep.subr.mxu0 0.0
    %2867 = vmatpush1.msra.mxu0 %v50
    %2868 = vmatprep.subr.mxu0 0.0
    %2869 = vmatpush1.msra.mxu0 0.0
    %2870 = vmatprep.subr.mxu0 0.0
    %2871 = vmatpush1.msra.mxu0 0.0
    %2872 = vmatprep.subr.mxu0 0.0
    %2873 = vmatpush1.msra.mxu0 0.0
    %2874 = vmatprep.subr.mxu0 0.0
    %2875 = vmatpush1.msra.mxu0 0.0
    %2876 = vmatprep.subr.mxu0 0.0
    %2877 = vmatpush1.msra.mxu0 0.0
    %2878 = vmatprep.subr.mxu0 0.0
    %2879 = vmatpush1.msra.mxu0 0.0
    %2880 = vmatprep.subr.mxu0 0.0
    %2881 = vmatpush1.msra.mxu0 0.0
    %2882 = vmatprep.subr.mxu0 0.0
    %2883 = vmatpush1.msra.mxu0 0.0
    %2884 = vmatprep.subr.mxu0 0.0
    %2885 = vmatpush1.msra.mxu0 0.0
    %2886 = vmatprep.subr.mxu0 0.0
    %2887 = vmatpush1.msra.mxu0 0.0
    %2888 = vmatprep.subr.mxu0 0.0
    %2889 = vmatpush1.msra.mxu0 0.0
    %2890 = vmatprep.subr.mxu0 0.0
    %2891 = vmatpush1.msra.mxu0 0.0
    %2892 = vmatprep.subr.mxu0 0.0
    %2893 = vmatpush1.msra.mxu0 0.0
    %2894 = vmatprep.subr.mxu0 0.0
    %2895 = vmatpush1.msra.mxu0 0.0
    %2896 = vmatprep.subr.mxu0 0.0
    %2897 = vmatpush1.msra.mxu0 0.0
    %2898 = vmatprep.subr.mxu0 0.0
    %2899 = vmatpush1.msra.mxu0 0.0
    %2900 = vmatprep.subr.mxu0 0.0
    %2901 = vmatpush1.msra.mxu0 0.0
    %2902 = vmatprep.subr.mxu0 0.0
    %2903 = vmatpush1.msra.mxu0 0.0
    %2904 = vmatprep.subr.mxu0 0.0
    %2905 = vmatpush1.msra.mxu0 0.0
    %2906 = vmatprep.subr.mxu0 0.0
    %2907 = vmatpush1.msra.mxu0 0.0
    %2908 = vmatprep.subr.mxu0 0.0
    %2909 = vmatpush1.msra.mxu0 0.0
    %2910 = vmatprep.subr.mxu0 0.0
    %2911 = vmatpush1.msra.mxu0 0.0
    %2912 = vmatprep.subr.mxu0 0.0
    %2913 = vmatpush1.msra.mxu0 0.0
    %2914 = vmatprep.subr.mxu0 0.0
    %2915 = vmatpush1.msra.mxu0 0.0
    %2916 = vmatprep.subr.mxu0 0.0
    %2917 = vmatpush1.msra.mxu0 0.0
    %2918 = vmatprep.subr.mxu0 0.0
    %2919 = vmatpush1.msra.mxu0 0.0
    %2920 = vmatprep.subr.mxu0 0.0
    %2921 = vmatpush1.msra.mxu0 0.0
    %2922 = vmatprep.subr.mxu0 0.0
    %2923 = vmatpush1.msra.mxu0 0.0
    %2924 = vmatprep.mubr.f32.mxu0 0.0
    %2925 = vmatmul.mubr.f32.gmra.mrb[0].mxu0 %v2858
    %v2926 = vpop.f32.mrb[0].mxu0
    %v2927 = vadd.f32 0.0, %v2926
    %v2928 = vpop.f32.mrb[0].mxu0
    %2929 = vdwg.mxu0
    %v2931 = vrot.slane %v2927, 6
    %v2933 = vadd.f32 %v164, %v2931
    %v2934 = vtanh.pop %v2933
    %v2936 = vrot.slane %v2934, 2
    %v2938 = vadd.f32 %v2405, %v2936
    %2939 = vset.pattern.permute.xlu0 6
    %2940 = vperm.xlu0 %2939, %v168
    %v2941 = vpop.permute.xlu0 %2940
    %v2943 = vsel %vm169, %v2936, 0
    %2945 = vmatprep.subr.mxu0 0.0
    %2946 = vmatpush1.msra.mxu0 %v51
    %2947 = vmatprep.subr.mxu0 0.0
    %2948 = vmatpush1.msra.mxu0 %v52
    %2949 = vmatprep.subr.mxu0 0.0
    %2950 = vmatpush1.msra.mxu0 %v53
    %2951 = vmatprep.subr.mxu0 0.0
    %2952 = vmatpush1.msra.mxu0 %v54
    %2953 = vmatprep.subr.mxu0 0.0
    %2954 = vmatpush1.msra.mxu0 0.0
    %2955 = vmatprep.subr.mxu0 0.0
    %2956 = vmatpush1.msra.mxu0 0.0
    %2957 = vmatprep.subr.mxu0 0.0
    %2958 = vmatpush1.msra.mxu0 0.0
    %2959 = vmatprep.subr.mxu0 0.0
    %2960 = vmatpush1.msra.mxu0 0.0
    %2961 = vmatprep.subr.mxu0 0.0
    %2962 = vmatpush1.msra.mxu0 0.0
    %2963 = vmatprep.subr.mxu0 0.0
    %2964 = vmatpush1.msra.mxu0 0.0
    %2965 = vmatprep.subr.mxu0 0.0
    %2966 = vmatpush1.msra.mxu0 0.0
    %2967 = vmatprep.subr.mxu0 0.0
    %2968 = vmatpush1.msra.mxu0 0.0
    %2969 = vmatprep.subr.mxu0 0.0
    %2970 = vmatpush1.msra.mxu0 0.0
    %2971 = vmatprep.subr.mxu0 0.0
    %2972 = vmatpush1.msra.mxu0 0.0
    %2973 = vmatprep.subr.mxu0 0.0
    %2974 = vmatpush1.msra.mxu0 0.0
    %2975 = vmatprep.subr.mxu0 0.0
    %2976 = vmatpush1.msra.mxu0 0.0
    %2977 = vmatprep.subr.mxu0 0.0
    %2978 = vmatpush1.msra.mxu0 0.0
    %2979 = vmatprep.subr.mxu0 0.0
    %2980 = vmatpush1.msra.mxu0 0.0
    %2981 = vmatprep.subr.mxu0 0.0
    %2982 = vmatpush1.msra.mxu0 0.0
    %2983 = vmatprep.subr.mxu0 0.0
    %2984 = vmatpush1.msra.mxu0 0.0
    %2985 = vmatprep.subr.mxu0 0.0
    %2986 = vmatpush1.msra.mxu0 0.0
    %2987 = vmatprep.subr.mxu0 0.0
    %2988 = vmatpush1.msra.mxu0 0.0
    %2989 = vmatprep.subr.mxu0 0.0
    %2990 = vmatpush1.msra.mxu0 0.0
    %2991 = vmatprep.subr.mxu0 0.0
    %2992 = vmatpush1.msra.mxu0 0.0
    %2993 = vmatprep.subr.mxu0 0.0
    %2994 = vmatpush1.msra.mxu0 0.0
    %2995 = vmatprep.subr.mxu0 0.0
    %2996 = vmatpush1.msra.mxu0 0.0
    %2997 = vmatprep.subr.mxu0 0.0
    %2998 = vmatpush1.msra.mxu0 0.0
    %2999 = vmatprep.subr.mxu0 0.0
    %3000 = vmatpush1.msra.mxu0 0.0
    %3001 = vmatprep.subr.mxu0 0.0
    %3002 = vmatpush1.msra.mxu0 0.0
    %3003 = vmatprep.subr.mxu0 0.0
    %3004 = vmatpush1.msra.mxu0 0.0
    %3005 = vmatprep.subr.mxu0 0.0
    %3006 = vmatpush1.msra.mxu0 0.0
    %3007 = vmatprep.subr.mxu0 0.0
    %3008 = vmatpush1.msra.mxu0 0.0
    %3009 = vmatprep.mubr.f32.mxu0 0.0
    %3010 = vmatmul.mubr.f32.gmra.mrb[0].mxu0 %v2943
    %v3011 = vpop.f32.mrb[0].mxu0
    %v3012 = vadd.f32 %v64, %v3011
    %v3013 = vpop.f32.mrb[0].mxu0
    %3014 = vdwg.mxu0
    %v3015 = vmax.f32 %v3012, 0.0
    %v3017 = vsel %vm169, %v3015, 0
    %3019 = vmatprep.subr.mxu0 0.0
    %3020 = vmatpush1.msra.mxu0 %v56
    %3021 = vmatprep.subr.mxu0 0.0
    %3022 = vmatpush1.msra.mxu0 %v57
    %3023 = vmatprep.subr.mxu0 0.0
    %3024 = vmatpush1.msra.mxu0 %v58
    %3025 = vmatprep.subr.mxu0 0.0
    %3026 = vmatpush1.msra.mxu0 %v59
    %3027 = vmatprep.subr.mxu0 0.0
    %3028 = vmatpush1.msra.mxu0 0.0
    %3029 = vmatprep.subr.mxu0 0.0
    %3030 = vmatpush1.msra.mxu0 0.0
    %3031 = vmatprep.subr.mxu0 0.0
    %3032 = vmatpush1.msra.mxu0 0.0
    %3033 = vmatprep.subr.mxu0 0.0
    %3034 = vmatpush1.msra.mxu0 0.0
    %3035 = vmatprep.subr.mxu0 0.0
    %3036 = vmatpush1.msra.mxu0 0.0
    %3037 = vmatprep.subr.mxu0 0.0
    %3038 = vmatpush1.msra.mxu0 0.0
    %3039 = vmatprep.subr.mxu0 0.0
    %3040 = vmatpush1.msra.mxu0 0.0
    %3041 = vmatprep.subr.mxu0 0.0
    %3042 = vmatpush1.msra.mxu0 0.0
    %3043 = vmatprep.subr.mxu0 0.0
    %3044 = vmatpush1.msra.mxu0 0.0
    %3045 = vmatprep.subr.mxu0 0.0
    %3046 = vmatpush1.msra.mxu0 0.0
    %3047 = vmatprep.subr.mxu0 0.0
    %3048 = vmatpush1.msra.mxu0 0.0
    %3049 = vmatprep.subr.mxu0 0.0
    %3050 = vmatpush1.msra.mxu0 0.0
    %3051 = vmatprep.subr.mxu0 0.0
    %3052 = vmatpush1.msra.mxu0 0.0
    %3053 = vmatprep.subr.mxu0 0.0
    %3054 = vmatpush1.msra.mxu0 0.0
    %3055 = vmatprep.subr.mxu0 0.0
    %3056 = vmatpush1.msra.mxu0 0.0
    %3057 = vmatprep.subr.mxu0 0.0
    %3058 = vmatpush1.msra.mxu0 0.0
    %3059 = vmatprep.subr.mxu0 0.0
    %3060 = vmatpush1.msra.mxu0 0.0
    %3061 = vmatprep.subr.mxu0 0.0
    %3062 = vmatpush1.msra.mxu0 0.0
    %3063 = vmatprep.subr.mxu0 0.0
    %3064 = vmatpush1.msra.mxu0 0.0
    %3065 = vmatprep.subr.mxu0 0.0
    %3066 = vmatpush1.msra.mxu0 0.0
    %3067 = vmatprep.subr.mxu0 0.0
    %3068 = vmatpush1.msra.mxu0 0.0
    %3069 = vmatprep.subr.mxu0 0.0
    %3070 = vmatpush1.msra.mxu0 0.0
    %3071 = vmatprep.subr.mxu0 0.0
    %3072 = vmatpush1.msra.mxu0 0.0
    %3073 = vmatprep.subr.mxu0 0.0
    %3074 = vmatpush1.msra.mxu0 0.0
    %3075 = vmatprep.subr.mxu0 0.0
    %3076 = vmatpush1.msra.mxu0 0.0
    %3077 = vmatprep.subr.mxu0 0.0
    %3078 = vmatpush1.msra.mxu0 0.0
    %3079 = vmatprep.subr.mxu0 0.0
    %3080 = vmatpush1.msra.mxu0 0.0
    %3081 = vmatprep.subr.mxu0 0.0
    %3082 = vmatpush1.msra.mxu0 0.0
    %3083 = vmatprep.mubr.f32.mxu0 0.0
    %3084 = vmatmul.mubr.f32.gmra.mrb[0].mxu0 %v3017
    %v3085 = vpop.f32.mrb[0].mxu0
    %v3086 = vadd.f32 %v69, %v3085
    %v3087 = vpop.f32.mrb[0].mxu0
    %3088 = vdwg.mxu0
    %v3089 = vmul.f32 %v3086, %v2941
    %v3091 = vrot.slane %v3089, 6
    %v3093 = vadd.f32 %v2934, %v3091
    %v3095 = vrot.slane %v3093, 2
    %v3096 = vsel %vm169, %v3095, 0
    %3098 = vmatprep.subr.mxu0 0.0
    %3099 = vmatpush1.msra.mxu0 %v51
    %3100 = vmatprep.subr.mxu0 0.0
    %3101 = vmatpush1.msra.mxu0 %v52
    %3102 = vmatprep.subr.mxu0 0.0
    %3103 = vmatpush1.msra.mxu0 %v53
    %3104 = vmatprep.subr.mxu0 0.0
    %3105 = vmatpush1.msra.mxu0 %v54
    %3106 = vmatprep.subr.mxu0 0.0
    %3107 = vmatpush1.msra.mxu0 0.0
    %3108 = vmatprep.subr.mxu0 0.0
    %3109 = vmatpush1.msra.mxu0 0.0
    %3110 = vmatprep.subr.mxu0 0.0
    %3111 = vmatpush1.msra.mxu0 0.0
    %3112 = vmatprep.subr.mxu0 0.0
    %3113 = vmatpush1.msra.mxu0 0.0
    %3114 = vmatprep.subr.mxu0 0.0
    %3115 = vmatpush1.msra.mxu0 0.0
    %3116 = vmatprep.subr.mxu0 0.0
    %3117 = vmatpush1.msra.mxu0 0.0
    %3118 = vmatprep.subr.mxu0 0.0
    %3119 = vmatpush1.msra.mxu0 0.0
    %3120 = vmatprep.subr.mxu0 0.0
    %3121 = vmatpush1.msra.mxu0 0.0
    %3122 = vmatprep.subr.mxu0 0.0
    %3123 = vmatpush1.msra.mxu0 0.0
    %3124 = vmatprep.subr.mxu0 0.0
    %3125 = vmatpush1.msra.mxu0 0.0
    %3126 = vmatprep.subr.mxu0 0.0
    %3127 = vmatpush1.msra.mxu0 0.0
    %3128 = vmatprep.subr.mxu0 0.0
    %3129 = vmatpush1.msra.mxu0 0.0
    %3130 = vmatprep.subr.mxu0 0.0
    %3131 = vmatpush1.msra.mxu0 0.0
    %3132 = vmatprep.subr.mxu0 0.0
    %3133 = vmatpush1.msra.mxu0 0.0
    %3134 = vmatprep.subr.mxu0 0.0
    %3135 = vmatpush1.msra.mxu0 0.0
    %3136 = vmatprep.subr.mxu0 0.0
    %3137 = vmatpush1.msra.mxu0 0.0
    %3138 = vmatprep.subr.mxu0 0.0
    %3139 = vmatpush1.msra.mxu0 0.0
    %3140 = vmatprep.subr.mxu0 0.0
    %3141 = vmatpush1.msra.mxu0 0.0
    %3142 = vmatprep.subr.mxu0 0.0
    %3143 = vmatpush1.msra.mxu0 0.0
    %3144 = vmatprep.subr.mxu0 0.0
    %3145 = vmatpush1.msra.mxu0 0.0
    %3146 = vmatprep.subr.mxu0 0.0
    %3147 = vmatpush1.msra.mxu0 0.0
    %3148 = vmatprep.subr.mxu0 0.0
    %3149 = vmatpush1.msra.mxu0 0.0
    %3150 = vmatprep.subr.mxu0 0.0
    %3151 = vmatpush1.msra.mxu0 0.0
    %3152 = vmatprep.subr.mxu0 0.0
    %3153 = vmatpush1.msra.mxu0 0.0
    %3154 = vmatprep.subr.mxu0 0.0
    %3155 = vmatpush1.msra.mxu0 0.0
    %3156 = vmatprep.subr.mxu0 0.0
    %3157 = vmatpush1.msra.mxu0 0.0
    %3158 = vmatprep.subr.mxu0 0.0
    %3159 = vmatpush1.msra.mxu0 0.0
    %3160 = vmatprep.subr.mxu0 0.0
    %3161 = vmatpush1.msra.mxu0 0.0
    %3162 = vmatprep.mubr.f32.mxu0 0.0
    %3163 = vmatmul.mubr.f32.gmra.mrb[0].mxu0 %v3096
    %v3164 = vpop.f32.mrb[0].mxu0
    %v3165 = vadd.f32 %v64, %v3164
    %v3166 = vpop.f32.mrb[0].mxu0
    %3167 = vdwg.mxu0
    %v3168 = vmax.f32 %v3165, 0.0
    %v3170 = vsel %vm169, %v3168, 0
    %3172 = vmatprep.subr.mxu0 0.0
    %3173 = vmatpush1.msra.mxu0 %v56
    %3174 = vmatprep.subr.mxu0 0.0
    %3175 = vmatpush1.msra.mxu0 %v57
    %3176 = vmatprep.subr.mxu0 0.0
    %3177 = vmatpush1.msra.mxu0 %v58
    %3178 = vmatprep.subr.mxu0 0.0
    %3179 = vmatpush1.msra.mxu0 %v59
    %3180 = vmatprep.subr.mxu0 0.0
    %3181 = vmatpush1.msra.mxu0 0.0
    %3182 = vmatprep.subr.mxu0 0.0
    %3183 = vmatpush1.msra.mxu0 0.0
    %3184 = vmatprep.subr.mxu0 0.0
    %3185 = vmatpush1.msra.mxu0 0.0
    %3186 = vmatprep.subr.mxu0 0.0
    %3187 = vmatpush1.msra.mxu0 0.0
    %3188 = vmatprep.subr.mxu0 0.0
    %3189 = vmatpush1.msra.mxu0 0.0
    %3190 = vmatprep.subr.mxu0 0.0
    %3191 = vmatpush1.msra.mxu0 0.0
    %3192 = vmatprep.subr.mxu0 0.0
    %3193 = vmatpush1.msra.mxu0 0.0
    %3194 = vmatprep.subr.mxu0 0.0
    %3195 = vmatpush1.msra.mxu0 0.0
    %3196 = vmatprep.subr.mxu0 0.0
    %3197 = vmatpush1.msra.mxu0 0.0
    %3198 = vmatprep.subr.mxu0 0.0
    %3199 = vmatpush1.msra.mxu0 0.0
    %3200 = vmatprep.subr.mxu0 0.0
    %3201 = vmatpush1.msra.mxu0 0.0
    %3202 = vmatprep.subr.mxu0 0.0
    %3203 = vmatpush1.msra.mxu0 0.0
    %3204 = vmatprep.subr.mxu0 0.0
    %3205 = vmatpush1.msra.mxu0 0.0
    %3206 = vmatprep.subr.mxu0 0.0
    %3207 = vmatpush1.msra.mxu0 0.0
    %3208 = vmatprep.subr.mxu0 0.0
    %3209 = vmatpush1.msra.mxu0 0.0
    %3210 = vmatprep.subr.mxu0 0.0
    %3211 = vmatpush1.msra.mxu0 0.0
    %3212 = vmatprep.subr.mxu0 0.0
    %3213 = vmatpush1.msra.mxu0 0.0
    %3214 = vmatprep.subr.mxu0 0.0
    %3215 = vmatpush1.msra.mxu0 0.0
    %3216 = vmatprep.subr.mxu0 0.0
    %3217 = vmatpush1.msra.mxu0 0.0
    %3218 = vmatprep.subr.mxu0 0.0
    %3219 = vmatpush1.msra.mxu0 0.0
    %3220 = vmatprep.subr.mxu0 0.0
    %3221 = vmatpush1.msra.mxu0 0.0
    %3222 = vmatprep.subr.mxu0 0.0
    %3223 = vmatpush1.msra.mxu0 0.0
    %3224 = vmatprep.subr.mxu0 0.0
    %3225 = vmatpush1.msra.mxu0 0.0
    %3226 = vmatprep.subr.mxu0 0.0
    %3227 = vmatpush1.msra.mxu0 0.0
    %3228 = vmatprep.subr.mxu0 0.0
    %3229 = vmatpush1.msra.mxu0 0.0
    %3230 = vmatprep.subr.mxu0 0.0
    %3231 = vmatpush1.msra.mxu0 0.0
    %3232 = vmatprep.subr.mxu0 0.0
    %3233 = vmatpush1.msra.mxu0 0.0
    %3234 = vmatprep.subr.mxu0 0.0
    %3235 = vmatpush1.msra.mxu0 0.0
    %3236 = vmatprep.mubr.f32.mxu0 0.0
    %3237 = vmatmul.mubr.f32.gmra.mrb[0].mxu0 %v3170
    %v3238 = vpop.f32.mrb[0].mxu0
    %v3239 = vadd.f32 %v69, %v3238
    %v3240 = vpop.f32.mrb[0].mxu0
    %3241 = vdwg.mxu0
    %v3242 = vmul.f32 %v3239, %v2941
    %v3244 = vrot.slane %v3242, 6
    %v3246 = vadd.f32 %v3093, %v3244
    %v3248 = vrot.slane %v3246, 2
    %v3249 = vsel %vm169, %v3248, 0
    %3251 = vmatprep.subr.mxu0 0.0
    %3252 = vmatpush1.msra.mxu0 %v51
    %3253 = vmatprep.subr.mxu0 0.0
    %3254 = vmatpush1.msra.mxu0 %v52
    %3255 = vmatprep.subr.mxu0 0.0
    %3256 = vmatpush1.msra.mxu0 %v53
    %3257 = vmatprep.subr.mxu0 0.0
    %3258 = vmatpush1.msra.mxu0 %v54
    %3259 = vmatprep.subr.mxu0 0.0
    %3260 = vmatpush1.msra.mxu0 0.0
    %3261 = vmatprep.subr.mxu0 0.0
    %3262 = vmatpush1.msra.mxu0 0.0
    %3263 = vmatprep.subr.mxu0 0.0
    %3264 = vmatpush1.msra.mxu0 0.0
    %3265 = vmatprep.subr.mxu0 0.0
    %3266 = vmatpush1.msra.mxu0 0.0
    %3267 = vmatprep.subr.mxu0 0.0
    %3268 = vmatpush1.msra.mxu0 0.0
    %3269 = vmatprep.subr.mxu0 0.0
    %3270 = vmatpush1.msra.mxu0 0.0
    %3271 = vmatprep.subr.mxu0 0.0
    %3272 = vmatpush1.msra.mxu0 0.0
    %3273 = vmatprep.subr.mxu0 0.0
    %3274 = vmatpush1.msra.mxu0 0.0
    %3275 = vmatprep.subr.mxu0 0.0
    %3276 = vmatpush1.msra.mxu0 0.0
    %3277 = vmatprep.subr.mxu0 0.0
    %3278 = vmatpush1.msra.mxu0 0.0
    %3279 = vmatprep.subr.mxu0 0.0
    %3280 = vmatpush1.msra.mxu0 0.0
    %3281 = vmatprep.subr.mxu0 0.0
    %3282 = vmatpush1.msra.mxu0 0.0
    %3283 = vmatprep.subr.mxu0 0.0
    %3284 = vmatpush1.msra.mxu0 0.0
    %3285 = vmatprep.subr.mxu0 0.0
    %3286 = vmatpush1.msra.mxu0 0.0
    %3287 = vmatprep.subr.mxu0 0.0
    %3288 = vmatpush1.msra.mxu0 0.0
    %3289 = vmatprep.subr.mxu0 0.0
    %3290 = vmatpush1.msra.mxu0 0.0
    %3291 = vmatprep.subr.mxu0 0.0
    %3292 = vmatpush1.msra.mxu0 0.0
    %3293 = vmatprep.subr.mxu0 0.0
    %3294 = vmatpush1.msra.mxu0 0.0
    %3295 = vmatprep.subr.mxu0 0.0
    %3296 = vmatpush1.msra.mxu0 0.0
    %3297 = vmatprep.subr.mxu0 0.0
    %3298 = vmatpush1.msra.mxu0 0.0
    %3299 = vmatprep.subr.mxu0 0.0
    %3300 = vmatpush1.msra.mxu0 0.0
    %3301 = vmatprep.subr.mxu0 0.0
    %3302 = vmatpush1.msra.mxu0 0.0
    %3303 = vmatprep.subr.mxu0 0.0
    %3304 = vmatpush1.msra.mxu0 0.0
    %3305 = vmatprep.subr.mxu0 0.0
    %3306 = vmatpush1.msra.mxu0 0.0
    %3307 = vmatprep.subr.mxu0 0.0
    %3308 = vmatpush1.msra.mxu0 0.0
    %3309 = vmatprep.subr.mxu0 0.0
    %3310 = vmatpush1.msra.mxu0 0.0
    %3311 = vmatprep.subr.mxu0 0.0
    %3312 = vmatpush1.msra.mxu0 0.0
    %3313 = vmatprep.subr.mxu0 0.0
    %3314 = vmatpush1.msra.mxu0 0.0
    %3315 = vmatprep.mubr.f32.mxu0 0.0
    %3316 = vmatmul.mubr.f32.gmra.mrb[0].mxu0 %v3249
    %v3317 = vpop.f32.mrb[0].mxu0
    %v3318 = vadd.f32 %v64, %v3317
    %v3319 = vpop.f32.mrb[0].mxu0
    %3320 = vdwg.mxu0
    %v3321 = vmax.f32 %v3318, 0.0
    %v3323 = vsel %vm169, %v3321, 0
    %3325 = vmatprep.subr.mxu0 0.0
    %3326 = vmatpush1.msra.mxu0 %v56
    %3327 = vmatprep.subr.mxu0 0.0
    %3328 = vmatpush1.msra.mxu0 %v57
    %3329 = vmatprep.subr.mxu0 0.0
    %3330 = vmatpush1.msra.mxu0 %v58
    %3331 = vmatprep.subr.mxu0 0.0
    %3332 = vmatpush1.msra.mxu0 %v59
    %3333 = vmatprep.subr.mxu0 0.0
    %3334 = vmatpush1.msra.mxu0 0.0
    %3335 = vmatprep.subr.mxu0 0.0
    %3336 = vmatpush1.msra.mxu0 0.0
    %3337 = vmatprep.subr.mxu0 0.0
    %3338 = vmatpush1.msra.mxu0 0.0
    %3339 = vmatprep.subr.mxu0 0.0
    %3340 = vmatpush1.msra.mxu0 0.0
    %3341 = vmatprep.subr.mxu0 0.0
    %3342 = vmatpush1.msra.mxu0 0.0
    %3343 = vmatprep.subr.mxu0 0.0
    %3344 = vmatpush1.msra.mxu0 0.0
    %3345 = vmatprep.subr.mxu0 0.0
    %3346 = vmatpush1.msra.mxu0 0.0
    %3347 = vmatprep.subr.mxu0 0.0
    %3348 = vmatpush1.msra.mxu0 0.0
    %3349 = vmatprep.subr.mxu0 0.0
    %3350 = vmatpush1.msra.mxu0 0.0
    %3351 = vmatprep.subr.mxu0 0.0
    %3352 = vmatpush1.msra.mxu0 0.0
    %3353 = vmatprep.subr.mxu0 0.0
    %3354 = vmatpush1.msra.mxu0 0.0
    %3355 = vmatprep.subr.mxu0 0.0
    %3356 = vmatpush1.msra.mxu0 0.0
    %3357 = vmatprep.subr.mxu0 0.0
    %3358 = vmatpush1.msra.mxu0 0.0
    %3359 = vmatprep.subr.mxu0 0.0
    %3360 = vmatpush1.msra.mxu0 0.0
    %3361 = vmatprep.subr.mxu0 0.0
    %3362 = vmatpush1.msra.mxu0 0.0
    %3363 = vmatprep.subr.mxu0 0.0
    %3364 = vmatpush1.msra.mxu0 0.0
    %3365 = vmatprep.subr.mxu0 0.0
    %3366 = vmatpush1.msra.mxu0 0.0
    %3367 = vmatprep.subr.mxu0 0.0
    %3368 = vmatpush1.msra.mxu0 0.0
    %3369 = vmatprep.subr.mxu0 0.0
    %3370 = vmatpush1.msra.mxu0 0.0
    %3371 = vmatprep.subr.mxu0 0.0
    %3372 = vmatpush1.msra.mxu0 0.0
    %3373 = vmatprep.subr.mxu0 0.0
    %3374 = vmatpush1.msra.mxu0 0.0
    %3375 = vmatprep.subr.mxu0 0.0
    %3376 = vmatpush1.msra.mxu0 0.0
    %3377 = vmatprep.subr.mxu0 0.0
    %3378 = vmatpush1.msra.mxu0 0.0
    %3379 = vmatprep.subr.mxu0 0.0
    %3380 = vmatpush1.msra.mxu0 0.0
    %3381 = vmatprep.subr.mxu0 0.0
    %3382 = vmatpush1.msra.mxu0 0.0
    %3383 = vmatprep.subr.mxu0 0.0
    %3384 = vmatpush1.msra.mxu0 0.0
    %3385 = vmatprep.subr.mxu0 0.0
    %3386 = vmatpush1.msra.mxu0 0.0
    %3387 = vmatprep.subr.mxu0 0.0
    %3388 = vmatpush1.msra.mxu0 0.0
    %3389 = vmatprep.mubr.f32.mxu0 0.0
    %3390 = vmatmul.mubr.f32.gmra.mrb[0].mxu0 %v3323
    %v3391 = vpop.f32.mrb[0].mxu0
    %v3392 = vadd.f32 %v69, %v3391
    %v3393 = vpop.f32.mrb[0].mxu0
    %3394 = vdwg.mxu0
    %v3395 = vmul.f32 %v3392, %v2941
    %v3397 = vrot.slane %v3395, 6
    %v3399 = vadd.f32 %v3246, %v3397
    %v3401 = vrot.slane %v3399, 2
    %v3402 = vsel %vm169, %v3401, 0
    %3404 = vmatprep.subr.mxu0 0.0
    %3405 = vmatpush1.msra.mxu0 %v47
    %3406 = vmatprep.subr.mxu0 0.0
    %3407 = vmatpush1.msra.mxu0 %v48
    %3408 = vmatprep.subr.mxu0 0.0
    %3409 = vmatpush1.msra.mxu0 %v49
    %3410 = vmatprep.subr.mxu0 0.0
    %3411 = vmatpush1.msra.mxu0 %v50
    %3412 = vmatprep.subr.mxu0 0.0
    %3413 = vmatpush1.msra.mxu0 0.0
    %3414 = vmatprep.subr.mxu0 0.0
    %3415 = vmatpush1.msra.mxu0 0.0
    %3416 = vmatprep.subr.mxu0 0.0
    %3417 = vmatpush1.msra.mxu0 0.0
    %3418 = vmatprep.subr.mxu0 0.0
    %3419 = vmatpush1.msra.mxu0 0.0
    %3420 = vmatprep.subr.mxu0 0.0
    %3421 = vmatpush1.msra.mxu0 0.0
    %3422 = vmatprep.subr.mxu0 0.0
    %3423 = vmatpush1.msra.mxu0 0.0
    %3424 = vmatprep.subr.mxu0 0.0
    %3425 = vmatpush1.msra.mxu0 0.0
    %3426 = vmatprep.subr.mxu0 0.0
    %3427 = vmatpush1.msra.mxu0 0.0
    %3428 = vmatprep.subr.mxu0 0.0
    %3429 = vmatpush1.msra.mxu0 0.0
    %3430 = vmatprep.subr.mxu0 0.0
    %3431 = vmatpush1.msra.mxu0 0.0
    %3432 = vmatprep.subr.mxu0 0.0
    %3433 = vmatpush1.msra.mxu0 0.0
    %3434 = vmatprep.subr.mxu0 0.0
    %3435 = vmatpush1.msra.mxu0 0.0
    %3436 = vmatprep.subr.mxu0 0.0
    %3437 = vmatpush1.msra.mxu0 0.0
    %3438 = vmatprep.subr.mxu0 0.0
    %3439 = vmatpush1.msra.mxu0 0.0
    %3440 = vmatprep.subr.mxu0 0.0
    %3441 = vmatpush1.msra.mxu0 0.0
    %3442 = vmatprep.subr.mxu0 0.0
    %3443 = vmatpush1.msra.mxu0 0.0
    %3444 = vmatprep.subr.mxu0 0.0
    %3445 = vmatpush1.msra.mxu0 0.0
    %3446 = vmatprep.subr.mxu0 0.0
    %3447 = vmatpush1.msra.mxu0 0.0
    %3448 = vmatprep.subr.mxu0 0.0
    %3449 = vmatpush1.msra.mxu0 0.0
    %3450 = vmatprep.subr.mxu0 0.0
    %3451 = vmatpush1.msra.mxu0 0.0
    %3452 = vmatprep.subr.mxu0 0.0
    %3453 = vmatpush1.msra.mxu0 0.0
    %3454 = vmatprep.subr.mxu0 0.0
    %3455 = vmatpush1.msra.mxu0 0.0
    %3456 = vmatprep.subr.mxu0 0.0
    %3457 = vmatpush1.msra.mxu0 0.0
    %3458 = vmatprep.subr.mxu0 0.0
    %3459 = vmatpush1.msra.mxu0 0.0
    %3460 = vmatprep.subr.mxu0 0.0
    %3461 = vmatpush1.msra.mxu0 0.0
    %3462 = vmatprep.subr.mxu0 0.0
    %3463 = vmatpush1.msra.mxu0 0.0
    %3464 = vmatprep.subr.mxu0 0.0
    %3465 = vmatpush1.msra.mxu0 0.0
    %3466 = vmatprep.subr.mxu0 0.0
    %3467 = vmatpush1.msra.mxu0 0.0
    %3468 = vmatprep.mubr.f32.mxu0 0.0
    %3469 = vmatmul.mubr.f32.gmra.mrb[0].mxu0 %v3402
    %v3470 = vpop.f32.mrb[0].mxu0
    %v3471 = vadd.f32 0.0, %v3470
    %v3472 = vpop.f32.mrb[0].mxu0
    %3473 = vdwg.mxu0
    %v3475 = vrot.slane %v3471, 4
    %v3477 = vadd.f32 %v164, %v3475
    %v3478 = vtanh.pop %v3477
    %v3480 = vrot.slane %v3478, 4
    %v3482 = vadd.f32 %v2938, %v3480
    %3483 = vset.pattern.permute.xlu0 7
    %3484 = vperm.xlu0 %3483, %v168
    %v3485 = vpop.permute.xlu0 %3484
    %v3487 = vsel %vm169, %v3480, 0
    %3489 = vmatprep.subr.mxu0 0.0
    %3490 = vmatpush1.msra.mxu0 %v51
    %3491 = vmatprep.subr.mxu0 0.0
    %3492 = vmatpush1.msra.mxu0 %v52
    %3493 = vmatprep.subr.mxu0 0.0
    %3494 = vmatpush1.msra.mxu0 %v53
    %3495 = vmatprep.subr.mxu0 0.0
    %3496 = vmatpush1.msra.mxu0 %v54
    %3497 = vmatprep.subr.mxu0 0.0
    %3498 = vmatpush1.msra.mxu0 0.0
    %3499 = vmatprep.subr.mxu0 0.0
    %3500 = vmatpush1.msra.mxu0 0.0
    %3501 = vmatprep.subr.mxu0 0.0
    %3502 = vmatpush1.msra.mxu0 0.0
    %3503 = vmatprep.subr.mxu0 0.0
    %3504 = vmatpush1.msra.mxu0 0.0
    %3505 = vmatprep.subr.mxu0 0.0
    %3506 = vmatpush1.msra.mxu0 0.0
    %3507 = vmatprep.subr.mxu0 0.0
    %3508 = vmatpush1.msra.mxu0 0.0
    %3509 = vmatprep.subr.mxu0 0.0
    %3510 = vmatpush1.msra.mxu0 0.0
    %3511 = vmatprep.subr.mxu0 0.0
    %3512 = vmatpush1.msra.mxu0 0.0
    %3513 = vmatprep.subr.mxu0 0.0
    %3514 = vmatpush1.msra.mxu0 0.0
    %3515 = vmatprep.subr.mxu0 0.0
    %3516 = vmatpush1.msra.mxu0 0.0
    %3517 = vmatprep.subr.mxu0 0.0
    %3518 = vmatpush1.msra.mxu0 0.0
    %3519 = vmatprep.subr.mxu0 0.0
    %3520 = vmatpush1.msra.mxu0 0.0
    %3521 = vmatprep.subr.mxu0 0.0
    %3522 = vmatpush1.msra.mxu0 0.0
    %3523 = vmatprep.subr.mxu0 0.0
    %3524 = vmatpush1.msra.mxu0 0.0
    %3525 = vmatprep.subr.mxu0 0.0
    %3526 = vmatpush1.msra.mxu0 0.0
    %3527 = vmatprep.subr.mxu0 0.0
    %3528 = vmatpush1.msra.mxu0 0.0
    %3529 = vmatprep.subr.mxu0 0.0
    %3530 = vmatpush1.msra.mxu0 0.0
    %3531 = vmatprep.subr.mxu0 0.0
    %3532 = vmatpush1.msra.mxu0 0.0
    %3533 = vmatprep.subr.mxu0 0.0
    %3534 = vmatpush1.msra.mxu0 0.0
    %3535 = vmatprep.subr.mxu0 0.0
    %3536 = vmatpush1.msra.mxu0 0.0
    %3537 = vmatprep.subr.mxu0 0.0
    %3538 = vmatpush1.msra.mxu0 0.0
    %3539 = vmatprep.subr.mxu0 0.0
    %3540 = vmatpush1.msra.mxu0 0.0
    %3541 = vmatprep.subr.mxu0 0.0
    %3542 = vmatpush1.msra.mxu0 0.0
    %3543 = vmatprep.subr.mxu0 0.0
    %3544 = vmatpush1.msra.mxu0 0.0
    %3545 = vmatprep.subr.mxu0 0.0
    %3546 = vmatpush1.msra.mxu0 0.0
    %3547 = vmatprep.subr.mxu0 0.0
    %3548 = vmatpush1.msra.mxu0 0.0
    %3549 = vmatprep.subr.mxu0 0.0
    %3550 = vmatpush1.msra.mxu0 0.0
    %3551 = vmatprep.subr.mxu0 0.0
    %3552 = vmatpush1.msra.mxu0 0.0
    %3553 = vmatprep.mubr.f32.mxu0 0.0
    %3554 = vmatmul.mubr.f32.gmra.mrb[0].mxu0 %v3487
    %v3555 = vpop.f32.mrb[0].mxu0
    %v3556 = vadd.f32 %v64, %v3555
    %v3557 = vpop.f32.mrb[0].mxu0
    %3558 = vdwg.mxu0
    %v3559 = vmax.f32 %v3556, 0.0
    %v3561 = vsel %vm169, %v3559, 0
    %3563 = vmatprep.subr.mxu0 0.0
    %3564 = vmatpush1.msra.mxu0 %v56
    %3565 = vmatprep.subr.mxu0 0.0
    %3566 = vmatpush1.msra.mxu0 %v57
    %3567 = vmatprep.subr.mxu0 0.0
    %3568 = vmatpush1.msra.mxu0 %v58
    %3569 = vmatprep.subr.mxu0 0.0
    %3570 = vmatpush1.msra.mxu0 %v59
    %3571 = vmatprep.subr.mxu0 0.0
    %3572 = vmatpush1.msra.mxu0 0.0
    %3573 = vmatprep.subr.mxu0 0.0
    %3574 = vmatpush1.msra.mxu0 0.0
    %3575 = vmatprep.subr.mxu0 0.0
    %3576 = vmatpush1.msra.mxu0 0.0
    %3577 = vmatprep.subr.mxu0 0.0
    %3578 = vmatpush1.msra.mxu0 0.0
    %3579 = vmatprep.subr.mxu0 0.0
    %3580 = vmatpush1.msra.mxu0 0.0
    %3581 = vmatprep.subr.mxu0 0.0
    %3582 = vmatpush1.msra.mxu0 0.0
    %3583 = vmatprep.subr.mxu0 0.0
    %3584 = vmatpush1.msra.mxu0 0.0
    %3585 = vmatprep.subr.mxu0 0.0
    %3586 = vmatpush1.msra.mxu0 0.0
    %3587 = vmatprep.subr.mxu0 0.0
    %3588 = vmatpush1.msra.mxu0 0.0
    %3589 = vmatprep.subr.mxu0 0.0
    %3590 = vmatpush1.msra.mxu0 0.0
    %3591 = vmatprep.subr.mxu0 0.0
    %3592 = vmatpush1.msra.mxu0 0.0
    %3593 = vmatprep.subr.mxu0 0.0
    %3594 = vmatpush1.msra.mxu0 0.0
    %3595 = vmatprep.subr.mxu0 0.0
    %3596 = vmatpush1.msra.mxu0 0.0
    %3597 = vmatprep.subr.mxu0 0.0
    %3598 = vmatpush1.msra.mxu0 0.0
    %3599 = vmatprep.subr.mxu0 0.0
    %3600 = vmatpush1.msra.mxu0 0.0
    %3601 = vmatprep.subr.mxu0 0.0
    %3602 = vmatpush1.msra.mxu0 0.0
    %3603 = vmatprep.subr.mxu0 0.0
    %3604 = vmatpush1.msra.mxu0 0.0
    %3605 = vmatprep.subr.mxu0 0.0
    %3606 = vmatpush1.msra.mxu0 0.0
    %3607 = vmatprep.subr.mxu0 0.0
    %3608 = vmatpush1.msra.mxu0 0.0
    %3609 = vmatprep.subr.mxu0 0.0
    %3610 = vmatpush1.msra.mxu0 0.0
    %3611 = vmatprep.subr.mxu0 0.0
    %3612 = vmatpush1.msra.mxu0 0.0
    %3613 = vmatprep.subr.mxu0 0.0
    %3614 = vmatpush1.msra.mxu0 0.0
    %3615 = vmatprep.subr.mxu0 0.0
    %3616 = vmatpush1.msra.mxu0 0.0
    %3617 = vmatprep.subr.mxu0 0.0
    %3618 = vmatpush1.msra.mxu0 0.0
    %3619 = vmatprep.subr.mxu0 0.0
    %3620 = vmatpush1.msra.mxu0 0.0
    %3621 = vmatprep.subr.mxu0 0.0
    %3622 = vmatpush1.msra.mxu0 0.0
    %3623 = vmatprep.subr.mxu0 0.0
    %3624 = vmatpush1.msra.mxu0 0.0
    %3625 = vmatprep.subr.mxu0 0.0
    %3626 = vmatpush1.msra.mxu0 0.0
    %3627 = vmatprep.mubr.f32.mxu0 0.0
    %3628 = vmatmul.mubr.f32.gmra.mrb[0].mxu0 %v3561
    %v3629 = vpop.f32.mrb[0].mxu0
    %v3630 = vadd.f32 %v69, %v3629
    %v3631 = vpop.f32.mrb[0].mxu0
    %3632 = vdwg.mxu0
    %v3633 = vmul.f32 %v3630, %v3485
    %v3635 = vrot.slane %v3633, 4
    %v3637 = vadd.f32 %v3478, %v3635
    %v3639 = vrot.slane %v3637, 4
    %v3640 = vsel %vm169, %v3639, 0
    %3642 = vmatprep.subr.mxu0 0.0
    %3643 = vmatpush1.msra.mxu0 %v51
    %3644 = vmatprep.subr.mxu0 0.0
    %3645 = vmatpush1.msra.mxu0 %v52
    %3646 = vmatprep.subr.mxu0 0.0
    %3647 = vmatpush1.msra.mxu0 %v53
    %3648 = vmatprep.subr.mxu0 0.0
    %3649 = vmatpush1.msra.mxu0 %v54
    %3650 = vmatprep.subr.mxu0 0.0
    %3651 = vmatpush1.msra.mxu0 0.0
    %3652 = vmatprep.subr.mxu0 0.0
    %3653 = vmatpush1.msra.mxu0 0.0
    %3654 = vmatprep.subr.mxu0 0.0
    %3655 = vmatpush1.msra.mxu0 0.0
    %3656 = vmatprep.subr.mxu0 0.0
    %3657 = vmatpush1.msra.mxu0 0.0
    %3658 = vmatprep.subr.mxu0 0.0
    %3659 = vmatpush1.msra.mxu0 0.0
    %3660 = vmatprep.subr.mxu0 0.0
    %3661 = vmatpush1.msra.mxu0 0.0
    %3662 = vmatprep.subr.mxu0 0.0
    %3663 = vmatpush1.msra.mxu0 0.0
    %3664 = vmatprep.subr.mxu0 0.0
    %3665 = vmatpush1.msra.mxu0 0.0
    %3666 = vmatprep.subr.mxu0 0.0
    %3667 = vmatpush1.msra.mxu0 0.0
    %3668 = vmatprep.subr.mxu0 0.0
    %3669 = vmatpush1.msra.mxu0 0.0
    %3670 = vmatprep.subr.mxu0 0.0
    %3671 = vmatpush1.msra.mxu0 0.0
    %3672 = vmatprep.subr.mxu0 0.0
    %3673 = vmatpush1.msra.mxu0 0.0
    %3674 = vmatprep.subr.mxu0 0.0
    %3675 = vmatpush1.msra.mxu0 0.0
    %3676 = vmatprep.subr.mxu0 0.0
    %3677 = vmatpush1.msra.mxu0 0.0
    %3678 = vmatprep.subr.mxu0 0.0
    %3679 = vmatpush1.msra.mxu0 0.0
    %3680 = vmatprep.subr.mxu0 0.0
    %3681 = vmatpush1.msra.mxu0 0.0
    %3682 = vmatprep.subr.mxu0 0.0
    %3683 = vmatpush1.msra.mxu0 0.0
    %3684 = vmatprep.subr.mxu0 0.0
    %3685 = vmatpush1.msra.mxu0 0.0
    %3686 = vmatprep.subr.mxu0 0.0
    %3687 = vmatpush1.msra.mxu0 0.0
    %3688 = vmatprep.subr.mxu0 0.0
    %3689 = vmatpush1.msra.mxu0 0.0
    %3690 = vmatprep.subr.mxu0 0.0
    %3691 = vmatpush1.msra.mxu0 0.0
    %3692 = vmatprep.subr.mxu0 0.0
    %3693 = vmatpush1.msra.mxu0 0.0
    %3694 = vmatprep.subr.mxu0 0.0
    %3695 = vmatpush1.msra.mxu0 0.0
    %3696 = vmatprep.subr.mxu0 0.0
    %3697 = vmatpush1.msra.mxu0 0.0
    %3698 = vmatprep.subr.mxu0 0.0
    %3699 = vmatpush1.msra.mxu0 0.0
    %3700 = vmatprep.subr.mxu0 0.0
    %3701 = vmatpush1.msra.mxu0 0.0
    %3702 = vmatprep.subr.mxu0 0.0
    %3703 = vmatpush1.msra.mxu0 0.0
    %3704 = vmatprep.subr.mxu0 0.0
    %3705 = vmatpush1.msra.mxu0 0.0
    %3706 = vmatprep.mubr.f32.mxu0 0.0
    %3707 = vmatmul.mubr.f32.gmra.mrb[0].mxu0 %v3640
    %v3708 = vpop.f32.mrb[0].mxu0
    %v3709 = vadd.f32 %v64, %v3708
    %v3710 = vpop.f32.mrb[0].mxu0
    %3711 = vdwg.mxu0
    %v3712 = vmax.f32 %v3709, 0.0
    %v3714 = vsel %vm169, %v3712, 0
    %3716 = vmatprep.subr.mxu0 0.0
    %3717 = vmatpush1.msra.mxu0 %v56
    %3718 = vmatprep.subr.mxu0 0.0
    %3719 = vmatpush1.msra.mxu0 %v57
    %3720 = vmatprep.subr.mxu0 0.0
    %3721 = vmatpush1.msra.mxu0 %v58
    %3722 = vmatprep.subr.mxu0 0.0
    %3723 = vmatpush1.msra.mxu0 %v59
    %3724 = vmatprep.subr.mxu0 0.0
    %3725 = vmatpush1.msra.mxu0 0.0
    %3726 = vmatprep.subr.mxu0 0.0
    %3727 = vmatpush1.msra.mxu0 0.0
    %3728 = vmatprep.subr.mxu0 0.0
    %3729 = vmatpush1.msra.mxu0 0.0
    %3730 = vmatprep.subr.mxu0 0.0
    %3731 = vmatpush1.msra.mxu0 0.0
    %3732 = vmatprep.subr.mxu0 0.0
    %3733 = vmatpush1.msra.mxu0 0.0
    %3734 = vmatprep.subr.mxu0 0.0
    %3735 = vmatpush1.msra.mxu0 0.0
    %3736 = vmatprep.subr.mxu0 0.0
    %3737 = vmatpush1.msra.mxu0 0.0
    %3738 = vmatprep.subr.mxu0 0.0
    %3739 = vmatpush1.msra.mxu0 0.0
    %3740 = vmatprep.subr.mxu0 0.0
    %3741 = vmatpush1.msra.mxu0 0.0
    %3742 = vmatprep.subr.mxu0 0.0
    %3743 = vmatpush1.msra.mxu0 0.0
    %3744 = vmatprep.subr.mxu0 0.0
    %3745 = vmatpush1.msra.mxu0 0.0
    %3746 = vmatprep.subr.mxu0 0.0
    %3747 = vmatpush1.msra.mxu0 0.0
    %3748 = vmatprep.subr.mxu0 0.0
    %3749 = vmatpush1.msra.mxu0 0.0
    %3750 = vmatprep.subr.mxu0 0.0
    %3751 = vmatpush1.msra.mxu0 0.0
    %3752 = vmatprep.subr.mxu0 0.0
    %3753 = vmatpush1.msra.mxu0 0.0
    %3754 = vmatprep.subr.mxu0 0.0
    %3755 = vmatpush1.msra.mxu0 0.0
    %3756 = vmatprep.subr.mxu0 0.0
    %3757 = vmatpush1.msra.mxu0 0.0
    %3758 = vmatprep.subr.mxu0 0.0
    %3759 = vmatpush1.msra.mxu0 0.0
    %3760 = vmatprep.subr.mxu0 0.0
    %3761 = vmatpush1.msra.mxu0 0.0
    %3762 = vmatprep.subr.mxu0 0.0
    %3763 = vmatpush1.msra.mxu0 0.0
    %3764 = vmatprep.subr.mxu0 0.0
    %3765 = vmatpush1.msra.mxu0 0.0
    %3766 = vmatprep.subr.mxu0 0.0
    %3767 = vmatpush1.msra.mxu0 0.0
    %3768 = vmatprep.subr.mxu0 0.0
    %3769 = vmatpush1.msra.mxu0 0.0
    %3770 = vmatprep.subr.mxu0 0.0
    %3771 = vmatpush1.msra.mxu0 0.0
    %3772 = vmatprep.subr.mxu0 0.0
    %3773 = vmatpush1.msra.mxu0 0.0
    %3774 = vmatprep.subr.mxu0 0.0
    %3775 = vmatpush1.msra.mxu0 0.0
    %3776 = vmatprep.subr.mxu0 0.0
    %3777 = vmatpush1.msra.mxu0 0.0
    %3778 = vmatprep.subr.mxu0 0.0
    %3779 = vmatpush1.msra.mxu0 0.0
    %3780 = vmatprep.mubr.f32.mxu0 0.0
    %3781 = vmatmul.mubr.f32.gmra.mrb[0].mxu0 %v3714
    %v3782 = vpop.f32.mrb[0].mxu0
    %v3783 = vadd.f32 %v69, %v3782
    %v3784 = vpop.f32.mrb[0].mxu0
    %3785 = vdwg.mxu0
    %v3786 = vmul.f32 %v3783, %v3485
    %v3788 = vrot.slane %v3786, 4
    %v3790 = vadd.f32 %v3637, %v3788
    %v3792 = vrot.slane %v3790, 4
    %v3793 = vsel %vm169, %v3792, 0
    %3795 = vmatprep.subr.mxu0 0.0
    %3796 = vmatpush1.msra.mxu0 %v51
    %3797 = vmatprep.subr.mxu0 0.0
    %3798 = vmatpush1.msra.mxu0 %v52
    %3799 = vmatprep.subr.mxu0 0.0
    %3800 = vmatpush1.msra.mxu0 %v53
    %3801 = vmatprep.subr.mxu0 0.0
    %3802 = vmatpush1.msra.mxu0 %v54
    %3803 = vmatprep.subr.mxu0 0.0
    %3804 = vmatpush1.msra.mxu0 0.0
    %3805 = vmatprep.subr.mxu0 0.0
    %3806 = vmatpush1.msra.mxu0 0.0
    %3807 = vmatprep.subr.mxu0 0.0
    %3808 = vmatpush1.msra.mxu0 0.0
    %3809 = vmatprep.subr.mxu0 0.0
    %3810 = vmatpush1.msra.mxu0 0.0
    %3811 = vmatprep.subr.mxu0 0.0
    %3812 = vmatpush1.msra.mxu0 0.0
    %3813 = vmatprep.subr.mxu0 0.0
    %3814 = vmatpush1.msra.mxu0 0.0
    %3815 = vmatprep.subr.mxu0 0.0
    %3816 = vmatpush1.msra.mxu0 0.0
    %3817 = vmatprep.subr.mxu0 0.0
    %3818 = vmatpush1.msra.mxu0 0.0
    %3819 = vmatprep.subr.mxu0 0.0
    %3820 = vmatpush1.msra.mxu0 0.0
    %3821 = vmatprep.subr.mxu0 0.0
    %3822 = vmatpush1.msra.mxu0 0.0
    %3823 = vmatprep.subr.mxu0 0.0
    %3824 = vmatpush1.msra.mxu0 0.0
    %3825 = vmatprep.subr.mxu0 0.0
    %3826 = vmatpush1.msra.mxu0 0.0
    %3827 = vmatprep.subr.mxu0 0.0
    %3828 = vmatpush1.msra.mxu0 0.0
    %3829 = vmatprep.subr.mxu0 0.0
    %3830 = vmatpush1.msra.mxu0 0.0
    %3831 = vmatprep.subr.mxu0 0.0
    %3832 = vmatpush1.msra.mxu0 0.0
    %3833 = vmatprep.subr.mxu0 0.0
    %3834 = vmatpush1.msra.mxu0 0.0
    %3835 = vmatprep.subr.mxu0 0.0
    %3836 = vmatpush1.msra.mxu0 0.0
    %3837 = vmatprep.subr.mxu0 0.0
    %3838 = vmatpush1.msra.mxu0 0.0
    %3839 = vmatprep.subr.mxu0 0.0
    %3840 = vmatpush1.msra.mxu0 0.0
    %3841 = vmatprep.subr.mxu0 0.0
    %3842 = vmatpush1.msra.mxu0 0.0
    %3843 = vmatprep.subr.mxu0 0.0
    %3844 = vmatpush1.msra.mxu0 0.0
    %3845 = vmatprep.subr.mxu0 0.0
    %3846 = vmatpush1.msra.mxu0 0.0
    %3847 = vmatprep.subr.mxu0 0.0
    %3848 = vmatpush1.msra.mxu0 0.0
    %3849 = vmatprep.subr.mxu0 0.0
    %3850 = vmatpush1.msra.mxu0 0.0
    %3851 = vmatprep.subr.mxu0 0.0
    %3852 = vmatpush1.msra.mxu0 0.0
    %3853 = vmatprep.subr.mxu0 0.0
    %3854 = vmatpush1.msra.mxu0 0.0
    %3855 = vmatprep.subr.mxu0 0.0
    %3856 = vmatpush1.msra.mxu0 0.0
    %3857 = vmatprep.subr.mxu0 0.0
    %3858 = vmatpush1.msra.mxu0 0.0
    %3859 = vmatprep.mubr.f32.mxu0 0.0
    %3860 = vmatmul.mubr.f32.gmra.mrb[0].mxu0 %v3793
    %v3861 = vpop.f32.mrb[0].mxu0
    %v3862 = vadd.f32 %v64, %v3861
    %v3863 = vpop.f32.mrb[0].mxu0
    %3864 = vdwg.mxu0
    %v3865 = vmax.f32 %v3862, 0.0
    %v3867 = vsel %vm169, %v3865, 0
    %3869 = vmatprep.subr.mxu0 0.0
    %3870 = vmatpush1.msra.mxu0 %v56
    %3871 = vmatprep.subr.mxu0 0.0
    %3872 = vmatpush1.msra.mxu0 %v57
    %3873 = vmatprep.subr.mxu0 0.0
    %3874 = vmatpush1.msra.mxu0 %v58
    %3875 = vmatprep.subr.mxu0 0.0
    %3876 = vmatpush1.msra.mxu0 %v59
    %3877 = vmatprep.subr.mxu0 0.0
    %3878 = vmatpush1.msra.mxu0 0.0
    %3879 = vmatprep.subr.mxu0 0.0
    %3880 = vmatpush1.msra.mxu0 0.0
    %3881 = vmatprep.subr.mxu0 0.0
    %3882 = vmatpush1.msra.mxu0 0.0
    %3883 = vmatprep.subr.mxu0 0.0
    %3884 = vmatpush1.msra.mxu0 0.0
    %3885 = vmatprep.subr.mxu0 0.0
    %3886 = vmatpush1.msra.mxu0 0.0
    %3887 = vmatprep.subr.mxu0 0.0
    %3888 = vmatpush1.msra.mxu0 0.0
    %3889 = vmatprep.subr.mxu0 0.0
    %3890 = vmatpush1.msra.mxu0 0.0
    %3891 = vmatprep.subr.mxu0 0.0
    %3892 = vmatpush1.msra.mxu0 0.0
    %3893 = vmatprep.subr.mxu0 0.0
    %3894 = vmatpush1.msra.mxu0 0.0
    %3895 = vmatprep.subr.mxu0 0.0
    %3896 = vmatpush1.msra.mxu0 0.0
    %3897 = vmatprep.subr.mxu0 0.0
    %3898 = vmatpush1.msra.mxu0 0.0
    %3899 = vmatprep.subr.mxu0 0.0
    %3900 = vmatpush1.msra.mxu0 0.0
    %3901 = vmatprep.subr.mxu0 0.0
    %3902 = vmatpush1.msra.mxu0 0.0
    %3903 = vmatprep.subr.mxu0 0.0
    %3904 = vmatpush1.msra.mxu0 0.0
    %3905 = vmatprep.subr.mxu0 0.0
    %3906 = vmatpush1.msra.mxu0 0.0
    %3907 = vmatprep.subr.mxu0 0.0
    %3908 = vmatpush1.msra.mxu0 0.0
    %3909 = vmatprep.subr.mxu0 0.0
    %3910 = vmatpush1.msra.mxu0 0.0
    %3911 = vmatprep.subr.mxu0 0.0
    %3912 = vmatpush1.msra.mxu0 0.0
    %3913 = vmatprep.subr.mxu0 0.0
    %3914 = vmatpush1.msra.mxu0 0.0
    %3915 = vmatprep.subr.mxu0 0.0
    %3916 = vmatpush1.msra.mxu0 0.0
    %3917 = vmatprep.subr.mxu0 0.0
    %3918 = vmatpush1.msra.mxu0 0.0
    %3919 = vmatprep.subr.mxu0 0.0
    %3920 = vmatpush1.msra.mxu0 0.0
    %3921 = vmatprep.subr.mxu0 0.0
    %3922 = vmatpush1.msra.mxu0 0.0
    %3923 = vmatprep.subr.mxu0 0.0
    %3924 = vmatpush1.msra.mxu0 0.0
    %3925 = vmatprep.subr.mxu0 0.0
    %3926 = vmatpush1.msra.mxu0 0.0
    %3927 = vmatprep.subr.mxu0 0.0
    %3928 = vmatpush1.msra.mxu0 0.0
    %3929 = vmatprep.subr.mxu0 0.0
    %3930 = vmatpush1.msra.mxu0 0.0
    %3931 = vmatprep.subr.mxu0 0.0
    %3932 = vmatpush1.msra.mxu0 0.0
    %3933 = vmatprep.mubr.f32.mxu0 0.0
    %3934 = vmatmul.mubr.f32.gmra.mrb[0].mxu0 %v3867
    %v3935 = vpop.f32.mrb[0].mxu0
    %v3936 = vadd.f32 %v69, %v3935
    %v3937 = vpop.f32.mrb[0].mxu0
    %3938 = vdwg.mxu0
    %v3939 = vmul.f32 %v3936, %v3485
    %v3941 = vrot.slane %v3939, 4
    %v3943 = vadd.f32 %v3790, %v3941
    %v3945 = vrot.slane %v3943, 4
    %v3946 = vsel %vm169, %v3945, 0
    %3948 = vmatprep.subr.mxu0 0.0
    %3949 = vmatpush1.msra.mxu0 %v47
    %3950 = vmatprep.subr.mxu0 0.0
    %3951 = vmatpush1.msra.mxu0 %v48
    %3952 = vmatprep.subr.mxu0 0.0
    %3953 = vmatpush1.msra.mxu0 %v49
    %3954 = vmatprep.subr.mxu0 0.0
    %3955 = vmatpush1.msra.mxu0 %v50
    %3956 = vmatprep.subr.mxu0 0.0
    %3957 = vmatpush1.msra.mxu0 0.0
    %3958 = vmatprep.subr.mxu0 0.0
    %3959 = vmatpush1.msra.mxu0 0.0
    %3960 = vmatprep.subr.mxu0 0.0
    %3961 = vmatpush1.msra.mxu0 0.0
    %3962 = vmatprep.subr.mxu0 0.0
    %3963 = vmatpush1.msra.mxu0 0.0
    %3964 = vmatprep.subr.mxu0 0.0
    %3965 = vmatpush1.msra.mxu0 0.0
    %3966 = vmatprep.subr.mxu0 0.0
    %3967 = vmatpush1.msra.mxu0 0.0
    %3968 = vmatprep.subr.mxu0 0.0
    %3969 = vmatpush1.msra.mxu0 0.0
    %3970 = vmatprep.subr.mxu0 0.0
    %3971 = vmatpush1.msra.mxu0 0.0
    %3972 = vmatprep.subr.mxu0 0.0
    %3973 = vmatpush1.msra.mxu0 0.0
    %3974 = vmatprep.subr.mxu0 0.0
    %3975 = vmatpush1.msra.mxu0 0.0
    %3976 = vmatprep.subr.mxu0 0.0
    %3977 = vmatpush1.msra.mxu0 0.0
    %3978 = vmatprep.subr.mxu0 0.0
    %3979 = vmatpush1.msra.mxu0 0.0
    %3980 = vmatprep.subr.mxu0 0.0
    %3981 = vmatpush1.msra.mxu0 0.0
    %3982 = vmatprep.subr.mxu0 0.0
    %3983 = vmatpush1.msra.mxu0 0.0
    %3984 = vmatprep.subr.mxu0 0.0
    %3985 = vmatpush1.msra.mxu0 0.0
    %3986 = vmatprep.subr.mxu0 0.0
    %3987 = vmatpush1.msra.mxu0 0.0
    %3988 = vmatprep.subr.mxu0 0.0
    %3989 = vmatpush1.msra.mxu0 0.0
    %3990 = vmatprep.subr.mxu0 0.0
    %3991 = vmatpush1.msra.mxu0 0.0
    %3992 = vmatprep.subr.mxu0 0.0
    %3993 = vmatpush1.msra.mxu0 0.0
    %3994 = vmatprep.subr.mxu0 0.0
    %3995 = vmatpush1.msra.mxu0 0.0
    %3996 = vmatprep.subr.mxu0 0.0
    %3997 = vmatpush1.msra.mxu0 0.0
    %3998 = vmatprep.subr.mxu0 0.0
    %3999 = vmatpush1.msra.mxu0 0.0
    %4000 = vmatprep.subr.mxu0 0.0
    %4001 = vmatpush1.msra.mxu0 0.0
    %4002 = vmatprep.subr.mxu0 0.0
    %4003 = vmatpush1.msra.mxu0 0.0
    %4004 = vmatprep.subr.mxu0 0.0
    %4005 = vmatpush1.msra.mxu0 0.0
    %4006 = vmatprep.subr.mxu0 0.0
    %4007 = vmatpush1.msra.mxu0 0.0
    %4008 = vmatprep.subr.mxu0 0.0
    %4009 = vmatpush1.msra.mxu0 0.0
    %4010 = vmatprep.subr.mxu0 0.0
    %4011 = vmatpush1.msra.mxu0 0.0
    %4012 = vmatprep.mubr.f32.mxu0 0.0
    %4013 = vmatmul.mubr.f32.gmra.mrb[0].mxu0 %v3946
    %v4014 = vpop.f32.mrb[0].mxu0
    %v4015 = vadd.f32 0.0, %v4014
    %v4016 = vpop.f32.mrb[0].mxu0
    %4017 = vdwg.mxu0
    %v4019 = vrot.slane %v4015, 2
    %v4021 = vadd.f32 %v164, %v4019
    %v4022 = vtanh.pop %v4021
    %v4024 = vrot.slane %v4022, 6
    %v4026 = vadd.f32 %v3482, %v4024
    %v4027 = vmul.f32 %v4026, 0.125
    %v4029 = vlaneseq
    %v4030 = vshrl.u32 %v4029, 7
    %v4031 = vsub.s32 0, %v4030
    %v4032 = vrot.slane %v74, %v4031
    %v4035 = vsel %vm169, %v4027, 0
    %4037 = vmatprep.subr.mxu0 0.0
    %4038 = vmatpush1.msra.mxu0 %v70
    %4039 = vmatprep.subr.mxu0 0.0
    %4040 = vmatpush1.msra.mxu0 %v71
    %4041 = vmatprep.subr.mxu0 0.0
    %4042 = vmatpush1.msra.mxu0 %v72
    %4043 = vmatprep.subr.mxu0 0.0
    %4044 = vmatpush1.msra.mxu0 %v73
    %4045 = vmatprep.subr.mxu0 0.0
    %4046 = vmatpush1.msra.mxu0 0.0
    %4047 = vmatprep.subr.mxu0 0.0
    %4048 = vmatpush1.msra.mxu0 0.0
    %4049 = vmatprep.subr.mxu0 0.0
    %4050 = vmatpush1.msra.mxu0 0.0
    %4051 = vmatprep.subr.mxu0 0.0
    %4052 = vmatpush1.msra.mxu0 0.0
    %4053 = vmatprep.subr.mxu0 0.0
    %4054 = vmatpush1.msra.mxu0 0.0
    %4055 = vmatprep.subr.mxu0 0.0
    %4056 = vmatpush1.msra.mxu0 0.0
    %4057 = vmatprep.subr.mxu0 0.0
    %4058 = vmatpush1.msra.mxu0 0.0
    %4059 = vmatprep.subr.mxu0 0.0
    %4060 = vmatpush1.msra.mxu0 0.0
    %4061 = vmatprep.subr.mxu0 0.0
    %4062 = vmatpush1.msra.mxu0 0.0
    %4063 = vmatprep.subr.mxu0 0.0
    %4064 = vmatpush1.msra.mxu0 0.0
    %4065 = vmatprep.subr.mxu0 0.0
    %4066 = vmatpush1.msra.mxu0 0.0
    %4067 = vmatprep.subr.mxu0 0.0
    %4068 = vmatpush1.msra.mxu0 0.0
    %4069 = vmatprep.subr.mxu0 0.0
    %4070 = vmatpush1.msra.mxu0 0.0
    %4071 = vmatprep.subr.mxu0 0.0
    %4072 = vmatpush1.msra.mxu0 0.0
    %4073 = vmatprep.subr.mxu0 0.0
    %4074 = vmatpush1.msra.mxu0 0.0
    %4075 = vmatprep.subr.mxu0 0.0
    %4076 = vmatpush1.msra.mxu0 0.0
    %4077 = vmatprep.subr.mxu0 0.0
    %4078 = vmatpush1.msra.mxu0 0.0
    %4079 = vmatprep.subr.mxu0 0.0
    %4080 = vmatpush1.msra.mxu0 0.0
    %4081 = vmatprep.subr.mxu0 0.0
    %4082 = vmatpush1.msra.mxu0 0.0
    %4083 = vmatprep.subr.mxu0 0.0
    %4084 = vmatpush1.msra.mxu0 0.0
    %4085 = vmatprep.subr.mxu0 0.0
    %4086 = vmatpush1.msra.mxu0 0.0
    %4087 = vmatprep.subr.mxu0 0.0
    %4088 = vmatpush1.msra.mxu0 0.0
    %4089 = vmatprep.subr.mxu0 0.0
    %4090 = vmatpush1.msra.mxu0 0.0
    %4091 = vmatprep.subr.mxu0 0.0
    %4092 = vmatpush1.msra.mxu0 0.0
    %4093 = vmatprep.subr.mxu0 0.0
    %4094 = vmatpush1.msra.mxu0 0.0
    %4095 = vmatprep.subr.mxu0 0.0
    %4096 = vmatpush1.msra.mxu0 0.0
    %4097 = vmatprep.subr.mxu0 0.0
    %4098 = vmatpush1.msra.mxu0 0.0
    %4099 = vmatprep.subr.mxu0 0.0
    %4100 = vmatpush1.msra.mxu0 0.0
    %4101 = vmatprep.mubr.f32.mxu0 0.0
    %4102 = vmatmul.mubr.f32.gmra.mrb[0].mxu0 %v4035
    %v4103 = vpop.f32.mrb[0].mxu0
    %v4104 = vadd.f32 %v4032, %v4103
    %v4105 = vpop.f32.mrb[0].mxu0
    %4106 = vdwg.mxu0
    %vm4107 = vcmask 33792
    %4108 = vst.msk [vmem:[#allocation5] sm:$0x3] %vm4107, %v4104
    // Predicated region
    $region42: #{tpu_custom_call.1} parent=1 // pred_check
      _
    $region43: #{tpu_custom_call.1} parent=1 // pred_check_branch
      %4110 = sbr.rel (0) target = $region45
    $region44: #{tpu_custom_call.1} parent=1 // pred_region
      %s4112 = ssub.s32 32, 32
      %4113 = vsyncadd [#allocation4], %s4112
      %s4115 = sshll.u32 [#allocation5], 4
      %s4116 = int_to_ptr.vmem [resolvable:$true] %s4115
      %4118 = dma.vmem_to_hbm [thread:$0]  %s4116, 32, %s9, [#allocation4]
    $region45: #{tpu_custom_call.1} parent=1 // pred_fallthru
      _
    // Predicated region
    $region46: #{tpu_custom_call.1} parent=1 // pred_check
      _
    $region47: #{tpu_custom_call.1} parent=1 // pred_check_branch
      %4120 = sbr.rel (0) target = $region49
    $region48: #{tpu_custom_call.1} parent=1 // pred_region
      %4121 = dma.done [#allocation4], 32
    $region49: #{tpu_custom_call.1} parent=1 // pred_fallthru
      _
    %4122 = vsyncpa [#allocation3], 1
    %4123 = vsyncpa [#allocation4], 1

</llo_original>
